<compile_context>
chip_gen: v7x
topology: tpu7x:2x2x1
jax: 0.10.0
libtpu: 0.0.40
codegen_flags: <defaults>
</compile_context>

<pallas_src>
import jax
import jax.numpy as jnp
from jax import lax
from jax.experimental import pallas as pl
from jax.experimental.pallas import tpu as pltpu


def _round_up(x, m):
    return ((x + m - 1) // m) * m


def down_kernel(x_ref, w1_ref, b1_ref, w2_ref, b2_ref, o_ref, p1_ref, p2_ref):
    # x_ref : (Nblk, 2, 2, Hp, Wp, Cin)   bf16, pool window on leading axes
    # w*_ref: (9*Cin_conv, Cout_conv)     bf16, BN scale already folded in
    # b*_ref: (1, Cout_conv)              f32, folded BN bias
    # o_ref : (Nblk, Hp, Wp, Cout)        bf16
    # p*_ref: (Nblk, Hp+2, Wp+2, C)       bf16 zero-bordered conv staging scratch
    nblk, _, _, hp, wp, cin = x_ref.shape
    cmid = w1_ref.shape[1]
    cout = w2_ref.shape[1]
    rows = nblk * hp * wp

    # One-time (per core) clear of the staging scratches.  Only the 1-px
    # border has to stay zero; clearing once at this core's first step is
    # cheaper than re-writing borders on every grid step.
    @pl.when(pl.program_id(1) == 0)
    def _init():
        p1_ref[...] = jnp.zeros(p1_ref.shape, p1_ref.dtype)
        p2_ref[...] = jnp.zeros(p2_ref.shape, p2_ref.dtype)

    # ---- MaxPool2d(kernel=2, stride=2): window axes are leading -> cheap ----
    pooled = jnp.maximum(
        jnp.maximum(x_ref[:, 0, 0], x_ref[:, 0, 1]),
        jnp.maximum(x_ref[:, 1, 0], x_ref[:, 1, 1]),
    )  # (nblk, hp, wp, cin) bf16

    def conv3x3_bias_relu(src_ref, w_ref, b_ref, c_in):
        # 9 accumulating MXU matmuls; bf16 operands, f32 accumulation.
        acc = None
        k = 0
        for dy in range(3):
            for dx in range(3):
                tap = src_ref[:, dy:dy + hp, dx:dx + wp, :].reshape(rows, c_in)
                part = jnp.dot(tap, w_ref[k * c_in:(k + 1) * c_in, :],
                               preferred_element_type=jnp.float32)
                acc = part if acc is None else acc + part
                k += 1
        return jnp.maximum(acc + b_ref[...], 0.0)   # folded-BN bias + ReLU (f32)

    # ---- conv1 -> BN -> ReLU ----
    p1_ref[:, 1:hp + 1, 1:wp + 1, :] = pooled
    h1 = conv3x3_bias_relu(p1_ref, w1_ref, b1_ref, cin)          # (rows, cmid) f32

    # ---- conv2 -> BN -> ReLU (h1 cast to bf16 exactly once, at staging) ----
    p2_ref[:, 1:hp + 1, 1:wp + 1, :] = (
        h1.reshape(nblk, hp, wp, cmid).astype(p2_ref.dtype))
    h2 = conv3x3_bias_relu(p2_ref, w2_ref, b2_ref, cmid)         # (rows, cout) f32

    o_ref[...] = h2.reshape(nblk, hp, wp, cout).astype(o_ref.dtype)


def _vmem_capacity_bytes():
    """Generation-aware VMEM capacity (64 MiB/TC on v7x, 128 MiB on v5e/v6e)."""
    try:
        info = pltpu.get_tpu_info()
        cap = getattr(info, "vmem_capacity_bytes", None)
        if cap:
            return int(cap)
    except Exception:
        pass
    return 64 << 20          # conservative fallback (safe on every generation)


def _pick_tiling(n, hp, wp, cinp, cmidp, coutp, vmem_cap):
    """Return (core_split, nblk): largest batch block whose per-step working
    set (double-buffered in/out blocks + weights + bf16 scratches + f32
    transients) fits a generation-aware VMEM budget."""
    # Keep >= 2 grid steps when possible so v7x's two TensorCores both work.
    split = 2 if (n >= 2 and n % 2 == 0) else 1
    n_per = n // split
    budget = int(vmem_cap * 0.6)
    weights = 2 * 9 * (cinp * cmidp + cmidp * coutp) * 2            # bf16, x2 buffers

    def per_step(nb):
        rows = nb * hp * wp
        x_blk = 2 * nb * 4 * hp * wp * cinp * 2                     # bf16 in, x2 buffers
        o_blk = 2 * nb * hp * wp * coutp * 2                        # bf16 out, x2 buffers
        scr = nb * (hp + 2) * (wp + 2) * (cinp + cmidp) * 2         # bf16 staging
        trans = rows * (cmidp + coutp) * 4 + rows * max(cinp, cmidp) * 2
        return x_blk + o_blk + scr + trans

    best = 1
    for d in range(1, n_per + 1):
        if n_per % d == 0 and weights + per_step(d) <= budget:
            best = d
    return split, best


def down_forward(x_nchw, params):
    """Pallas implementation of Down.forward.  x_nchw: (N, Cin, H, W) f32."""
    w1, s1, b1, w2, s2, b2 = params
    N, Cin, H, W = x_nchw.shape
    Hp, Wp = H // 2, W // 2
    Cmid = w1.shape[-1]
    Cout = w2.shape[-1]
    Cinp, Cmidp, Coutp = (_round_up(c, 128) for c in (Cin, Cmid, Cout))

    # ---- parameter prep: fold BN scale into conv weights, pad channels to
    #      128 multiples, flatten the 3x3 taps (tap-major) ----
    def prep_w(w, s, cin_p, cout_p):
        wf = w * s.reshape(1, 1, 1, -1)                              # fold BN scale
        wf = jnp.pad(wf, ((0, 0), (0, 0),
                          (0, cin_p - w.shape[2]), (0, cout_p - w.shape[3])))
        return wf.reshape(9 * cin_p, cout_p).astype(jnp.bfloat16)

    w1p = prep_w(w1, s1, Cinp, Cmidp)
    w2p = prep_w(w2, s2, Cmidp, Coutp)
    b1p = jnp.pad(b1.reshape(-1), (0, Cmidp - Cmid)).reshape(1, Cmidp).astype(jnp.float32)
    b2p = jnp.pad(b2.reshape(-1), (0, Coutp - Cout)).reshape(1, Coutp).astype(jnp.float32)

    # ---- input prep: NCHW -> NHWC, crop odd edge (MaxPool2d floors),
    #      zero-pad channels, expose the 2x2 pool window on leading axes ----
    x = jnp.transpose(x_nchw[:, :, :2 * Hp, :2 * Wp], (0, 2, 3, 1))
    x = jnp.pad(x, ((0, 0), (0, 0), (0, 0), (0, Cinp - Cin))).astype(jnp.bfloat16)
    x6 = x.reshape(N, Hp, 2, Wp, 2, Cinp).transpose(0, 2, 4, 1, 3, 5)  # (N,2,2,Hp,Wp,C)

    vmem_cap = _vmem_capacity_bytes()
    split, nblk = _pick_tiling(N, Hp, Wp, Cinp, Cmidp, Coutp, vmem_cap)
    bpc = (N // split) // nblk               # batch blocks per parallel grid slice

    out = pl.pallas_call(
        down_kernel,
        out_shape=jax.ShapeDtypeStruct((N, Hp, Wp, Coutp), jnp.bfloat16),
        grid=(split, bpc),
        in_specs=[
            pl.BlockSpec((nblk, 2, 2, Hp, Wp, Cinp),
                         lambda c, n: (c * bpc + n, 0, 0, 0, 0, 0)),
            pl.BlockSpec((9 * Cinp, Cmidp), lambda c, n: (0, 0)),
            pl.BlockSpec((1, Cmidp), lambda c, n: (0, 0)),
            pl.BlockSpec((9 * Cmidp, Coutp), lambda c, n: (0, 0)),
            pl.BlockSpec((1, Coutp), lambda c, n: (0, 0)),
        ],
        out_specs=pl.BlockSpec((nblk, Hp, Wp, Coutp),
                               lambda c, n: (c * bpc + n, 0, 0, 0)),
        scratch_shapes=[
            pltpu.VMEM((nblk, Hp + 2, Wp + 2, Cinp), jnp.bfloat16),
            pltpu.VMEM((nblk, Hp + 2, Wp + 2, Cmidp), jnp.bfloat16),
        ],
        compiler_params=pltpu.CompilerParams(
            dimension_semantics=("parallel", "arbitrary"),
            vmem_limit_bytes=min(int(vmem_cap * 0.75), 100 * 1024 * 1024),
        ),
    )(x6, w1p, b1p, w2p, b2p)

    out = out[..., :Cout].astype(jnp.float32)        # strip channel padding
    return jnp.transpose(out, (0, 3, 1, 2))          # back to NCHW (f32)


def make_params(key, in_channels, out_channels):
    """Deterministic synthetic parameters.  Conv weights in HWIO; BN folded."""
    mid_channels = out_channels
    eps = 1e-5
    ks = jax.random.split(key, 10)

    def bn_fold(kg, kb, km, kv, c):
        gamma = 1.0 + 0.1 * jax.random.normal(kg, (c,), jnp.float32)
        beta = 0.1 * jax.random.normal(kb, (c,), jnp.float32)
        mean = 0.1 * jax.random.normal(km, (c,), jnp.float32)
        var = jax.random.uniform(kv, (c,), jnp.float32, 0.5, 1.5)
        scale = gamma / jnp.sqrt(var + eps)
        bias = beta - mean * scale
        return scale, bias

    w1 = 0.1 * jax.random.normal(ks[0], (3, 3, in_channels, mid_channels),
                                 jnp.float32)
    s1, b1 = bn_fold(ks[1], ks[2], ks[3], ks[4], mid_channels)
    w2 = 0.1 * jax.random.normal(ks[5], (3, 3, mid_channels, out_channels),
                                 jnp.float32)
    s2, b2 = bn_fold(ks[6], ks[7], ks[8], ks[9], out_channels)
    return (w1, s1, b1, w2, s2, b2)


def down_forward_ref(x_nchw, params):
    """Plain-JAX f32 reference (maxpool -> conv/bn/relu x2), for validation."""
    w1, s1, b1, w2, s2, b2 = params
    N, Cin, H, W = x_nchw.shape
    Hp, Wp = H // 2, W // 2
    x = jnp.transpose(x_nchw[:, :, :2 * Hp, :2 * Wp], (0, 2, 3, 1)).astype(jnp.float32)
    pooled = x.reshape(N, Hp, 2, Wp, 2, Cin).max(axis=(2, 4))

    def conv_bn_relu(inp, w, s, b):
        y = lax.conv_general_dilated(
            inp, w, window_strides=(1, 1), padding="SAME",
            dimension_numbers=("NHWC", "HWIO", "NHWC"))
        y = y * s.reshape(1, 1, 1, -1) + b.reshape(1, 1, 1, -1)
        return jnp.maximum(y, 0.0)

    h = conv_bn_relu(pooled, w1, s1, b1)
    h = conv_bn_relu(h, w2, s2, b2)
    return jnp.transpose(h, (0, 3, 1, 2))


if __name__ == "__main__":
    key = jax.random.PRNGKey(0)
    k_x, k_p = jax.random.split(key)

    N, Cin, H, W = 2, 4, 16, 16
    Cout = 8

    x = jax.random.normal(k_x, (N, Cin, H, W), jnp.float32)
    params = make_params(k_p, Cin, Cout)

    out = jax.block_until_ready(down_forward(x, params))
    ref = jax.block_until_ready(down_forward_ref(x, params))

    assert out.shape == (N, Cout, H // 2, W // 2), out.shape
    # bf16 MXU operands + bf16 kernel output => loosened tolerance vs f32 ref.
    assert jnp.allclose(out, ref, atol=5e-2, rtol=5e-2), (
        float(jnp.max(jnp.abs(out - ref))))
    print("KERNEL_OK")
</pallas_src>

<mosaic_0001>
module attributes {stable_mosaic.version = 11 : i64} {
  func.func @down_kernel(%arg0: i32, %arg1: i32, %arg2: memref<1x2x2x8x8x128xbf16, #tpu.memory_space<vmem>>, %arg3: memref<1152x128xbf16, #tpu.memory_space<vmem>>, %arg4: memref<1x128xf32, #tpu.memory_space<vmem>>, %arg5: memref<1152x128xbf16, #tpu.memory_space<vmem>>, %arg6: memref<1x128xf32, #tpu.memory_space<vmem>>, %arg7: memref<1x8x8x128xbf16, #tpu.memory_space<vmem>>, %arg8: memref<1x10x10x128xbf16, #tpu.memory_space<vmem>>, %arg9: memref<1x10x10x128xbf16, #tpu.memory_space<vmem>>) attributes {dimension_semantics = [#tpu.dimension_semantics<parallel>, #tpu.dimension_semantics<arbitrary>], iteration_bounds = array<i64: 2, 1>, scalar_prefetch = 0 : i64, scratch_operands = 2 : i64, tpu.core_type = #tpu.core_type<tc>, window_params = [{transform_indices = @transform_0, window_bounds = array<i64: 1, 2, 2, 8, 8, 128>}, {pipeline_mode = #tpu.pipeline_mode<synchronous>, transform_indices = @transform_1, window_bounds = array<i64: 1152, 128>}, {pipeline_mode = #tpu.pipeline_mode<synchronous>, transform_indices = @transform_2, window_bounds = array<i64: 1, 128>}, {pipeline_mode = #tpu.pipeline_mode<synchronous>, transform_indices = @transform_3, window_bounds = array<i64: 1152, 128>}, {pipeline_mode = #tpu.pipeline_mode<synchronous>, transform_indices = @transform_4, window_bounds = array<i64: 1, 128>}, {transform_indices = @transform_5, window_bounds = array<i64: 1, 8, 8, 128>}]} {
    %c0_i32 = arith.constant 0 : i32
    %0 = arith.cmpi eq, %arg1, %c0_i32 : i32
    %1 = arith.extui %0 : i1 to i32
    %c0_i32_0 = arith.constant 0 : i32
    %2 = arith.cmpi ne, %1, %c0_i32_0 : i32
    scf.if %2 {
      %cst_157 = arith.constant 0.000000e+00 : bf16
      %119 = vector.broadcast %cst_157 : bf16 to vector<1x10x10x128xbf16>
      %c0_158 = arith.constant 0 : index
      %c0_159 = arith.constant 0 : index
      %c0_160 = arith.constant 0 : index
      %c0_161 = arith.constant 0 : index
      %120 = vector.load %arg8[%c0_158, %c0_159, %c0_160, %c0_161] : memref<1x10x10x128xbf16, #tpu.memory_space<vmem>>, vector<1x10x10x128xbf16>
      tpu.vector_store %arg8[%c0_158, %c0_159, %c0_160, %c0_161], %119 {strides = array<i32>} : memref<1x10x10x128xbf16, #tpu.memory_space<vmem>>, vector<1x10x10x128xbf16>,
      %cst_162 = arith.constant 0.000000e+00 : bf16
      %121 = vector.broadcast %cst_162 : bf16 to vector<1x10x10x128xbf16>
      %c0_163 = arith.constant 0 : index
      %c0_164 = arith.constant 0 : index
      %c0_165 = arith.constant 0 : index
      %c0_166 = arith.constant 0 : index
      %122 = vector.load %arg9[%c0_163, %c0_164, %c0_165, %c0_166] : memref<1x10x10x128xbf16, #tpu.memory_space<vmem>>, vector<1x10x10x128xbf16>
      tpu.vector_store %arg9[%c0_163, %c0_164, %c0_165, %c0_166], %121 {strides = array<i32>} : memref<1x10x10x128xbf16, #tpu.memory_space<vmem>>, vector<1x10x10x128xbf16>,
    } else {
    }
    %c0 = arith.constant 0 : index
    %c0_1 = arith.constant 0 : index
    %c0_2 = arith.constant 0 : index
    %c0_3 = arith.constant 0 : index
    %c0_4 = arith.constant 0 : index
    %c0_5 = arith.constant 0 : index
    %3 = vector.load %arg2[%c0, %c0_1, %c0_2, %c0_3, %c0_4, %c0_5] : memref<1x2x2x8x8x128xbf16, #tpu.memory_space<vmem>>, vector<1x1x1x8x8x128xbf16>
    %4 = vector.shape_cast %3 : vector<1x1x1x8x8x128xbf16> to vector<1x8x8x128xbf16>
    %c0_6 = arith.constant 0 : index
    %c0_7 = arith.constant 0 : index
    %c1 = arith.constant 1 : index
    %c0_8 = arith.constant 0 : index
    %c0_9 = arith.constant 0 : index
    %c0_10 = arith.constant 0 : index
    %5 = vector.load %arg2[%c0_6, %c0_7, %c1, %c0_8, %c0_9, %c0_10] : memref<1x2x2x8x8x128xbf16, #tpu.memory_space<vmem>>, vector<1x1x1x8x8x128xbf16>
    %6 = vector.shape_cast %5 : vector<1x1x1x8x8x128xbf16> to vector<1x8x8x128xbf16>
    %7 = arith.maximumf %4, %6 : vector<1x8x8x128xbf16>
    %c0_11 = arith.constant 0 : index
    %c1_12 = arith.constant 1 : index
    %c0_13 = arith.constant 0 : index
    %c0_14 = arith.constant 0 : index
    %c0_15 = arith.constant 0 : index
    %c0_16 = arith.constant 0 : index
    %8 = vector.load %arg2[%c0_11, %c1_12, %c0_13, %c0_14, %c0_15, %c0_16] : memref<1x2x2x8x8x128xbf16, #tpu.memory_space<vmem>>, vector<1x1x1x8x8x128xbf16>
    %9 = vector.shape_cast %8 : vector<1x1x1x8x8x128xbf16> to vector<1x8x8x128xbf16>
    %c0_17 = arith.constant 0 : index
    %c1_18 = arith.constant 1 : index
    %c1_19 = arith.constant 1 : index
    %c0_20 = arith.constant 0 : index
    %c0_21 = arith.constant 0 : index
    %c0_22 = arith.constant 0 : index
    %10 = vector.load %arg2[%c0_17, %c1_18, %c1_19, %c0_20, %c0_21, %c0_22] : memref<1x2x2x8x8x128xbf16, #tpu.memory_space<vmem>>, vector<1x1x1x8x8x128xbf16>
    %11 = vector.shape_cast %10 : vector<1x1x1x8x8x128xbf16> to vector<1x8x8x128xbf16>
    %12 = arith.maximumf %9, %11 : vector<1x8x8x128xbf16>
    %13 = arith.maximumf %7, %12 : vector<1x8x8x128xbf16>
    %c0_23 = arith.constant 0 : index
    %c1_24 = arith.constant 1 : index
    %c1_25 = arith.constant 1 : index
    %c0_26 = arith.constant 0 : index
    %14 = vector.load %arg8[%c0_23, %c1_24, %c1_25, %c0_26] : memref<1x10x10x128xbf16, #tpu.memory_space<vmem>>, vector<1x8x8x128xbf16>
    tpu.vector_store %arg8[%c0_23, %c1_24, %c1_25, %c0_26], %13 {strides = array<i32>} : memref<1x10x10x128xbf16, #tpu.memory_space<vmem>>, vector<1x8x8x128xbf16>,
    %c0_27 = arith.constant 0 : index
    %c0_28 = arith.constant 0 : index
    %c0_29 = arith.constant 0 : index
    %c0_30 = arith.constant 0 : index
    %15 = vector.load %arg8[%c0_27, %c0_28, %c0_29, %c0_30] : memref<1x10x10x128xbf16, #tpu.memory_space<vmem>>, vector<1x8x8x128xbf16>
    %16 = vector.shape_cast %15 : vector<1x8x8x128xbf16> to vector<64x128xbf16>
    %c0_31 = arith.constant 0 : index
    %c0_32 = arith.constant 0 : index
    %17 = vector.load %arg3[%c0_31, %c0_32] : memref<1152x128xbf16, #tpu.memory_space<vmem>>, vector<128x128xbf16>
    %cst = arith.constant dense<0.000000e+00> : vector<64x128xf32>
    %18 = tpu.matmul %16, %17, %cst {dimension_numbers = #tpu.dot_dimension_numbers<[1], [0], [0], [1], [0, 0, 1, 1], [], []>} : vector<64x128xbf16>, vector<128x128xbf16>, vector<64x128xf32> -> vector<64x128xf32>
    %c0_33 = arith.constant 0 : index
    %c0_34 = arith.constant 0 : index
    %c1_35 = arith.constant 1 : index
    %c0_36 = arith.constant 0 : index
    %19 = vector.load %arg8[%c0_33, %c0_34, %c1_35, %c0_36] : memref<1x10x10x128xbf16, #tpu.memory_space<vmem>>, vector<1x8x8x128xbf16>
    %20 = vector.shape_cast %19 : vector<1x8x8x128xbf16> to vector<64x128xbf16>
    %c128 = arith.constant 128 : index
    %c0_37 = arith.constant 0 : index
    %21 = vector.load %arg3[%c128, %c0_37] : memref<1152x128xbf16, #tpu.memory_space<vmem>>, vector<128x128xbf16>
    %cst_38 = arith.constant dense<0.000000e+00> : vector<64x128xf32>
    %22 = tpu.matmul %20, %21, %cst_38 {dimension_numbers = #tpu.dot_dimension_numbers<[1], [0], [0], [1], [0, 0, 1, 1], [], []>} : vector<64x128xbf16>, vector<128x128xbf16>, vector<64x128xf32> -> vector<64x128xf32>
    %23 = arith.addf %18, %22 : vector<64x128xf32>
    %c0_39 = arith.constant 0 : index
    %c0_40 = arith.constant 0 : index
    %c2 = arith.constant 2 : index
    %c0_41 = arith.constant 0 : index
    %24 = vector.load %arg8[%c0_39, %c0_40, %c2, %c0_41] : memref<1x10x10x128xbf16, #tpu.memory_space<vmem>>, vector<1x8x8x128xbf16>
    %25 = vector.shape_cast %24 : vector<1x8x8x128xbf16> to vector<64x128xbf16>
    %c256 = arith.constant 256 : index
    %c0_42 = arith.constant 0 : index
    %26 = vector.load %arg3[%c256, %c0_42] : memref<1152x128xbf16, #tpu.memory_space<vmem>>, vector<128x128xbf16>
    %cst_43 = arith.constant dense<0.000000e+00> : vector<64x128xf32>
    %27 = tpu.matmul %25, %26, %cst_43 {dimension_numbers = #tpu.dot_dimension_numbers<[1], [0], [0], [1], [0, 0, 1, 1], [], []>} : vector<64x128xbf16>, vector<128x128xbf16>, vector<64x128xf32> -> vector<64x128xf32>
    %28 = arith.addf %23, %27 : vector<64x128xf32>
    %c0_44 = arith.constant 0 : index
    %c1_45 = arith.constant 1 : index
    %c0_46 = arith.constant 0 : index
    %c0_47 = arith.constant 0 : index
    %29 = vector.load %arg8[%c0_44, %c1_45, %c0_46, %c0_47] : memref<1x10x10x128xbf16, #tpu.memory_space<vmem>>, vector<1x8x8x128xbf16>
    %30 = vector.shape_cast %29 : vector<1x8x8x128xbf16> to vector<64x128xbf16>
    %c384 = arith.constant 384 : index
    %c0_48 = arith.constant 0 : index
    %31 = vector.load %arg3[%c384, %c0_48] : memref<1152x128xbf16, #tpu.memory_space<vmem>>, vector<128x128xbf16>
    %cst_49 = arith.constant dense<0.000000e+00> : vector<64x128xf32>
    %32 = tpu.matmul %30, %31, %cst_49 {dimension_numbers = #tpu.dot_dimension_numbers<[1], [0], [0], [1], [0, 0, 1, 1], [], []>} : vector<64x128xbf16>, vector<128x128xbf16>, vector<64x128xf32> -> vector<64x128xf32>
    %33 = arith.addf %28, %32 : vector<64x128xf32>
    %c0_50 = arith.constant 0 : index
    %c1_51 = arith.constant 1 : index
    %c1_52 = arith.constant 1 : index
    %c0_53 = arith.constant 0 : index
    %34 = vector.load %arg8[%c0_50, %c1_51, %c1_52, %c0_53] : memref<1x10x10x128xbf16, #tpu.memory_space<vmem>>, vector<1x8x8x128xbf16>
    %35 = vector.shape_cast %34 : vector<1x8x8x128xbf16> to vector<64x128xbf16>
    %c512 = arith.constant 512 : index
    %c0_54 = arith.constant 0 : index
    %36 = vector.load %arg3[%c512, %c0_54] : memref<1152x128xbf16, #tpu.memory_space<vmem>>, vector<128x128xbf16>
    %cst_55 = arith.constant dense<0.000000e+00> : vector<64x128xf32>
    %37 = tpu.matmul %35, %36, %cst_55 {dimension_numbers = #tpu.dot_dimension_numbers<[1], [0], [0], [1], [0, 0, 1, 1], [], []>} : vector<64x128xbf16>, vector<128x128xbf16>, vector<64x128xf32> -> vector<64x128xf32>
    %38 = arith.addf %33, %37 : vector<64x128xf32>
    %c0_56 = arith.constant 0 : index
    %c1_57 = arith.constant 1 : index
    %c2_58 = arith.constant 2 : index
    %c0_59 = arith.constant 0 : index
    %39 = vector.load %arg8[%c0_56, %c1_57, %c2_58, %c0_59] : memref<1x10x10x128xbf16, #tpu.memory_space<vmem>>, vector<1x8x8x128xbf16>
    %40 = vector.shape_cast %39 : vector<1x8x8x128xbf16> to vector<64x128xbf16>
    %c640 = arith.constant 640 : index
    %c0_60 = arith.constant 0 : index
    %41 = vector.load %arg3[%c640, %c0_60] : memref<1152x128xbf16, #tpu.memory_space<vmem>>, vector<128x128xbf16>
    %cst_61 = arith.constant dense<0.000000e+00> : vector<64x128xf32>
    %42 = tpu.matmul %40, %41, %cst_61 {dimension_numbers = #tpu.dot_dimension_numbers<[1], [0], [0], [1], [0, 0, 1, 1], [], []>} : vector<64x128xbf16>, vector<128x128xbf16>, vector<64x128xf32> -> vector<64x128xf32>
    %43 = arith.addf %38, %42 : vector<64x128xf32>
    %c0_62 = arith.constant 0 : index
    %c2_63 = arith.constant 2 : index
    %c0_64 = arith.constant 0 : index
    %c0_65 = arith.constant 0 : index
    %44 = vector.load %arg8[%c0_62, %c2_63, %c0_64, %c0_65] : memref<1x10x10x128xbf16, #tpu.memory_space<vmem>>, vector<1x8x8x128xbf16>
    %45 = vector.shape_cast %44 : vector<1x8x8x128xbf16> to vector<64x128xbf16>
    %c768 = arith.constant 768 : index
    %c0_66 = arith.constant 0 : index
    %46 = vector.load %arg3[%c768, %c0_66] : memref<1152x128xbf16, #tpu.memory_space<vmem>>, vector<128x128xbf16>
    %cst_67 = arith.constant dense<0.000000e+00> : vector<64x128xf32>
    %47 = tpu.matmul %45, %46, %cst_67 {dimension_numbers = #tpu.dot_dimension_numbers<[1], [0], [0], [1], [0, 0, 1, 1], [], []>} : vector<64x128xbf16>, vector<128x128xbf16>, vector<64x128xf32> -> vector<64x128xf32>
    %48 = arith.addf %43, %47 : vector<64x128xf32>
    %c0_68 = arith.constant 0 : index
    %c2_69 = arith.constant 2 : index
    %c1_70 = arith.constant 1 : index
    %c0_71 = arith.constant 0 : index
    %49 = vector.load %arg8[%c0_68, %c2_69, %c1_70, %c0_71] : memref<1x10x10x128xbf16, #tpu.memory_space<vmem>>, vector<1x8x8x128xbf16>
    %50 = vector.shape_cast %49 : vector<1x8x8x128xbf16> to vector<64x128xbf16>
    %c896 = arith.constant 896 : index
    %c0_72 = arith.constant 0 : index
    %51 = vector.load %arg3[%c896, %c0_72] : memref<1152x128xbf16, #tpu.memory_space<vmem>>, vector<128x128xbf16>
    %cst_73 = arith.constant dense<0.000000e+00> : vector<64x128xf32>
    %52 = tpu.matmul %50, %51, %cst_73 {dimension_numbers = #tpu.dot_dimension_numbers<[1], [0], [0], [1], [0, 0, 1, 1], [], []>} : vector<64x128xbf16>, vector<128x128xbf16>, vector<64x128xf32> -> vector<64x128xf32>
    %53 = arith.addf %48, %52 : vector<64x128xf32>
    %c0_74 = arith.constant 0 : index
    %c2_75 = arith.constant 2 : index
    %c2_76 = arith.constant 2 : index
    %c0_77 = arith.constant 0 : index
    %54 = vector.load %arg8[%c0_74, %c2_75, %c2_76, %c0_77] : memref<1x10x10x128xbf16, #tpu.memory_space<vmem>>, vector<1x8x8x128xbf16>
    %55 = vector.shape_cast %54 : vector<1x8x8x128xbf16> to vector<64x128xbf16>
    %c1024 = arith.constant 1024 : index
    %c0_78 = arith.constant 0 : index
    %56 = vector.load %arg3[%c1024, %c0_78] : memref<1152x128xbf16, #tpu.memory_space<vmem>>, vector<128x128xbf16>
    %cst_79 = arith.constant dense<0.000000e+00> : vector<64x128xf32>
    %57 = tpu.matmul %55, %56, %cst_79 {dimension_numbers = #tpu.dot_dimension_numbers<[1], [0], [0], [1], [0, 0, 1, 1], [], []>} : vector<64x128xbf16>, vector<128x128xbf16>, vector<64x128xf32> -> vector<64x128xf32>
    %58 = arith.addf %53, %57 : vector<64x128xf32>
    %c0_80 = arith.constant 0 : index
    %c0_81 = arith.constant 0 : index
    %59 = vector.load %arg4[%c0_80, %c0_81] : memref<1x128xf32, #tpu.memory_space<vmem>>, vector<1x128xf32>
    %60 = vector.broadcast %59 : vector<1x128xf32> to vector<64x128xf32>
    %61 = arith.addf %58, %60 : vector<64x128xf32>
    %cst_82 = arith.constant 0.000000e+00 : f32
    %62 = vector.broadcast %cst_82 : f32 to vector<64x128xf32>
    %63 = arith.maximumf %61, %62 : vector<64x128xf32>
    %64 = vector.shape_cast %63 : vector<64x128xf32> to vector<1x8x8x128xf32>
    %65 = arith.truncf %64 : vector<1x8x8x128xf32> to vector<1x8x8x128xbf16>
    %c0_83 = arith.constant 0 : index
    %c1_84 = arith.constant 1 : index
    %c1_85 = arith.constant 1 : index
    %c0_86 = arith.constant 0 : index
    %66 = vector.load %arg9[%c0_83, %c1_84, %c1_85, %c0_86] : memref<1x10x10x128xbf16, #tpu.memory_space<vmem>>, vector<1x8x8x128xbf16>
    tpu.vector_store %arg9[%c0_83, %c1_84, %c1_85, %c0_86], %65 {strides = array<i32>} : memref<1x10x10x128xbf16, #tpu.memory_space<vmem>>, vector<1x8x8x128xbf16>,
    %c0_87 = arith.constant 0 : index
    %c0_88 = arith.constant 0 : index
    %c0_89 = arith.constant 0 : index
    %c0_90 = arith.constant 0 : index
    %67 = vector.load %arg9[%c0_87, %c0_88, %c0_89, %c0_90] : memref<1x10x10x128xbf16, #tpu.memory_space<vmem>>, vector<1x8x8x128xbf16>
    %68 = vector.shape_cast %67 : vector<1x8x8x128xbf16> to vector<64x128xbf16>
    %c0_91 = arith.constant 0 : index
    %c0_92 = arith.constant 0 : index
    %69 = vector.load %arg5[%c0_91, %c0_92] : memref<1152x128xbf16, #tpu.memory_space<vmem>>, vector<128x128xbf16>
    %cst_93 = arith.constant dense<0.000000e+00> : vector<64x128xf32>
    %70 = tpu.matmul %68, %69, %cst_93 {dimension_numbers = #tpu.dot_dimension_numbers<[1], [0], [0], [1], [0, 0, 1, 1], [], []>} : vector<64x128xbf16>, vector<128x128xbf16>, vector<64x128xf32> -> vector<64x128xf32>
    %c0_94 = arith.constant 0 : index
    %c0_95 = arith.constant 0 : index
    %c1_96 = arith.constant 1 : index
    %c0_97 = arith.constant 0 : index
    %71 = vector.load %arg9[%c0_94, %c0_95, %c1_96, %c0_97] : memref<1x10x10x128xbf16, #tpu.memory_space<vmem>>, vector<1x8x8x128xbf16>
    %72 = vector.shape_cast %71 : vector<1x8x8x128xbf16> to vector<64x128xbf16>
    %c128_98 = arith.constant 128 : index
    %c0_99 = arith.constant 0 : index
    %73 = vector.load %arg5[%c128_98, %c0_99] : memref<1152x128xbf16, #tpu.memory_space<vmem>>, vector<128x128xbf16>
    %cst_100 = arith.constant dense<0.000000e+00> : vector<64x128xf32>
    %74 = tpu.matmul %72, %73, %cst_100 {dimension_numbers = #tpu.dot_dimension_numbers<[1], [0], [0], [1], [0, 0, 1, 1], [], []>} : vector<64x128xbf16>, vector<128x128xbf16>, vector<64x128xf32> -> vector<64x128xf32>
    %75 = arith.addf %70, %74 : vector<64x128xf32>
    %c0_101 = arith.constant 0 : index
    %c0_102 = arith.constant 0 : index
    %c2_103 = arith.constant 2 : index
    %c0_104 = arith.constant 0 : index
    %76 = vector.load %arg9[%c0_101, %c0_102, %c2_103, %c0_104] : memref<1x10x10x128xbf16, #tpu.memory_space<vmem>>, vector<1x8x8x128xbf16>
    %77 = vector.shape_cast %76 : vector<1x8x8x128xbf16> to vector<64x128xbf16>
    %c256_105 = arith.constant 256 : index
    %c0_106 = arith.constant 0 : index
    %78 = vector.load %arg5[%c256_105, %c0_106] : memref<1152x128xbf16, #tpu.memory_space<vmem>>, vector<128x128xbf16>
    %cst_107 = arith.constant dense<0.000000e+00> : vector<64x128xf32>
    %79 = tpu.matmul %77, %78, %cst_107 {dimension_numbers = #tpu.dot_dimension_numbers<[1], [0], [0], [1], [0, 0, 1, 1], [], []>} : vector<64x128xbf16>, vector<128x128xbf16>, vector<64x128xf32> -> vector<64x128xf32>
    %80 = arith.addf %75, %79 : vector<64x128xf32>
    %c0_108 = arith.constant 0 : index
    %c1_109 = arith.constant 1 : index
    %c0_110 = arith.constant 0 : index
    %c0_111 = arith.constant 0 : index
    %81 = vector.load %arg9[%c0_108, %c1_109, %c0_110, %c0_111] : memref<1x10x10x128xbf16, #tpu.memory_space<vmem>>, vector<1x8x8x128xbf16>
    %82 = vector.shape_cast %81 : vector<1x8x8x128xbf16> to vector<64x128xbf16>
    %c384_112 = arith.constant 384 : index
    %c0_113 = arith.constant 0 : index
    %83 = vector.load %arg5[%c384_112, %c0_113] : memref<1152x128xbf16, #tpu.memory_space<vmem>>, vector<128x128xbf16>
    %cst_114 = arith.constant dense<0.000000e+00> : vector<64x128xf32>
    %84 = tpu.matmul %82, %83, %cst_114 {dimension_numbers = #tpu.dot_dimension_numbers<[1], [0], [0], [1], [0, 0, 1, 1], [], []>} : vector<64x128xbf16>, vector<128x128xbf16>, vector<64x128xf32> -> vector<64x128xf32>
    %85 = arith.addf %80, %84 : vector<64x128xf32>
    %c0_115 = arith.constant 0 : index
    %c1_116 = arith.constant 1 : index
    %c1_117 = arith.constant 1 : index
    %c0_118 = arith.constant 0 : index
    %86 = vector.load %arg9[%c0_115, %c1_116, %c1_117, %c0_118] : memref<1x10x10x128xbf16, #tpu.memory_space<vmem>>, vector<1x8x8x128xbf16>
    %87 = vector.shape_cast %86 : vector<1x8x8x128xbf16> to vector<64x128xbf16>
    %c512_119 = arith.constant 512 : index
    %c0_120 = arith.constant 0 : index
    %88 = vector.load %arg5[%c512_119, %c0_120] : memref<1152x128xbf16, #tpu.memory_space<vmem>>, vector<128x128xbf16>
    %cst_121 = arith.constant dense<0.000000e+00> : vector<64x128xf32>
    %89 = tpu.matmul %87, %88, %cst_121 {dimension_numbers = #tpu.dot_dimension_numbers<[1], [0], [0], [1], [0, 0, 1, 1], [], []>} : vector<64x128xbf16>, vector<128x128xbf16>, vector<64x128xf32> -> vector<64x128xf32>
    %90 = arith.addf %85, %89 : vector<64x128xf32>
    %c0_122 = arith.constant 0 : index
    %c1_123 = arith.constant 1 : index
    %c2_124 = arith.constant 2 : index
    %c0_125 = arith.constant 0 : index
    %91 = vector.load %arg9[%c0_122, %c1_123, %c2_124, %c0_125] : memref<1x10x10x128xbf16, #tpu.memory_space<vmem>>, vector<1x8x8x128xbf16>
    %92 = vector.shape_cast %91 : vector<1x8x8x128xbf16> to vector<64x128xbf16>
    %c640_126 = arith.constant 640 : index
    %c0_127 = arith.constant 0 : index
    %93 = vector.load %arg5[%c640_126, %c0_127] : memref<1152x128xbf16, #tpu.memory_space<vmem>>, vector<128x128xbf16>
    %cst_128 = arith.constant dense<0.000000e+00> : vector<64x128xf32>
    %94 = tpu.matmul %92, %93, %cst_128 {dimension_numbers = #tpu.dot_dimension_numbers<[1], [0], [0], [1], [0, 0, 1, 1], [], []>} : vector<64x128xbf16>, vector<128x128xbf16>, vector<64x128xf32> -> vector<64x128xf32>
    %95 = arith.addf %90, %94 : vector<64x128xf32>
    %c0_129 = arith.constant 0 : index
    %c2_130 = arith.constant 2 : index
    %c0_131 = arith.constant 0 : index
    %c0_132 = arith.constant 0 : index
    %96 = vector.load %arg9[%c0_129, %c2_130, %c0_131, %c0_132] : memref<1x10x10x128xbf16, #tpu.memory_space<vmem>>, vector<1x8x8x128xbf16>
    %97 = vector.shape_cast %96 : vector<1x8x8x128xbf16> to vector<64x128xbf16>
    %c768_133 = arith.constant 768 : index
    %c0_134 = arith.constant 0 : index
    %98 = vector.load %arg5[%c768_133, %c0_134] : memref<1152x128xbf16, #tpu.memory_space<vmem>>, vector<128x128xbf16>
    %cst_135 = arith.constant dense<0.000000e+00> : vector<64x128xf32>
    %99 = tpu.matmul %97, %98, %cst_135 {dimension_numbers = #tpu.dot_dimension_numbers<[1], [0], [0], [1], [0, 0, 1, 1], [], []>} : vector<64x128xbf16>, vector<128x128xbf16>, vector<64x128xf32> -> vector<64x128xf32>
    %100 = arith.addf %95, %99 : vector<64x128xf32>
    %c0_136 = arith.constant 0 : index
    %c2_137 = arith.constant 2 : index
    %c1_138 = arith.constant 1 : index
    %c0_139 = arith.constant 0 : index
    %101 = vector.load %arg9[%c0_136, %c2_137, %c1_138, %c0_139] : memref<1x10x10x128xbf16, #tpu.memory_space<vmem>>, vector<1x8x8x128xbf16>
    %102 = vector.shape_cast %101 : vector<1x8x8x128xbf16> to vector<64x128xbf16>
    %c896_140 = arith.constant 896 : index
    %c0_141 = arith.constant 0 : index
    %103 = vector.load %arg5[%c896_140, %c0_141] : memref<1152x128xbf16, #tpu.memory_space<vmem>>, vector<128x128xbf16>
    %cst_142 = arith.constant dense<0.000000e+00> : vector<64x128xf32>
    %104 = tpu.matmul %102, %103, %cst_142 {dimension_numbers = #tpu.dot_dimension_numbers<[1], [0], [0], [1], [0, 0, 1, 1], [], []>} : vector<64x128xbf16>, vector<128x128xbf16>, vector<64x128xf32> -> vector<64x128xf32>
    %105 = arith.addf %100, %104 : vector<64x128xf32>
    %c0_143 = arith.constant 0 : index
    %c2_144 = arith.constant 2 : index
    %c2_145 = arith.constant 2 : index
    %c0_146 = arith.constant 0 : index
    %106 = vector.load %arg9[%c0_143, %c2_144, %c2_145, %c0_146] : memref<1x10x10x128xbf16, #tpu.memory_space<vmem>>, vector<1x8x8x128xbf16>
    %107 = vector.shape_cast %106 : vector<1x8x8x128xbf16> to vector<64x128xbf16>
    %c1024_147 = arith.constant 1024 : index
    %c0_148 = arith.constant 0 : index
    %108 = vector.load %arg5[%c1024_147, %c0_148] : memref<1152x128xbf16, #tpu.memory_space<vmem>>, vector<128x128xbf16>
    %cst_149 = arith.constant dense<0.000000e+00> : vector<64x128xf32>
    %109 = tpu.matmul %107, %108, %cst_149 {dimension_numbers = #tpu.dot_dimension_numbers<[1], [0], [0], [1], [0, 0, 1, 1], [], []>} : vector<64x128xbf16>, vector<128x128xbf16>, vector<64x128xf32> -> vector<64x128xf32>
    %110 = arith.addf %105, %109 : vector<64x128xf32>
    %c0_150 = arith.constant 0 : index
    %c0_151 = arith.constant 0 : index
    %111 = vector.load %arg6[%c0_150, %c0_151] : memref<1x128xf32, #tpu.memory_space<vmem>>, vector<1x128xf32>
    %112 = vector.broadcast %111 : vector<1x128xf32> to vector<64x128xf32>
    %113 = arith.addf %110, %112 : vector<64x128xf32>
    %cst_152 = arith.constant 0.000000e+00 : f32
    %114 = vector.broadcast %cst_152 : f32 to vector<64x128xf32>
    %115 = arith.maximumf %113, %114 : vector<64x128xf32>
    %116 = vector.shape_cast %115 : vector<64x128xf32> to vector<1x8x8x128xf32>
    %117 = arith.truncf %116 : vector<1x8x8x128xf32> to vector<1x8x8x128xbf16>
    %c0_153 = arith.constant 0 : index
    %c0_154 = arith.constant 0 : index
    %c0_155 = arith.constant 0 : index
    %c0_156 = arith.constant 0 : index
    %118 = vector.load %arg7[%c0_153, %c0_154, %c0_155, %c0_156] : memref<1x8x8x128xbf16, #tpu.memory_space<vmem>>, vector<1x8x8x128xbf16>
    tpu.vector_store %arg7[%c0_153, %c0_154, %c0_155, %c0_156], %117 {strides = array<i32>} : memref<1x8x8x128xbf16, #tpu.memory_space<vmem>>, vector<1x8x8x128xbf16>,
    return
  }
  func.func @transform_0(%arg0: i32, %arg1: i32) -> (i32, i32, i32, i32, i32, i32) {
    %c1_i32 = arith.constant 1 : i32
    %0 = arith.muli %arg0, %c1_i32 : i32
    %1 = arith.addi %0, %arg1 : i32
    %c0_i32 = arith.constant 0 : i32
    %c0_i32_0 = arith.constant 0 : i32
    %c0_i32_1 = arith.constant 0 : i32
    %c0_i32_2 = arith.constant 0 : i32
    %c0_i32_3 = arith.constant 0 : i32
    %c0_i32_4 = arith.constant 0 : i32
    return %1, %c0_i32, %c0_i32_0, %c0_i32_1, %c0_i32_2, %c0_i32_3 : i32, i32, i32, i32, i32, i32
  }
  func.func @transform_1(%arg0: i32, %arg1: i32) -> (i32, i32) {
    %c0_i32 = arith.constant 0 : i32
    %c0_i32_0 = arith.constant 0 : i32
    %c0_i32_1 = arith.constant 0 : i32
    return %c0_i32, %c0_i32_0 : i32, i32
  }
  func.func @transform_2(%arg0: i32, %arg1: i32) -> (i32, i32) {
    %c0_i32 = arith.constant 0 : i32
    %c0_i32_0 = arith.constant 0 : i32
    %c0_i32_1 = arith.constant 0 : i32
    return %c0_i32, %c0_i32_0 : i32, i32
  }
  func.func @transform_3(%arg0: i32, %arg1: i32) -> (i32, i32) {
    %c0_i32 = arith.constant 0 : i32
    %c0_i32_0 = arith.constant 0 : i32
    %c0_i32_1 = arith.constant 0 : i32
    return %c0_i32, %c0_i32_0 : i32, i32
  }
  func.func @transform_4(%arg0: i32, %arg1: i32) -> (i32, i32) {
    %c0_i32 = arith.constant 0 : i32
    %c0_i32_0 = arith.constant 0 : i32
    %c0_i32_1 = arith.constant 0 : i32
    return %c0_i32, %c0_i32_0 : i32, i32
  }
  func.func @transform_5(%arg0: i32, %arg1: i32) -> (i32, i32, i32, i32) {
    %c1_i32 = arith.constant 1 : i32
    %0 = arith.muli %arg0, %c1_i32 : i32
    %1 = arith.addi %0, %arg1 : i32
    %c0_i32 = arith.constant 0 : i32
    %c0_i32_0 = arith.constant 0 : i32
    %c0_i32_1 = arith.constant 0 : i32
    %c0_i32_2 = arith.constant 0 : i32
    return %1, %c0_i32, %c0_i32_0, %c0_i32_1 : i32, i32, i32, i32
  }
}

</mosaic_0001>

<llo_original>
// kernel: tpu_custom_call.1
$region0: #{tpu_custom_call.1}
  #allocation0 [shape = 'u32[]', space=smem, size = 0x4, offset = 0x4, fixed_abs, tag = 'smem constant byte address 0x4 - core index']
  #allocation1 [shape = 'u32[144,128]{1,0:T(1,128)}', space=vmem, size = 0x12000, scoped, tag = 'internal scratch']
  #allocation2 [shape = 'bf16[1,10,10,128]{3,2,1,0:T(8,128)(2,1)}', space=vmem, size = 0xa000, scoped, tag = 'scratch operand']
  #allocation3 [shape = 'bf16[1,10,10,128]{3,2,1,0:T(8,128)(2,1)}', space=vmem, size = 0xa000, scoped, tag = 'scratch operand']
  %s0 = inlined_call_operand.hbm [shape: bf16[2,2,2,8,8,128], index: 0, kind: input, shape index: {}]
  %s1 = inlined_call_operand.hbm [shape: bf16[1152,128], index: 1, kind: input, shape index: {}]
  %s2 = inlined_call_operand.vmem [shape: f32[1,128], index: 2, kind: input, shape index: {}]
  %s3 = inlined_call_operand.hbm [shape: bf16[1152,128], index: 3, kind: input, shape index: {}]
  %s4 = inlined_call_operand.vmem [shape: f32[1,128], index: 4, kind: input, shape index: {}]
  %s5 = inlined_call_operand.hbm [shape: bf16[2,8,8,128], index: 5, kind: output, shape index: {}]
  %s6 = sld [smem:[#allocation0]]
  $region69: #{tpu_custom_call.1} parent=0
    _
  %s8 = ssub.s32 1, %s6
  %s9 = scalar_select 0, %s8, %s6
  $region1: #{tpu_custom_call.1} parent=0
    #allocation4 [shape = 'u8[131072]{0}', space=vmem, size = 0x20000, scoped, tag = 'input window, operand 0']
    #allocation5 [shape = 's32[2]{0}', space=sflag, size = 0x8, scoped, tag = 'scoped memory for tpu_custom_call.1']
    #allocation6 [shape = 's32[2]{0}', space=sflag, size = 0x8, scoped, tag = 'scoped memory for tpu_custom_call.1']
    #allocation7 [shape = 'u8[294912]{0}', space=vmem, size = 0x48000, scoped, tag = 'input window, operand 1, single buffered']
    #allocation8 [shape = 's32[1]{0}', space=sflag, size = 0x4, scoped, tag = 'scoped memory for tpu_custom_call.1']
    #allocation9 [shape = 'u8[294912]{0}', space=vmem, size = 0x48000, scoped, tag = 'input window, operand 3, single buffered']
    #allocation10 [shape = 'u8[32768]{0}', space=vmem, size = 0x8000, scoped, tag = 'output window, operand 0']
    %10 = vsyncpa [#allocation5], 0
    %s11 = scalar_lea.sflag [#allocation5], 1
    %12 = vsyncpa %s11, 0
    %13 = vsyncpa [#allocation8], 0
    %14 = vsyncpa [#allocation6], 0
    %s15 = scalar_lea.sflag [#allocation6], 1
    %16 = vsyncpa %s15, 0
    loop: start=0, step=1, limit=4
    $region2: #{tpu_custom_call.1} parent=1 // loop_pre_header
      _
    $region3: #{tpu_custom_call.1} parent=1 // loop_header
      %s18 = sphi 0, %s22
      %p19 = scmp.ge.s32.totalorder %s18, 4
      %s25 = sphi 0, %s37
      %s26 = sphi 0, %s33
      %s27 = sphi 0, %s25
      %s28 = sphi 0, %s26
      %s29 = sphi 0, %s27
      %s30 = sphi 0, %s28
      %s42 = sphi 0, %s44
      %s45 = sphi 0, %s42
      %s46 = sphi 0, %s45
      %s62 = sphi 0, %s46
      %s66 = sphi 0, %s66
      %s68 = sphi 0, %s66
      %s69 = sphi 0, %s68
      %s83 = sphi 0, %s69
      %s87 = sphi 0, %s87
      %s89 = sphi 0, %s87
      %s90 = sphi 0, %s89
      %s104 = sphi 0, %s90
      %s108 = sphi 0, %s108
      %s110 = sphi 0, %s108
      %s111 = sphi 0, %s110
      %s125 = sphi 0, %s111
      %s129 = sphi 0, %s129
      %s131 = sphi 0, %s129
      %s132 = sphi 0, %s131
      %s146 = sphi 0, %s132
      %s154 = sphi 0, %s156
      %s157 = sphi 0, %s154
      %s158 = sphi 0, %s157
      %s174 = sphi 0, %s158
    $region4: #{tpu_custom_call.1} parent=1 // loop_header_branch
      %21 = sbr.rel (%p19) target = $region8
    $region5: #{tpu_custom_call.1} parent=1 // loop_body
      %s23 = ssub.s32 %s18, 1
      %s24 = ssub.s32 %s18, 2
      %s31 = sadd.s32 1, %s26
      %p32 = scmp.ge.s32.totalorder %s31, 1
      %s33 = scalar_select %p32, 0, %s31
      %s34 = sadd.s32 1, %s25
      %s35 = scalar_select %p32, %s34, %s25
      %p36 = scmp.ge.s32.totalorder %s35, 2
      %s37 = scalar_select %p36, 0, %s35
      %s38 = sadd.s32 %s25, %s26
      %s39 = sadd.s32 %s37, %s33
      %s40 = ssub.s32 %s38, %s39
      %p41 = scmp.eq.s32.totalorder %s40, 0
      %s43 = sadd.s32 %s42, 1
      %s44 = scalar_select %p41, %s42, %s43
      %p47 = pneg %p41
      %p48 = scmp.eq.s32.totalorder %s18, 1
      %p49 = por %p47, %p48
      %p50 = scmp.ne.s32.totalorder %s42, %s45
      %p51 = scmp.eq.s32.totalorder %s18, 0
      %p52 = por %p50, %p51
      %p53 = scmp.ne.s32.totalorder %s42, %s45
      %p54 = scmp.eq.s32.totalorder %s23, 1
      %p55 = por %p53, %p54
      %p56 = scmp.ne.s32.totalorder %s45, %s46
      %p57 = scmp.eq.s32.totalorder %s23, 0
      %p58 = por %p56, %p57
      %p59 = scmp.ne.s32.totalorder %s45, %s46
      %p60 = scmp.eq.s32.totalorder %s24, 1
      %p61 = por %p59, %p60
      %p63 = scmp.ne.s32.totalorder %s46, %s62
      %p64 = scmp.eq.s32.totalorder %s24, 0
      %p65 = por %p63, %p64
      %s67 = sadd.s32 %s66, 1
      %p70 = scmp.eq.s32.totalorder %s18, 1
      %p71 = scmp.ne.s32.totalorder %s66, %s68
      %p72 = scmp.eq.s32.totalorder %s18, 0
      %p73 = por %p71, %p72
      %p74 = scmp.ne.s32.totalorder %s66, %s68
      %p75 = scmp.eq.s32.totalorder %s23, 1
      %p76 = por %p74, %p75
      %p77 = scmp.ne.s32.totalorder %s68, %s69
      %p78 = scmp.eq.s32.totalorder %s23, 0
      %p79 = por %p77, %p78
      %p80 = scmp.ne.s32.totalorder %s68, %s69
      %p81 = scmp.eq.s32.totalorder %s24, 1
      %p82 = por %p80, %p81
      %p84 = scmp.ne.s32.totalorder %s69, %s83
      %p85 = scmp.eq.s32.totalorder %s24, 0
      %p86 = por %p84, %p85
      %s88 = sadd.s32 %s87, 1
      %p91 = scmp.eq.s32.totalorder %s18, 1
      %p92 = scmp.ne.s32.totalorder %s87, %s89
      %p93 = scmp.eq.s32.totalorder %s18, 0
      %p94 = por %p92, %p93
      %p95 = scmp.ne.s32.totalorder %s87, %s89
      %p96 = scmp.eq.s32.totalorder %s23, 1
      %p97 = por %p95, %p96
      %p98 = scmp.ne.s32.totalorder %s89, %s90
      %p99 = scmp.eq.s32.totalorder %s23, 0
      %p100 = por %p98, %p99
      %p101 = scmp.ne.s32.totalorder %s89, %s90
      %p102 = scmp.eq.s32.totalorder %s24, 1
      %p103 = por %p101, %p102
      %p105 = scmp.ne.s32.totalorder %s90, %s104
      %p106 = scmp.eq.s32.totalorder %s24, 0
      %p107 = por %p105, %p106
      %s109 = sadd.s32 %s108, 1
      %p112 = scmp.eq.s32.totalorder %s18, 1
      %p113 = scmp.ne.s32.totalorder %s108, %s110
      %p114 = scmp.eq.s32.totalorder %s18, 0
      %p115 = por %p113, %p114
      %p116 = scmp.ne.s32.totalorder %s108, %s110
      %p117 = scmp.eq.s32.totalorder %s23, 1
      %p118 = por %p116, %p117
      %p119 = scmp.ne.s32.totalorder %s110, %s111
      %p120 = scmp.eq.s32.totalorder %s23, 0
      %p121 = por %p119, %p120
      %p122 = scmp.ne.s32.totalorder %s110, %s111
      %p123 = scmp.eq.s32.totalorder %s24, 1
      %p124 = por %p122, %p123
      %p126 = scmp.ne.s32.totalorder %s111, %s125
      %p127 = scmp.eq.s32.totalorder %s24, 0
      %p128 = por %p126, %p127
      %s130 = sadd.s32 %s129, 1
      %p133 = scmp.eq.s32.totalorder %s18, 1
      %p134 = scmp.ne.s32.totalorder %s129, %s131
      %p135 = scmp.eq.s32.totalorder %s18, 0
      %p136 = por %p134, %p135
      %p137 = scmp.ne.s32.totalorder %s129, %s131
      %p138 = scmp.eq.s32.totalorder %s23, 1
      %p139 = por %p137, %p138
      %p140 = scmp.ne.s32.totalorder %s131, %s132
      %p141 = scmp.eq.s32.totalorder %s23, 0
      %p142 = por %p140, %p141
      %p143 = scmp.ne.s32.totalorder %s131, %s132
      %p144 = scmp.eq.s32.totalorder %s24, 1
      %p145 = por %p143, %p144
      %p147 = scmp.ne.s32.totalorder %s132, %s146
      %p148 = scmp.eq.s32.totalorder %s24, 0
      %p149 = por %p147, %p148
      %s150 = sadd.s32 %s25, %s26
      %s151 = sadd.s32 %s37, %s33
      %s152 = ssub.s32 %s150, %s151
      %p153 = scmp.eq.s32.totalorder %s152, 0
      %s155 = sadd.s32 %s154, 1
      %s156 = scalar_select %p153, %s154, %s155
      %p159 = pneg %p153
      %p160 = scmp.eq.s32.totalorder %s18, 1
      %p161 = por %p159, %p160
      %p162 = scmp.ne.s32.totalorder %s154, %s157
      %p163 = scmp.eq.s32.totalorder %s18, 0
      %p164 = por %p162, %p163
      %p165 = scmp.ne.s32.totalorder %s154, %s157
      %p166 = scmp.eq.s32.totalorder %s23, 1
      %p167 = por %p165, %p166
      %p168 = scmp.ne.s32.totalorder %s157, %s158
      %p169 = scmp.eq.s32.totalorder %s23, 0
      %p170 = por %p168, %p169
      %p171 = scmp.ne.s32.totalorder %s157, %s158
      %p172 = scmp.eq.s32.totalorder %s24, 1
      %p173 = por %p171, %p172
      %p175 = scmp.ne.s32.totalorder %s158, %s174
      %p176 = scmp.eq.s32.totalorder %s24, 0
      %p177 = por %p175, %p176
      %p178 = scmp.le.s32.totalorder 1, %s18
      %p179 = scmp.lt.s32.totalorder %s18, 3
      %p180 = pnand %p178, %p179
      %p181 = pneg %p180
      // Predicated region
      $region9: #{tpu_custom_call.1} parent=5 // pred_check
        _
      $region10: #{tpu_custom_call.1} parent=5 // pred_check_branch
        %183 = sbr.rel (%p180) target = $region12
      $region11: #{tpu_custom_call.1} parent=5 // pred_region
        %s184 = ssub.s32 %s18, 1
        // Predicated region
        $region13: #{tpu_custom_call.1} parent=11 // pred_check
          %p185 = pneg %p79
        $region14: #{tpu_custom_call.1} parent=11 // pred_check_branch
          %187 = sbr.rel (%p185) target = $region16
        $region15: #{tpu_custom_call.1} parent=11 // pred_region
          %s189 = ssub.s32 9216, 9216
          %190 = vsyncadd [#allocation8], %s189
          %s191 = sshll.u32 [#allocation7], 4
          %s192 = int_to_ptr.vmem [resolvable:$true] %s191
          %197 = dma.hbm_to_vmem [thread:$0]  %s1, 9216, %s192, [#allocation8], 64, 64, 4
        $region16: #{tpu_custom_call.1} parent=11 // pred_fallthru
          _
        // Predicated region
        $region17: #{tpu_custom_call.1} parent=11 // pred_check
          %p198 = pneg %p100
        $region18: #{tpu_custom_call.1} parent=11 // pred_check_branch
          %200 = sbr.rel (%p198) target = $region20
        $region19: #{tpu_custom_call.1} parent=11 // pred_region
          _
        $region20: #{tpu_custom_call.1} parent=11 // pred_fallthru
          _
        // Predicated region
        $region21: #{tpu_custom_call.1} parent=11 // pred_check
          %p201 = pneg %p121
        $region22: #{tpu_custom_call.1} parent=11 // pred_check_branch
          %203 = sbr.rel (%p201) target = $region24
        $region23: #{tpu_custom_call.1} parent=11 // pred_region
          %s205 = ssub.s32 9216, 9216
          %206 = vsyncadd [#allocation8], %s205
          %s207 = sshll.u32 [#allocation9], 4
          %s208 = int_to_ptr.vmem [resolvable:$true] %s207
          %213 = dma.hbm_to_vmem [thread:$0]  %s3, 9216, %s208, [#allocation8], 64, 64, 4
        $region24: #{tpu_custom_call.1} parent=11 // pred_fallthru
          _
        // Predicated region
        $region25: #{tpu_custom_call.1} parent=11 // pred_check
          %p214 = pneg %p142
        $region26: #{tpu_custom_call.1} parent=11 // pred_check_branch
          %216 = sbr.rel (%p214) target = $region28
        $region27: #{tpu_custom_call.1} parent=11 // pred_region
          _
        $region28: #{tpu_custom_call.1} parent=11 // pred_fallthru
          _
      $region12: #{tpu_custom_call.1} parent=5 // pred_fallthru
        _
      %p217 = scmp.lt.s32.totalorder %s18, 2
      // Predicated region
      $region29: #{tpu_custom_call.1} parent=5 // pred_check
        %p218 = pneg %p217
      $region30: #{tpu_custom_call.1} parent=5 // pred_check_branch
        %220 = sbr.rel (%p218) target = $region32
      $region31: #{tpu_custom_call.1} parent=5 // pred_region
        // Predicated region
        $region33: #{tpu_custom_call.1} parent=31 // pred_check
          %p221 = pneg %p52
        $region34: #{tpu_custom_call.1} parent=31 // pred_check_branch
          %223 = sbr.rel (%p221) target = $region36
        $region35: #{tpu_custom_call.1} parent=31 // pred_region
          %s224 = sand.u32 %s42, 1
          %s225 = scalar_lea.sflag [#allocation5], %s224
          %s226 = sand.u32 %s42, 1
          %s227 = smul.addr %s226, 128
          %s228 = scalar_lea.vmem [#allocation4], %s227
          %s229 = sadd.s32 %s25, %s26
          %s231 = ssub.s32 2048, 2048
          %232 = vsyncadd %s225, %s231
          %s233 = smul.addr %s229, 32
          %s234 = smul.addr %s233, 64
          %s235 = scalar_lea.hbm %s0, %s234
          %s236 = sshll.u32 %s228, 4
          %s237 = int_to_ptr.vmem [resolvable:$true] %s236
          %242 = dma.hbm_to_vmem [thread:$0]  %s235, 2048, %s237, %s225, 64, 64, 4
        $region36: #{tpu_custom_call.1} parent=31 // pred_fallthru
          _
      $region32: #{tpu_custom_call.1} parent=5 // pred_fallthru
        _
      %p243 = scmp.le.s32.totalorder 1, %s18
      %p244 = scmp.lt.s32.totalorder %s18, 3
      %p245 = pnand %p243, %p244
      %p246 = pneg %p245
      // Predicated region
      $region37: #{tpu_custom_call.1} parent=5 // pred_check
        _
      $region38: #{tpu_custom_call.1} parent=5 // pred_check_branch
        %248 = sbr.rel (%p245) target = $region40
      $region39: #{tpu_custom_call.1} parent=5 // pred_region
        %s249 = ssub.s32 %s18, 1
        %s250 = sand.u32 %s45, 1
        %s251 = scalar_lea.sflag [#allocation5], %s250
        %s252 = sand.u32 %s45, 1
        %s253 = smul.addr %s252, 128
        %s254 = scalar_lea.vmem [#allocation4], %s253
        // Predicated region
        $region41: #{tpu_custom_call.1} parent=39 // pred_check
          %p255 = pneg %p58
        $region42: #{tpu_custom_call.1} parent=39 // pred_check_branch
          %257 = sbr.rel (%p255) target = $region44
        $region43: #{tpu_custom_call.1} parent=39 // pred_region
          %258 = dma.done %s251, 2048
        $region44: #{tpu_custom_call.1} parent=39 // pred_fallthru
          _
        // Predicated region
        $region45: #{tpu_custom_call.1} parent=39 // pred_check
          %p259 = pneg %p79
        $region46: #{tpu_custom_call.1} parent=39 // pred_check_branch
          %261 = sbr.rel (%p259) target = $region48
        $region47: #{tpu_custom_call.1} parent=39 // pred_region
          %262 = dma.done [#allocation8], 9216
        $region48: #{tpu_custom_call.1} parent=39 // pred_fallthru
          _
        // Predicated region
        $region49: #{tpu_custom_call.1} parent=39 // pred_check
          %p263 = pneg %p121
        $region50: #{tpu_custom_call.1} parent=39 // pred_check_branch
          %265 = sbr.rel (%p263) target = $region52
        $region51: #{tpu_custom_call.1} parent=39 // pred_region
          %266 = dma.done [#allocation8], 9216
        $region52: #{tpu_custom_call.1} parent=39 // pred_fallthru
          _
        %s267 = sand.u32 %s45, 1
        %s268 = scalar_lea.sflag [#allocation5], %s267
        %s269 = sand.u32 %s45, 1
        %s270 = smul.addr %s269, 128
        %s271 = scalar_lea.vmem [#allocation4], %s270
        %p272 = pneg %p58
        %p273 = pneg %p55
        %p274 = pneg %p79
        %p275 = pneg %p76
        %p276 = pneg %p100
        %p277 = pneg %p97
        %p278 = pneg %p121
        %p279 = pneg %p118
        %p280 = pneg %p142
        %p281 = pneg %p139
        %p282 = pneg %p170
        %p283 = pneg %p167
        %s284 = sand.u32 %s157, 1
        %s285 = scalar_lea.sflag [#allocation6], %s284
        %s286 = sand.u32 %s157, 1
        %s287 = smul.addr %s286, 32
        %s288 = scalar_lea.vmem [#allocation10], %s287
        %s289 = sadd.s32 %s27, %s28
        %s290 = sadd.s32 %s27, %s28
        %p292 = scmp.eq.s32.totalorder %s28, 0
        // Predicated region
        $region53: #{tpu_custom_call.1} parent=39 // pred_check
          %p293 = pneg %p292
        $region54: #{tpu_custom_call.1} parent=39 // pred_check_branch
          %295 = sbr.rel (%p293) target = $region56
        $region55: #{tpu_custom_call.1} parent=39 // pred_region
          %296 = vst [vmem:[#allocation2] sm:$0xf] 0
          %297 = vst [vmem:[#allocation2 + $0x4] sm:$0x1] 0
          %298 = vst [vmem:[#allocation2 + $0x8] sm:$0xf] 0
          %299 = vst [vmem:[#allocation2 + $0xc] sm:$0x1] 0
          %300 = vst [vmem:[#allocation2 + $0x10] sm:$0xf] 0
          %301 = vst [vmem:[#allocation2 + $0x14] sm:$0x1] 0
          %302 = vst [vmem:[#allocation2 + $0x18] sm:$0xf] 0
          %303 = vst [vmem:[#allocation2 + $0x1c] sm:$0x1] 0
          %304 = vst [vmem:[#allocation2 + $0x20] sm:$0xf] 0
          %305 = vst [vmem:[#allocation2 + $0x24] sm:$0x1] 0
          %306 = vst [vmem:[#allocation2 + $0x28] sm:$0xf] 0
          %307 = vst [vmem:[#allocation2 + $0x2c] sm:$0x1] 0
          %308 = vst [vmem:[#allocation2 + $0x30] sm:$0xf] 0
          %309 = vst [vmem:[#allocation2 + $0x34] sm:$0x1] 0
          %310 = vst [vmem:[#allocation2 + $0x38] sm:$0xf] 0
          %311 = vst [vmem:[#allocation2 + $0x3c] sm:$0x1] 0
          %312 = vst [vmem:[#allocation2 + $0x40] sm:$0xf] 0
          %313 = vst [vmem:[#allocation2 + $0x44] sm:$0x1] 0
          %314 = vst [vmem:[#allocation2 + $0x48] sm:$0xf] 0
          %315 = vst [vmem:[#allocation2 + $0x4c] sm:$0x1] 0
          %316 = vst [vmem:[#allocation3] sm:$0xf] 0
          %317 = vst [vmem:[#allocation3 + $0x4] sm:$0x1] 0
          %318 = vst [vmem:[#allocation3 + $0x8] sm:$0xf] 0
          %319 = vst [vmem:[#allocation3 + $0xc] sm:$0x1] 0
          %320 = vst [vmem:[#allocation3 + $0x10] sm:$0xf] 0
          %321 = vst [vmem:[#allocation3 + $0x14] sm:$0x1] 0
          %322 = vst [vmem:[#allocation3 + $0x18] sm:$0xf] 0
          %323 = vst [vmem:[#allocation3 + $0x1c] sm:$0x1] 0
          %324 = vst [vmem:[#allocation3 + $0x20] sm:$0xf] 0
          %325 = vst [vmem:[#allocation3 + $0x24] sm:$0x1] 0
          %326 = vst [vmem:[#allocation3 + $0x28] sm:$0xf] 0
          %327 = vst [vmem:[#allocation3 + $0x2c] sm:$0x1] 0
          %328 = vst [vmem:[#allocation3 + $0x30] sm:$0xf] 0
          %329 = vst [vmem:[#allocation3 + $0x34] sm:$0x1] 0
          %330 = vst [vmem:[#allocation3 + $0x38] sm:$0xf] 0
          %331 = vst [vmem:[#allocation3 + $0x3c] sm:$0x1] 0
          %332 = vst [vmem:[#allocation3 + $0x40] sm:$0xf] 0
          %333 = vst [vmem:[#allocation3 + $0x44] sm:$0x1] 0
          %334 = vst [vmem:[#allocation3 + $0x48] sm:$0xf] 0
          %335 = vst [vmem:[#allocation3 + $0x4c] sm:$0x1] 0
        $region56: #{tpu_custom_call.1} parent=39 // pred_fallthru
          _
        %v336 = vld [vmem:[%s254] sm:$0xf]
        %v337 = vld [vmem:[%s254 + $0x4] sm:$0xf]
        %v338 = vld [vmem:[%s254 + $0x8] sm:$0xf]
        %v339 = vld [vmem:[%s254 + $0xc] sm:$0xf]
        %v340 = vld [vmem:[%s254 + $0x10] sm:$0xf]
        %v341 = vld [vmem:[%s254 + $0x14] sm:$0xf]
        %v342 = vld [vmem:[%s254 + $0x18] sm:$0xf]
        %v343 = vld [vmem:[%s254 + $0x1c] sm:$0xf]
        %s344 = scalar_lea.vmem %s254, 32 [#allocation4]
        %v345 = vld [vmem:[%s344] sm:$0xf]
        %v346 = vld [vmem:[%s344 + $0x4] sm:$0xf]
        %v347 = vld [vmem:[%s344 + $0x8] sm:$0xf]
        %v348 = vld [vmem:[%s344 + $0xc] sm:$0xf]
        %v349 = vld [vmem:[%s344 + $0x10] sm:$0xf]
        %v350 = vld [vmem:[%s344 + $0x14] sm:$0xf]
        %v351 = vld [vmem:[%s344 + $0x18] sm:$0xf]
        %v352 = vld [vmem:[%s344 + $0x1c] sm:$0xf]
        %v353 = vmax.bf16 %v336, %v345
        %v354 = vmax.bf16 %v337, %v346
        %v355 = vmax.bf16 %v338, %v347
        %v356 = vmax.bf16 %v339, %v348
        %v357 = vmax.bf16 %v340, %v349
        %v358 = vmax.bf16 %v341, %v350
        %v359 = vmax.bf16 %v342, %v351
        %v360 = vmax.bf16 %v343, %v352
        %s361 = scalar_lea.vmem %s254, 64 [#allocation4]
        %v362 = vld [vmem:[%s361] sm:$0xf]
        %v363 = vld [vmem:[%s361 + $0x4] sm:$0xf]
        %v364 = vld [vmem:[%s361 + $0x8] sm:$0xf]
        %v365 = vld [vmem:[%s361 + $0xc] sm:$0xf]
        %v366 = vld [vmem:[%s361 + $0x10] sm:$0xf]
        %v367 = vld [vmem:[%s361 + $0x14] sm:$0xf]
        %v368 = vld [vmem:[%s361 + $0x18] sm:$0xf]
        %v369 = vld [vmem:[%s361 + $0x1c] sm:$0xf]
        %s370 = scalar_lea.vmem %s254, 96 [#allocation4]
        %v371 = vld [vmem:[%s370] sm:$0xf]
        %v372 = vld [vmem:[%s370 + $0x4] sm:$0xf]
        %v373 = vld [vmem:[%s370 + $0x8] sm:$0xf]
        %v374 = vld [vmem:[%s370 + $0xc] sm:$0xf]
        %v375 = vld [vmem:[%s370 + $0x10] sm:$0xf]
        %v376 = vld [vmem:[%s370 + $0x14] sm:$0xf]
        %v377 = vld [vmem:[%s370 + $0x18] sm:$0xf]
        %v378 = vld [vmem:[%s370 + $0x1c] sm:$0xf]
        %v379 = vmax.bf16 %v362, %v371
        %v380 = vmax.bf16 %v363, %v372
        %v381 = vmax.bf16 %v364, %v373
        %v382 = vmax.bf16 %v365, %v374
        %v383 = vmax.bf16 %v366, %v375
        %v384 = vmax.bf16 %v367, %v376
        %v385 = vmax.bf16 %v368, %v377
        %v386 = vmax.bf16 %v369, %v378
        %v387 = vmax.bf16 %v353, %v379
        %v388 = vmax.bf16 %v354, %v380
        %v389 = vmax.bf16 %v355, %v381
        %v390 = vmax.bf16 %v356, %v382
        %v391 = vmax.bf16 %v357, %v383
        %v392 = vmax.bf16 %v358, %v384
        %v393 = vmax.bf16 %v359, %v385
        %v394 = vmax.bf16 %v360, %v386
        %v396 = vshrl.u32 %v387, 16
        %v398 = vrot.slane %v396, 7
        %v399 = vshll.u32 %v387, 16
        %v401 = vor.u32 %v398, %v399
        %v402 = vrot.slane %v398, 4
        %v404 = vshrl.u32 %v388, 16
        %v406 = vrot.slane %v404, 7
        %v407 = vshll.u32 %v388, 16
        %v409 = vor.u32 %v406, %v407
        %v410 = vrot.slane %v406, 4
        %v412 = vshrl.u32 %v389, 16
        %v414 = vrot.slane %v412, 7
        %v415 = vshll.u32 %v389, 16
        %v417 = vor.u32 %v414, %v415
        %v418 = vrot.slane %v414, 4
        %v420 = vshrl.u32 %v390, 16
        %v422 = vrot.slane %v420, 7
        %v423 = vshll.u32 %v390, 16
        %v425 = vor.u32 %v422, %v423
        %v426 = vrot.slane %v422, 4
        %v428 = vshrl.u32 %v391, 16
        %v430 = vrot.slane %v428, 7
        %v431 = vshll.u32 %v391, 16
        %v433 = vor.u32 %v430, %v431
        %v434 = vrot.slane %v430, 4
        %v436 = vshrl.u32 %v392, 16
        %v438 = vrot.slane %v436, 7
        %v439 = vshll.u32 %v392, 16
        %v441 = vor.u32 %v438, %v439
        %v442 = vrot.slane %v438, 4
        %v444 = vshrl.u32 %v393, 16
        %v446 = vrot.slane %v444, 7
        %v447 = vshll.u32 %v393, 16
        %v449 = vor.u32 %v446, %v447
        %v450 = vrot.slane %v446, 4
        %v452 = vshrl.u32 %v394, 16
        %v454 = vrot.slane %v452, 7
        %v455 = vshll.u32 %v394, 16
        %v457 = vor.u32 %v454, %v455
        %v458 = vrot.slane %v454, 4
        %s475 = scalar_lea.vmem [#allocation2], 8
        %vm476 = vcmask 1043456
        %vm477 = vsmask.f32 7938
        %vm478 = vmand %vm476, %vm477
        %v479 = vld [vmem:[%s475] sm:$0xf]
        %v480 = vsel %vm478, %v401, %v479
        %481 = vst [vmem:[%s475] sm:$0xf] %v480
        %vm482 = vcmask 1040384
        %vm483 = vsmask.f32 256
        %vm484 = vmand %vm482, %vm483
        %v485 = vld [vmem:[%s475 + $0x4] sm:$0x1]
        %v486 = vsel %vm484, %v402, %v485
        %487 = vst [vmem:[%s475 + $0x4] sm:$0x1] %v486
        %v488 = vld [vmem:[%s475 + $0x8] sm:$0xf]
        %v489 = vsel %vm478, %v409, %v488
        %490 = vst [vmem:[%s475 + $0x8] sm:$0xf] %v489
        %v491 = vld [vmem:[%s475 + $0xc] sm:$0x1]
        %v492 = vsel %vm484, %v410, %v491
        %493 = vst [vmem:[%s475 + $0xc] sm:$0x1] %v492
        %v494 = vld [vmem:[%s475 + $0x10] sm:$0xf]
        %v495 = vsel %vm478, %v417, %v494
        %496 = vst [vmem:[%s475 + $0x10] sm:$0xf] %v495
        %v497 = vld [vmem:[%s475 + $0x14] sm:$0x1]
        %v498 = vsel %vm484, %v418, %v497
        %499 = vst [vmem:[%s475 + $0x14] sm:$0x1] %v498
        %v500 = vld [vmem:[%s475 + $0x18] sm:$0xf]
        %v501 = vsel %vm478, %v425, %v500
        %502 = vst [vmem:[%s475 + $0x18] sm:$0xf] %v501
        %v503 = vld [vmem:[%s475 + $0x1c] sm:$0x1]
        %v504 = vsel %vm484, %v426, %v503
        %505 = vst [vmem:[%s475 + $0x1c] sm:$0x1] %v504
        %v506 = vld [vmem:[%s475 + $0x20] sm:$0xf]
        %v507 = vsel %vm478, %v433, %v506
        %508 = vst [vmem:[%s475 + $0x20] sm:$0xf] %v507
        %v509 = vld [vmem:[%s475 + $0x24] sm:$0x1]
        %v510 = vsel %vm484, %v434, %v509
        %511 = vst [vmem:[%s475 + $0x24] sm:$0x1] %v510
        %v512 = vld [vmem:[%s475 + $0x28] sm:$0xf]
        %v513 = vsel %vm478, %v441, %v512
        %514 = vst [vmem:[%s475 + $0x28] sm:$0xf] %v513
        %v515 = vld [vmem:[%s475 + $0x2c] sm:$0x1]
        %v516 = vsel %vm484, %v442, %v515
        %517 = vst [vmem:[%s475 + $0x2c] sm:$0x1] %v516
        %v518 = vld [vmem:[%s475 + $0x30] sm:$0xf]
        %v519 = vsel %vm478, %v449, %v518
        %520 = vst [vmem:[%s475 + $0x30] sm:$0xf] %v519
        %v521 = vld [vmem:[%s475 + $0x34] sm:$0x1]
        %v522 = vsel %vm484, %v450, %v521
        %523 = vst [vmem:[%s475 + $0x34] sm:$0x1] %v522
        %v524 = vld [vmem:[%s475 + $0x38] sm:$0xf]
        %v525 = vsel %vm478, %v457, %v524
        %526 = vst [vmem:[%s475 + $0x38] sm:$0xf] %v525
        %v527 = vld [vmem:[%s475 + $0x3c] sm:$0x1]
        %v528 = vsel %vm484, %v458, %v527
        %529 = vst [vmem:[%s475 + $0x3c] sm:$0x1] %v528
        %v530 = vld [vmem:[#allocation2] sm:$0xf]
        %v531 = vld [vmem:[#allocation2 + $0x8] sm:$0xf]
        %v532 = vld [vmem:[#allocation2 + $0x10] sm:$0xf]
        %v533 = vld [vmem:[#allocation2 + $0x18] sm:$0xf]
        %v534 = vld [vmem:[#allocation2 + $0x20] sm:$0xf]
        %v535 = vld [vmem:[#allocation2 + $0x28] sm:$0xf]
        %v536 = vld [vmem:[#allocation2 + $0x30] sm:$0xf]
        %v537 = vld [vmem:[#allocation2 + $0x38] sm:$0xf]
        %v538 = vld [vmem:[#allocation7] sm:$0xf]
        %v539 = vld [vmem:[#allocation7 + $0x4] sm:$0xf]
        %v540 = vld [vmem:[#allocation7 + $0x8] sm:$0xf]
        %v541 = vld [vmem:[#allocation7 + $0xc] sm:$0xf]
        %v542 = vld [vmem:[#allocation7 + $0x10] sm:$0xf]
        %v543 = vld [vmem:[#allocation7 + $0x14] sm:$0xf]
        %v544 = vld [vmem:[#allocation7 + $0x18] sm:$0xf]
        %v545 = vld [vmem:[#allocation7 + $0x1c] sm:$0xf]
        %v546 = vld [vmem:[#allocation7 + $0x20] sm:$0xf]
        %v547 = vld [vmem:[#allocation7 + $0x24] sm:$0xf]
        %v548 = vld [vmem:[#allocation7 + $0x28] sm:$0xf]
        %v549 = vld [vmem:[#allocation7 + $0x2c] sm:$0xf]
        %v550 = vld [vmem:[#allocation7 + $0x30] sm:$0xf]
        %v551 = vld [vmem:[#allocation7 + $0x34] sm:$0xf]
        %v552 = vld [vmem:[#allocation7 + $0x38] sm:$0xf]
        %v553 = vld [vmem:[#allocation7 + $0x3c] sm:$0xf]
        %v554 = vld [vmem:[#allocation2 + $0x4] sm:$0x1]
        %v555 = vld [vmem:[#allocation2 + $0xc] sm:$0x1]
        %v556 = vld [vmem:[#allocation2 + $0x14] sm:$0x1]
        %v557 = vld [vmem:[#allocation2 + $0x1c] sm:$0x1]
        %v558 = vld [vmem:[#allocation2 + $0x24] sm:$0x1]
        %v559 = vld [vmem:[#allocation2 + $0x2c] sm:$0x1]
        %v560 = vld [vmem:[#allocation2 + $0x34] sm:$0x1]
        %v561 = vld [vmem:[#allocation2 + $0x3c] sm:$0x1]
        %vm562 = vsmask.f32 3328
        %vm563 = vsmask.f32 7440
        %vm564 = vmor %vm562, %vm563
        %v566 = vshrl.u32 %v530, 16
        %v568 = vrot.slane %v566, 4
        %v569 = vshll.u32 %v530, 16
        %v571 = vrot.slane %v569, 5
        %v572 = vor.u32 %v568, %v571
        %v573 = vrot.slane %v572, 4
        %v575 = vshll.u32 %v554, 16
        %v577 = vrot.slane %v575, 5
        %v578 = vsel %vm564, %v573, %v577
        %v580 = vshrl.u32 %v531, 16
        %v582 = vrot.slane %v580, 4
        %v583 = vshll.u32 %v531, 16
        %v585 = vrot.slane %v583, 5
        %v586 = vor.u32 %v582, %v585
        %v587 = vrot.slane %v586, 4
        %v589 = vshll.u32 %v555, 16
        %v591 = vrot.slane %v589, 5
        %v592 = vsel %vm564, %v587, %v591
        %v594 = vshrl.u32 %v532, 16
        %v596 = vrot.slane %v594, 4
        %v597 = vshll.u32 %v532, 16
        %v599 = vrot.slane %v597, 5
        %v600 = vor.u32 %v596, %v599
        %v601 = vrot.slane %v600, 4
        %v603 = vshll.u32 %v556, 16
        %v605 = vrot.slane %v603, 5
        %v606 = vsel %vm564, %v601, %v605
        %v608 = vshrl.u32 %v533, 16
        %v610 = vrot.slane %v608, 4
        %v611 = vshll.u32 %v533, 16
        %v613 = vrot.slane %v611, 5
        %v614 = vor.u32 %v610, %v613
        %v615 = vrot.slane %v614, 4
        %v617 = vshll.u32 %v557, 16
        %v619 = vrot.slane %v617, 5
        %v620 = vsel %vm564, %v615, %v619
        %v622 = vshrl.u32 %v534, 16
        %v624 = vrot.slane %v622, 4
        %v625 = vshll.u32 %v534, 16
        %v627 = vrot.slane %v625, 5
        %v628 = vor.u32 %v624, %v627
        %v629 = vrot.slane %v628, 4
        %v631 = vshll.u32 %v558, 16
        %v633 = vrot.slane %v631, 5
        %v634 = vsel %vm564, %v629, %v633
        %v636 = vshrl.u32 %v535, 16
        %v638 = vrot.slane %v636, 4
        %v639 = vshll.u32 %v535, 16
        %v641 = vrot.slane %v639, 5
        %v642 = vor.u32 %v638, %v641
        %v643 = vrot.slane %v642, 4
        %v645 = vshll.u32 %v559, 16
        %v647 = vrot.slane %v645, 5
        %v648 = vsel %vm564, %v643, %v647
        %v650 = vshrl.u32 %v536, 16
        %v652 = vrot.slane %v650, 4
        %v653 = vshll.u32 %v536, 16
        %v655 = vrot.slane %v653, 5
        %v656 = vor.u32 %v652, %v655
        %v657 = vrot.slane %v656, 4
        %v659 = vshll.u32 %v560, 16
        %v661 = vrot.slane %v659, 5
        %v662 = vsel %vm564, %v657, %v661
        %v664 = vshrl.u32 %v537, 16
        %v666 = vrot.slane %v664, 4
        %v667 = vshll.u32 %v537, 16
        %v669 = vrot.slane %v667, 5
        %v670 = vor.u32 %v666, %v669
        %v671 = vrot.slane %v670, 4
        %v673 = vshll.u32 %v561, 16
        %v675 = vrot.slane %v673, 5
        %v676 = vsel %vm564, %v671, %v675
        %v677 = vld [vmem:[#allocation7 + $0x40] sm:$0xf]
        %v678 = vld [vmem:[#allocation7 + $0x44] sm:$0xf]
        %v679 = vld [vmem:[#allocation7 + $0x48] sm:$0xf]
        %v680 = vld [vmem:[#allocation7 + $0x4c] sm:$0xf]
        %v681 = vld [vmem:[#allocation7 + $0x50] sm:$0xf]
        %v682 = vld [vmem:[#allocation7 + $0x54] sm:$0xf]
        %v683 = vld [vmem:[#allocation7 + $0x58] sm:$0xf]
        %v684 = vld [vmem:[#allocation7 + $0x5c] sm:$0xf]
        %v685 = vld [vmem:[#allocation7 + $0x60] sm:$0xf]
        %v686 = vld [vmem:[#allocation7 + $0x64] sm:$0xf]
        %v687 = vld [vmem:[#allocation7 + $0x68] sm:$0xf]
        %v688 = vld [vmem:[#allocation7 + $0x6c] sm:$0xf]
        %v689 = vld [vmem:[#allocation7 + $0x70] sm:$0xf]
        %v690 = vld [vmem:[#allocation7 + $0x74] sm:$0xf]
        %v691 = vld [vmem:[#allocation7 + $0x78] sm:$0xf]
        %v692 = vld [vmem:[#allocation7 + $0x7c] sm:$0xf]
        %v693 = vunpack.c.l.b16 %v578
        %v694 = vunpack.c.l.b16 %v592
        %v695 = vunpack.c.l.b16 %v606
        %v696 = vunpack.c.l.b16 %v620
        %v697 = vunpack.c.l.b16 %v634
        %v698 = vunpack.c.l.b16 %v648
        %v699 = vunpack.c.l.b16 %v662
        %v700 = vunpack.c.l.b16 %v676
        %v701 = vpack.c.b16 %v694, %v693
        %v702 = vpack.c.b16 %v696, %v695
        %v703 = vpack.c.b16 %v698, %v697
        %v704 = vpack.c.b16 %v700, %v699
        %v725 = vunpack.c.l.b16 %v677
        %v726 = vunpack.c.l.b16 %v678
        %v727 = vunpack.c.l.b16 %v679
        %v728 = vunpack.c.l.b16 %v680
        %v729 = vunpack.c.l.b16 %v681
        %v730 = vunpack.c.l.b16 %v682
        %v731 = vunpack.c.l.b16 %v683
        %v732 = vunpack.c.l.b16 %v684
        %v733 = vunpack.c.l.b16 %v685
        %v734 = vunpack.c.l.b16 %v686
        %v735 = vunpack.c.l.b16 %v687
        %v736 = vunpack.c.l.b16 %v688
        %v737 = vunpack.c.l.b16 %v689
        %v738 = vunpack.c.l.b16 %v690
        %v739 = vunpack.c.l.b16 %v691
        %v740 = vunpack.c.l.b16 %v692
        %v741 = vpack.c.b16 %v726, %v725
        %v742 = vpack.c.b16 %v728, %v727
        %v743 = vpack.c.b16 %v730, %v729
        %v744 = vpack.c.b16 %v732, %v731
        %v745 = vpack.c.b16 %v734, %v733
        %v746 = vpack.c.b16 %v736, %v735
        %v747 = vpack.c.b16 %v738, %v737
        %v748 = vpack.c.b16 %v740, %v739
        %757 = vmatprep.subr.bf16.mxu0 0
        %758 = vmatpush1.bf16.msra.mxu0 %v741
        %759 = vmatprep.subr.bf16.mxu0 0
        %760 = vmatpush1.bf16.msra.mxu0 %v742
        %761 = vmatprep.subr.bf16.mxu0 0
        %762 = vmatpush1.bf16.msra.mxu0 %v743
        %763 = vmatprep.subr.bf16.mxu0 0
        %764 = vmatpush1.bf16.msra.mxu0 %v744
        %765 = vmatprep.subr.bf16.mxu0 0
        %766 = vmatpush1.bf16.msra.mxu0 %v745
        %767 = vmatprep.subr.bf16.mxu0 0
        %768 = vmatpush1.bf16.msra.mxu0 %v746
        %769 = vmatprep.subr.bf16.mxu0 0
        %770 = vmatpush1.bf16.msra.mxu0 %v747
        %771 = vmatprep.subr.bf16.mxu0 0
        %772 = vmatpush1.bf16.msra.mxu0 %v748
        %773 = vmatprep.subr.bf16.mxu0 0
        %774 = vmatpush1.bf16.msra.mxu0 0
        %775 = vmatprep.subr.bf16.mxu0 0
        %776 = vmatpush1.bf16.msra.mxu0 0
        %777 = vmatprep.subr.bf16.mxu0 0
        %778 = vmatpush1.bf16.msra.mxu0 0
        %779 = vmatprep.subr.bf16.mxu0 0
        %780 = vmatpush1.bf16.msra.mxu0 0
        %781 = vmatprep.subr.bf16.mxu0 0
        %782 = vmatpush1.bf16.msra.mxu0 0
        %783 = vmatprep.subr.bf16.mxu0 0
        %784 = vmatpush1.bf16.msra.mxu0 0
        %785 = vmatprep.subr.bf16.mxu0 0
        %786 = vmatpush1.bf16.msra.mxu0 0
        %787 = vmatprep.subr.bf16.mxu0 0
        %788 = vmatpush1.bf16.msra.mxu0 0
        %789 = vmatprep.mubr.bf16.mxu0 0
        %790 = vmatmul.mubr.bf16.gmra.mrb[0].mxu0 %v701
        %v791 = vpop.f32.mrb[0].mxu0
        %v792 = vadd.f32 0.0, %v791
        %v793 = vpop.f32.mrb[0].mxu0
        %v794 = vpop.f32.mrb[0].mxu0
        %v795 = vadd.f32 0.0, %v794
        %v796 = vpop.f32.mrb[0].mxu0
        %797 = vmatprep.mubr.bf16.mxu0 0
        %798 = vmatmul.mubr.bf16.gmra.mrb[0].mxu0 %v702
        %v799 = vpop.f32.mrb[0].mxu0
        %v800 = vadd.f32 0.0, %v799
        %v801 = vpop.f32.mrb[0].mxu0
        %v802 = vpop.f32.mrb[0].mxu0
        %v803 = vadd.f32 0.0, %v802
        %v804 = vpop.f32.mrb[0].mxu0
        %805 = vmatprep.mubr.bf16.mxu0 0
        %806 = vmatmul.mubr.bf16.gmra.mrb[0].mxu0 %v703
        %v807 = vpop.f32.mrb[0].mxu0
        %v808 = vadd.f32 0.0, %v807
        %v809 = vpop.f32.mrb[0].mxu0
        %v810 = vpop.f32.mrb[0].mxu0
        %v811 = vadd.f32 0.0, %v810
        %v812 = vpop.f32.mrb[0].mxu0
        %813 = vmatprep.mubr.bf16.mxu0 0
        %814 = vmatmul.mubr.bf16.gmra.mrb[0].mxu0 %v704
        %v815 = vpop.f32.mrb[0].mxu0
        %v816 = vadd.f32 0.0, %v815
        %v817 = vpop.f32.mrb[0].mxu0
        %v818 = vpop.f32.mrb[0].mxu0
        %v819 = vadd.f32 0.0, %v818
        %v820 = vpop.f32.mrb[0].mxu0
        %821 = vdwg.mxu0
        %v830 = vunpack.c.l.b16 %v530
        %v831 = vunpack.c.l.b16 %v531
        %v832 = vunpack.c.l.b16 %v532
        %v833 = vunpack.c.l.b16 %v533
        %v834 = vunpack.c.l.b16 %v534
        %v835 = vunpack.c.l.b16 %v535
        %v836 = vunpack.c.l.b16 %v536
        %v837 = vunpack.c.l.b16 %v537
        %v838 = vpack.c.b16 %v831, %v830
        %v839 = vpack.c.b16 %v833, %v832
        %v840 = vpack.c.b16 %v835, %v834
        %v841 = vpack.c.b16 %v837, %v836
        %v862 = vunpack.c.l.b16 %v538
        %v863 = vunpack.c.l.b16 %v539
        %v864 = vunpack.c.l.b16 %v540
        %v865 = vunpack.c.l.b16 %v541
        %v866 = vunpack.c.l.b16 %v542
        %v867 = vunpack.c.l.b16 %v543
        %v868 = vunpack.c.l.b16 %v544
        %v869 = vunpack.c.l.b16 %v545
        %v870 = vunpack.c.l.b16 %v546
        %v871 = vunpack.c.l.b16 %v547
        %v872 = vunpack.c.l.b16 %v548
        %v873 = vunpack.c.l.b16 %v549
        %v874 = vunpack.c.l.b16 %v550
        %v875 = vunpack.c.l.b16 %v551
        %v876 = vunpack.c.l.b16 %v552
        %v877 = vunpack.c.l.b16 %v553
        %v878 = vpack.c.b16 %v863, %v862
        %v879 = vpack.c.b16 %v865, %v864
        %v880 = vpack.c.b16 %v867, %v866
        %v881 = vpack.c.b16 %v869, %v868
        %v882 = vpack.c.b16 %v871, %v870
        %v883 = vpack.c.b16 %v873, %v872
        %v884 = vpack.c.b16 %v875, %v874
        %v885 = vpack.c.b16 %v877, %v876
        %894 = vmatprep.subr.bf16.mxu0 0
        %895 = vmatpush1.bf16.msra.mxu0 %v878
        %896 = vmatprep.subr.bf16.mxu0 0
        %897 = vmatpush1.bf16.msra.mxu0 %v879
        %898 = vmatprep.subr.bf16.mxu0 0
        %899 = vmatpush1.bf16.msra.mxu0 %v880
        %900 = vmatprep.subr.bf16.mxu0 0
        %901 = vmatpush1.bf16.msra.mxu0 %v881
        %902 = vmatprep.subr.bf16.mxu0 0
        %903 = vmatpush1.bf16.msra.mxu0 %v882
        %904 = vmatprep.subr.bf16.mxu0 0
        %905 = vmatpush1.bf16.msra.mxu0 %v883
        %906 = vmatprep.subr.bf16.mxu0 0
        %907 = vmatpush1.bf16.msra.mxu0 %v884
        %908 = vmatprep.subr.bf16.mxu0 0
        %909 = vmatpush1.bf16.msra.mxu0 %v885
        %910 = vmatprep.subr.bf16.mxu0 0
        %911 = vmatpush1.bf16.msra.mxu0 0
        %912 = vmatprep.subr.bf16.mxu0 0
        %913 = vmatpush1.bf16.msra.mxu0 0
        %914 = vmatprep.subr.bf16.mxu0 0
        %915 = vmatpush1.bf16.msra.mxu0 0
        %916 = vmatprep.subr.bf16.mxu0 0
        %917 = vmatpush1.bf16.msra.mxu0 0
        %918 = vmatprep.subr.bf16.mxu0 0
        %919 = vmatpush1.bf16.msra.mxu0 0
        %920 = vmatprep.subr.bf16.mxu0 0
        %921 = vmatpush1.bf16.msra.mxu0 0
        %922 = vmatprep.subr.bf16.mxu0 0
        %923 = vmatpush1.bf16.msra.mxu0 0
        %924 = vmatprep.subr.bf16.mxu0 0
        %925 = vmatpush1.bf16.msra.mxu0 0
        %926 = vmatprep.mubr.bf16.mxu0 0
        %927 = vmatmul.mubr.bf16.gmra.mrb[0].mxu0 %v838
        %v928 = vpop.f32.mrb[0].mxu0
        %v929 = vadd.f32 %v792, %v928
        %v930 = vpop.f32.mrb[0].mxu0
        %v931 = vpop.f32.mrb[0].mxu0
        %v932 = vadd.f32 %v795, %v931
        %v933 = vpop.f32.mrb[0].mxu0
        %934 = vmatprep.mubr.bf16.mxu0 0
        %935 = vmatmul.mubr.bf16.gmra.mrb[0].mxu0 %v839
        %v936 = vpop.f32.mrb[0].mxu0
        %v937 = vadd.f32 %v800, %v936
        %v938 = vpop.f32.mrb[0].mxu0
        %v939 = vpop.f32.mrb[0].mxu0
        %v940 = vadd.f32 %v803, %v939
        %v941 = vpop.f32.mrb[0].mxu0
        %942 = vmatprep.mubr.bf16.mxu0 0
        %943 = vmatmul.mubr.bf16.gmra.mrb[0].mxu0 %v840
        %v944 = vpop.f32.mrb[0].mxu0
        %v945 = vadd.f32 %v808, %v944
        %v946 = vpop.f32.mrb[0].mxu0
        %v947 = vpop.f32.mrb[0].mxu0
        %v948 = vadd.f32 %v811, %v947
        %v949 = vpop.f32.mrb[0].mxu0
        %950 = vmatprep.mubr.bf16.mxu0 0
        %951 = vmatmul.mubr.bf16.gmra.mrb[0].mxu0 %v841
        %v952 = vpop.f32.mrb[0].mxu0
        %v953 = vadd.f32 %v816, %v952
        %v954 = vpop.f32.mrb[0].mxu0
        %v955 = vpop.f32.mrb[0].mxu0
        %v956 = vadd.f32 %v819, %v955
        %v957 = vpop.f32.mrb[0].mxu0
        %958 = vdwg.mxu0
        %v959 = vld [vmem:[#allocation2] sm:$0xe]
        %v960 = vld [vmem:[#allocation2 + $0x8] sm:$0xe]
        %v961 = vld [vmem:[#allocation2 + $0x10] sm:$0xe]
        %v962 = vld [vmem:[#allocation2 + $0x18] sm:$0xe]
        %v963 = vld [vmem:[#allocation2 + $0x20] sm:$0xe]
        %v964 = vld [vmem:[#allocation2 + $0x28] sm:$0xe]
        %v965 = vld [vmem:[#allocation2 + $0x30] sm:$0xe]
        %v966 = vld [vmem:[#allocation2 + $0x38] sm:$0xe]
        %vm983 = vcmask 1042432
        %vm984 = vcmask 1046532
        %vm985 = vmor %vm983, %vm984
        %v986 = vrot.slane %v959, 5
        %v987 = vrot.slane %v986, 4
        %v988 = vrot.slane %v554, 5
        %v989 = vsel %vm985, %v987, %v988
        %v990 = vrot.slane %v960, 5
        %v991 = vrot.slane %v990, 4
        %v992 = vrot.slane %v555, 5
        %v993 = vsel %vm985, %v991, %v992
        %v994 = vrot.slane %v961, 5
        %v995 = vrot.slane %v994, 4
        %v996 = vrot.slane %v556, 5
        %v997 = vsel %vm985, %v995, %v996
        %v998 = vrot.slane %v962, 5
        %v999 = vrot.slane %v998, 4
        %v1000 = vrot.slane %v557, 5
        %v1001 = vsel %vm985, %v999, %v1000
        %v1002 = vrot.slane %v963, 5
        %v1003 = vrot.slane %v1002, 4
        %v1004 = vrot.slane %v558, 5
        %v1005 = vsel %vm985, %v1003, %v1004
        %v1006 = vrot.slane %v964, 5
        %v1007 = vrot.slane %v1006, 4
        %v1008 = vrot.slane %v559, 5
        %v1009 = vsel %vm985, %v1007, %v1008
        %v1010 = vrot.slane %v965, 5
        %v1011 = vrot.slane %v1010, 4
        %v1012 = vrot.slane %v560, 5
        %v1013 = vsel %vm985, %v1011, %v1012
        %v1014 = vrot.slane %v966, 5
        %v1015 = vrot.slane %v1014, 4
        %v1016 = vrot.slane %v561, 5
        %v1017 = vsel %vm985, %v1015, %v1016
        %v1018 = vld [vmem:[#allocation7 + $0x80] sm:$0xf]
        %v1019 = vld [vmem:[#allocation7 + $0x84] sm:$0xf]
        %v1020 = vld [vmem:[#allocation7 + $0x88] sm:$0xf]
        %v1021 = vld [vmem:[#allocation7 + $0x8c] sm:$0xf]
        %v1022 = vld [vmem:[#allocation7 + $0x90] sm:$0xf]
        %v1023 = vld [vmem:[#allocation7 + $0x94] sm:$0xf]
        %v1024 = vld [vmem:[#allocation7 + $0x98] sm:$0xf]
        %v1025 = vld [vmem:[#allocation7 + $0x9c] sm:$0xf]
        %v1026 = vld [vmem:[#allocation7 + $0xa0] sm:$0xf]
        %v1027 = vld [vmem:[#allocation7 + $0xa4] sm:$0xf]
        %v1028 = vld [vmem:[#allocation7 + $0xa8] sm:$0xf]
        %v1029 = vld [vmem:[#allocation7 + $0xac] sm:$0xf]
        %v1030 = vld [vmem:[#allocation7 + $0xb0] sm:$0xf]
        %v1031 = vld [vmem:[#allocation7 + $0xb4] sm:$0xf]
        %v1032 = vld [vmem:[#allocation7 + $0xb8] sm:$0xf]
        %v1033 = vld [vmem:[#allocation7 + $0xbc] sm:$0xf]
        %v1034 = vunpack.c.l.b16 %v989
        %v1035 = vunpack.c.l.b16 %v993
        %v1036 = vunpack.c.l.b16 %v997
        %v1037 = vunpack.c.l.b16 %v1001
        %v1038 = vunpack.c.l.b16 %v1005
        %v1039 = vunpack.c.l.b16 %v1009
        %v1040 = vunpack.c.l.b16 %v1013
        %v1041 = vunpack.c.l.b16 %v1017
        %v1042 = vpack.c.b16 %v1035, %v1034
        %v1043 = vpack.c.b16 %v1037, %v1036
        %v1044 = vpack.c.b16 %v1039, %v1038
        %v1045 = vpack.c.b16 %v1041, %v1040
        %v1066 = vunpack.c.l.b16 %v1018
        %v1067 = vunpack.c.l.b16 %v1019
        %v1068 = vunpack.c.l.b16 %v1020
        %v1069 = vunpack.c.l.b16 %v1021
        %v1070 = vunpack.c.l.b16 %v1022
        %v1071 = vunpack.c.l.b16 %v1023
        %v1072 = vunpack.c.l.b16 %v1024
        %v1073 = vunpack.c.l.b16 %v1025
        %v1074 = vunpack.c.l.b16 %v1026
        %v1075 = vunpack.c.l.b16 %v1027
        %v1076 = vunpack.c.l.b16 %v1028
        %v1077 = vunpack.c.l.b16 %v1029
        %v1078 = vunpack.c.l.b16 %v1030
        %v1079 = vunpack.c.l.b16 %v1031
        %v1080 = vunpack.c.l.b16 %v1032
        %v1081 = vunpack.c.l.b16 %v1033
        %v1082 = vpack.c.b16 %v1067, %v1066
        %v1083 = vpack.c.b16 %v1069, %v1068
        %v1084 = vpack.c.b16 %v1071, %v1070
        %v1085 = vpack.c.b16 %v1073, %v1072
        %v1086 = vpack.c.b16 %v1075, %v1074
        %v1087 = vpack.c.b16 %v1077, %v1076
        %v1088 = vpack.c.b16 %v1079, %v1078
        %v1089 = vpack.c.b16 %v1081, %v1080
        %1098 = vmatprep.subr.bf16.mxu0 0
        %1099 = vmatpush1.bf16.msra.mxu0 %v1082
        %1100 = vmatprep.subr.bf16.mxu0 0
        %1101 = vmatpush1.bf16.msra.mxu0 %v1083
        %1102 = vmatprep.subr.bf16.mxu0 0
        %1103 = vmatpush1.bf16.msra.mxu0 %v1084
        %1104 = vmatprep.subr.bf16.mxu0 0
        %1105 = vmatpush1.bf16.msra.mxu0 %v1085
        %1106 = vmatprep.subr.bf16.mxu0 0
        %1107 = vmatpush1.bf16.msra.mxu0 %v1086
        %1108 = vmatprep.subr.bf16.mxu0 0
        %1109 = vmatpush1.bf16.msra.mxu0 %v1087
        %1110 = vmatprep.subr.bf16.mxu0 0
        %1111 = vmatpush1.bf16.msra.mxu0 %v1088
        %1112 = vmatprep.subr.bf16.mxu0 0
        %1113 = vmatpush1.bf16.msra.mxu0 %v1089
        %1114 = vmatprep.subr.bf16.mxu0 0
        %1115 = vmatpush1.bf16.msra.mxu0 0
        %1116 = vmatprep.subr.bf16.mxu0 0
        %1117 = vmatpush1.bf16.msra.mxu0 0
        %1118 = vmatprep.subr.bf16.mxu0 0
        %1119 = vmatpush1.bf16.msra.mxu0 0
        %1120 = vmatprep.subr.bf16.mxu0 0
        %1121 = vmatpush1.bf16.msra.mxu0 0
        %1122 = vmatprep.subr.bf16.mxu0 0
        %1123 = vmatpush1.bf16.msra.mxu0 0
        %1124 = vmatprep.subr.bf16.mxu0 0
        %1125 = vmatpush1.bf16.msra.mxu0 0
        %1126 = vmatprep.subr.bf16.mxu0 0
        %1127 = vmatpush1.bf16.msra.mxu0 0
        %1128 = vmatprep.subr.bf16.mxu0 0
        %1129 = vmatpush1.bf16.msra.mxu0 0
        %1130 = vmatprep.mubr.bf16.mxu0 0
        %1131 = vmatmul.mubr.bf16.gmra.mrb[0].mxu0 %v1042
        %v1132 = vpop.f32.mrb[0].mxu0
        %v1133 = vadd.f32 0.0, %v1132
        %v1134 = vpop.f32.mrb[0].mxu0
        %v1135 = vpop.f32.mrb[0].mxu0
        %v1136 = vadd.f32 0.0, %v1135
        %v1137 = vpop.f32.mrb[0].mxu0
        %1138 = vmatprep.mubr.bf16.mxu0 0
        %1139 = vmatmul.mubr.bf16.gmra.mrb[0].mxu0 %v1043
        %v1140 = vpop.f32.mrb[0].mxu0
        %v1141 = vadd.f32 0.0, %v1140
        %v1142 = vpop.f32.mrb[0].mxu0
        %v1143 = vpop.f32.mrb[0].mxu0
        %v1144 = vadd.f32 0.0, %v1143
        %v1145 = vpop.f32.mrb[0].mxu0
        %1146 = vmatprep.mubr.bf16.mxu0 0
        %1147 = vmatmul.mubr.bf16.gmra.mrb[0].mxu0 %v1044
        %v1148 = vpop.f32.mrb[0].mxu0
        %v1149 = vadd.f32 0.0, %v1148
        %v1150 = vpop.f32.mrb[0].mxu0
        %v1151 = vpop.f32.mrb[0].mxu0
        %v1152 = vadd.f32 0.0, %v1151
        %v1153 = vpop.f32.mrb[0].mxu0
        %1154 = vmatprep.mubr.bf16.mxu0 0
        %1155 = vmatmul.mubr.bf16.gmra.mrb[0].mxu0 %v1045
        %v1156 = vpop.f32.mrb[0].mxu0
        %v1157 = vadd.f32 0.0, %v1156
        %v1158 = vpop.f32.mrb[0].mxu0
        %v1159 = vpop.f32.mrb[0].mxu0
        %v1160 = vadd.f32 0.0, %v1159
        %v1161 = vpop.f32.mrb[0].mxu0
        %1162 = vdwg.mxu0
        %v1163 = vadd.f32 %v929, %v1133
        %v1164 = vadd.f32 %v932, %v1136
        %v1165 = vadd.f32 %v937, %v1141
        %v1166 = vadd.f32 %v940, %v1144
        %v1167 = vadd.f32 %v945, %v1149
        %v1168 = vadd.f32 %v948, %v1152
        %v1169 = vadd.f32 %v953, %v1157
        %v1170 = vadd.f32 %v956, %v1160
        %v1171 = vld [vmem:[%s475] sm:$0xf]
        %v1172 = vld [vmem:[%s475 + $0x8] sm:$0xf]
        %v1173 = vld [vmem:[%s475 + $0x10] sm:$0xf]
        %v1174 = vld [vmem:[%s475 + $0x18] sm:$0xf]
        %v1175 = vld [vmem:[%s475 + $0x20] sm:$0xf]
        %v1176 = vld [vmem:[%s475 + $0x28] sm:$0xf]
        %v1177 = vld [vmem:[%s475 + $0x30] sm:$0xf]
        %v1178 = vld [vmem:[%s475 + $0x38] sm:$0xf]
        %v1179 = vld [vmem:[#allocation7 + $0xc0] sm:$0xf]
        %v1180 = vld [vmem:[#allocation7 + $0xc4] sm:$0xf]
        %v1181 = vld [vmem:[#allocation7 + $0xc8] sm:$0xf]
        %v1182 = vld [vmem:[#allocation7 + $0xcc] sm:$0xf]
        %v1183 = vld [vmem:[#allocation7 + $0xd0] sm:$0xf]
        %v1184 = vld [vmem:[#allocation7 + $0xd4] sm:$0xf]
        %v1185 = vld [vmem:[#allocation7 + $0xd8] sm:$0xf]
        %v1186 = vld [vmem:[#allocation7 + $0xdc] sm:$0xf]
        %v1187 = vld [vmem:[#allocation7 + $0xe0] sm:$0xf]
        %v1188 = vld [vmem:[#allocation7 + $0xe4] sm:$0xf]
        %v1189 = vld [vmem:[#allocation7 + $0xe8] sm:$0xf]
        %v1190 = vld [vmem:[#allocation7 + $0xec] sm:$0xf]
        %v1191 = vld [vmem:[#allocation7 + $0xf0] sm:$0xf]
        %v1192 = vld [vmem:[#allocation7 + $0xf4] sm:$0xf]
        %v1193 = vld [vmem:[#allocation7 + $0xf8] sm:$0xf]
        %v1194 = vld [vmem:[#allocation7 + $0xfc] sm:$0xf]
        %v1203 = vunpack.c.l.b16 %v1171
        %v1204 = vunpack.c.l.b16 %v1172
        %v1205 = vunpack.c.l.b16 %v1173
        %v1206 = vunpack.c.l.b16 %v1174
        %v1207 = vunpack.c.l.b16 %v1175
        %v1208 = vunpack.c.l.b16 %v1176
        %v1209 = vunpack.c.l.b16 %v1177
        %v1210 = vunpack.c.l.b16 %v1178
        %v1211 = vpack.c.b16 %v1204, %v1203
        %v1212 = vpack.c.b16 %v1206, %v1205
        %v1213 = vpack.c.b16 %v1208, %v1207
        %v1214 = vpack.c.b16 %v1210, %v1209
        %v1235 = vunpack.c.l.b16 %v1179
        %v1236 = vunpack.c.l.b16 %v1180
        %v1237 = vunpack.c.l.b16 %v1181
        %v1238 = vunpack.c.l.b16 %v1182
        %v1239 = vunpack.c.l.b16 %v1183
        %v1240 = vunpack.c.l.b16 %v1184
        %v1241 = vunpack.c.l.b16 %v1185
        %v1242 = vunpack.c.l.b16 %v1186
        %v1243 = vunpack.c.l.b16 %v1187
        %v1244 = vunpack.c.l.b16 %v1188
        %v1245 = vunpack.c.l.b16 %v1189
        %v1246 = vunpack.c.l.b16 %v1190
        %v1247 = vunpack.c.l.b16 %v1191
        %v1248 = vunpack.c.l.b16 %v1192
        %v1249 = vunpack.c.l.b16 %v1193
        %v1250 = vunpack.c.l.b16 %v1194
        %v1251 = vpack.c.b16 %v1236, %v1235
        %v1252 = vpack.c.b16 %v1238, %v1237
        %v1253 = vpack.c.b16 %v1240, %v1239
        %v1254 = vpack.c.b16 %v1242, %v1241
        %v1255 = vpack.c.b16 %v1244, %v1243
        %v1256 = vpack.c.b16 %v1246, %v1245
        %v1257 = vpack.c.b16 %v1248, %v1247
        %v1258 = vpack.c.b16 %v1250, %v1249
        %1267 = vmatprep.subr.bf16.mxu0 0
        %1268 = vmatpush1.bf16.msra.mxu0 %v1251
        %1269 = vmatprep.subr.bf16.mxu0 0
        %1270 = vmatpush1.bf16.msra.mxu0 %v1252
        %1271 = vmatprep.subr.bf16.mxu0 0
        %1272 = vmatpush1.bf16.msra.mxu0 %v1253
        %1273 = vmatprep.subr.bf16.mxu0 0
        %1274 = vmatpush1.bf16.msra.mxu0 %v1254
        %1275 = vmatprep.subr.bf16.mxu0 0
        %1276 = vmatpush1.bf16.msra.mxu0 %v1255
        %1277 = vmatprep.subr.bf16.mxu0 0
        %1278 = vmatpush1.bf16.msra.mxu0 %v1256
        %1279 = vmatprep.subr.bf16.mxu0 0
        %1280 = vmatpush1.bf16.msra.mxu0 %v1257
        %1281 = vmatprep.subr.bf16.mxu0 0
        %1282 = vmatpush1.bf16.msra.mxu0 %v1258
        %1283 = vmatprep.subr.bf16.mxu0 0
        %1284 = vmatpush1.bf16.msra.mxu0 0
        %1285 = vmatprep.subr.bf16.mxu0 0
        %1286 = vmatpush1.bf16.msra.mxu0 0
        %1287 = vmatprep.subr.bf16.mxu0 0
        %1288 = vmatpush1.bf16.msra.mxu0 0
        %1289 = vmatprep.subr.bf16.mxu0 0
        %1290 = vmatpush1.bf16.msra.mxu0 0
        %1291 = vmatprep.subr.bf16.mxu0 0
        %1292 = vmatpush1.bf16.msra.mxu0 0
        %1293 = vmatprep.subr.bf16.mxu0 0
        %1294 = vmatpush1.bf16.msra.mxu0 0
        %1295 = vmatprep.subr.bf16.mxu0 0
        %1296 = vmatpush1.bf16.msra.mxu0 0
        %1297 = vmatprep.subr.bf16.mxu0 0
        %1298 = vmatpush1.bf16.msra.mxu0 0
        %1299 = vmatprep.mubr.bf16.mxu0 0
        %1300 = vmatmul.mubr.bf16.gmra.mrb[0].mxu0 %v1211
        %v1301 = vpop.f32.mrb[0].mxu0
        %v1302 = vadd.f32 0.0, %v1301
        %v1303 = vpop.f32.mrb[0].mxu0
        %v1304 = vpop.f32.mrb[0].mxu0
        %v1305 = vadd.f32 0.0, %v1304
        %v1306 = vpop.f32.mrb[0].mxu0
        %1307 = vmatprep.mubr.bf16.mxu0 0
        %1308 = vmatmul.mubr.bf16.gmra.mrb[0].mxu0 %v1212
        %v1309 = vpop.f32.mrb[0].mxu0
        %v1310 = vadd.f32 0.0, %v1309
        %v1311 = vpop.f32.mrb[0].mxu0
        %v1312 = vpop.f32.mrb[0].mxu0
        %v1313 = vadd.f32 0.0, %v1312
        %v1314 = vpop.f32.mrb[0].mxu0
        %1315 = vmatprep.mubr.bf16.mxu0 0
        %1316 = vmatmul.mubr.bf16.gmra.mrb[0].mxu0 %v1213
        %v1317 = vpop.f32.mrb[0].mxu0
        %v1318 = vadd.f32 0.0, %v1317
        %v1319 = vpop.f32.mrb[0].mxu0
        %v1320 = vpop.f32.mrb[0].mxu0
        %v1321 = vadd.f32 0.0, %v1320
        %v1322 = vpop.f32.mrb[0].mxu0
        %1323 = vmatprep.mubr.bf16.mxu0 0
        %1324 = vmatmul.mubr.bf16.gmra.mrb[0].mxu0 %v1214
        %v1325 = vpop.f32.mrb[0].mxu0
        %v1326 = vadd.f32 0.0, %v1325
        %v1327 = vpop.f32.mrb[0].mxu0
        %v1328 = vpop.f32.mrb[0].mxu0
        %v1329 = vadd.f32 0.0, %v1328
        %v1330 = vpop.f32.mrb[0].mxu0
        %1331 = vdwg.mxu0
        %v1332 = vadd.f32 %v1163, %v1302
        %v1333 = vadd.f32 %v1164, %v1305
        %v1334 = vadd.f32 %v1165, %v1310
        %v1335 = vadd.f32 %v1166, %v1313
        %v1336 = vadd.f32 %v1167, %v1318
        %v1337 = vadd.f32 %v1168, %v1321
        %v1338 = vadd.f32 %v1169, %v1326
        %v1339 = vadd.f32 %v1170, %v1329
        %v1340 = vld [vmem:[%s475] sm:$0xf]
        %v1341 = vld [vmem:[%s475 + $0x4] sm:$0x1]
        %v1342 = vld [vmem:[%s475 + $0x8] sm:$0xf]
        %v1343 = vld [vmem:[%s475 + $0xc] sm:$0x1]
        %v1344 = vld [vmem:[%s475 + $0x10] sm:$0xf]
        %v1345 = vld [vmem:[%s475 + $0x14] sm:$0x1]
        %v1346 = vld [vmem:[%s475 + $0x18] sm:$0xf]
        %v1347 = vld [vmem:[%s475 + $0x1c] sm:$0x1]
        %v1348 = vld [vmem:[%s475 + $0x20] sm:$0xf]
        %v1349 = vld [vmem:[%s475 + $0x24] sm:$0x1]
        %v1350 = vld [vmem:[%s475 + $0x28] sm:$0xf]
        %v1351 = vld [vmem:[%s475 + $0x2c] sm:$0x1]
        %v1352 = vld [vmem:[%s475 + $0x30] sm:$0xf]
        %v1353 = vld [vmem:[%s475 + $0x34] sm:$0x1]
        %v1354 = vld [vmem:[%s475 + $0x38] sm:$0xf]
        %v1355 = vld [vmem:[%s475 + $0x3c] sm:$0x1]
        %v1357 = vshrl.u32 %v1340, 16
        %v1359 = vrot.slane %v1357, 4
        %v1360 = vshll.u32 %v1340, 16
        %v1362 = vrot.slane %v1360, 5
        %v1363 = vor.u32 %v1359, %v1362
        %v1364 = vrot.slane %v1363, 4
        %v1366 = vshll.u32 %v1341, 16
        %v1368 = vrot.slane %v1366, 5
        %v1369 = vsel %vm564, %v1364, %v1368
        %v1371 = vshrl.u32 %v1342, 16
        %v1373 = vrot.slane %v1371, 4
        %v1374 = vshll.u32 %v1342, 16
        %v1376 = vrot.slane %v1374, 5
        %v1377 = vor.u32 %v1373, %v1376
        %v1378 = vrot.slane %v1377, 4
        %v1380 = vshll.u32 %v1343, 16
        %v1382 = vrot.slane %v1380, 5
        %v1383 = vsel %vm564, %v1378, %v1382
        %v1385 = vshrl.u32 %v1344, 16
        %v1387 = vrot.slane %v1385, 4
        %v1388 = vshll.u32 %v1344, 16
        %v1390 = vrot.slane %v1388, 5
        %v1391 = vor.u32 %v1387, %v1390
        %v1392 = vrot.slane %v1391, 4
        %v1394 = vshll.u32 %v1345, 16
        %v1396 = vrot.slane %v1394, 5
        %v1397 = vsel %vm564, %v1392, %v1396
        %v1399 = vshrl.u32 %v1346, 16
        %v1401 = vrot.slane %v1399, 4
        %v1402 = vshll.u32 %v1346, 16
        %v1404 = vrot.slane %v1402, 5
        %v1405 = vor.u32 %v1401, %v1404
        %v1406 = vrot.slane %v1405, 4
        %v1408 = vshll.u32 %v1347, 16
        %v1410 = vrot.slane %v1408, 5
        %v1411 = vsel %vm564, %v1406, %v1410
        %v1413 = vshrl.u32 %v1348, 16
        %v1415 = vrot.slane %v1413, 4
        %v1416 = vshll.u32 %v1348, 16
        %v1418 = vrot.slane %v1416, 5
        %v1419 = vor.u32 %v1415, %v1418
        %v1420 = vrot.slane %v1419, 4
        %v1422 = vshll.u32 %v1349, 16
        %v1424 = vrot.slane %v1422, 5
        %v1425 = vsel %vm564, %v1420, %v1424
        %v1427 = vshrl.u32 %v1350, 16
        %v1429 = vrot.slane %v1427, 4
        %v1430 = vshll.u32 %v1350, 16
        %v1432 = vrot.slane %v1430, 5
        %v1433 = vor.u32 %v1429, %v1432
        %v1434 = vrot.slane %v1433, 4
        %v1436 = vshll.u32 %v1351, 16
        %v1438 = vrot.slane %v1436, 5
        %v1439 = vsel %vm564, %v1434, %v1438
        %v1441 = vshrl.u32 %v1352, 16
        %v1443 = vrot.slane %v1441, 4
        %v1444 = vshll.u32 %v1352, 16
        %v1446 = vrot.slane %v1444, 5
        %v1447 = vor.u32 %v1443, %v1446
        %v1448 = vrot.slane %v1447, 4
        %v1450 = vshll.u32 %v1353, 16
        %v1452 = vrot.slane %v1450, 5
        %v1453 = vsel %vm564, %v1448, %v1452
        %v1455 = vshrl.u32 %v1354, 16
        %v1457 = vrot.slane %v1455, 4
        %v1458 = vshll.u32 %v1354, 16
        %v1460 = vrot.slane %v1458, 5
        %v1461 = vor.u32 %v1457, %v1460
        %v1462 = vrot.slane %v1461, 4
        %v1464 = vshll.u32 %v1355, 16
        %v1466 = vrot.slane %v1464, 5
        %v1467 = vsel %vm564, %v1462, %v1466
        %v1468 = vld [vmem:[#allocation7 + $0x100] sm:$0xf]
        %v1469 = vld [vmem:[#allocation7 + $0x104] sm:$0xf]
        %v1470 = vld [vmem:[#allocation7 + $0x108] sm:$0xf]
        %v1471 = vld [vmem:[#allocation7 + $0x10c] sm:$0xf]
        %v1472 = vld [vmem:[#allocation7 + $0x110] sm:$0xf]
        %v1473 = vld [vmem:[#allocation7 + $0x114] sm:$0xf]
        %v1474 = vld [vmem:[#allocation7 + $0x118] sm:$0xf]
        %v1475 = vld [vmem:[#allocation7 + $0x11c] sm:$0xf]
        %v1476 = vld [vmem:[#allocation7 + $0x120] sm:$0xf]
        %v1477 = vld [vmem:[#allocation7 + $0x124] sm:$0xf]
        %v1478 = vld [vmem:[#allocation7 + $0x128] sm:$0xf]
        %v1479 = vld [vmem:[#allocation7 + $0x12c] sm:$0xf]
        %v1480 = vld [vmem:[#allocation7 + $0x130] sm:$0xf]
        %v1481 = vld [vmem:[#allocation7 + $0x134] sm:$0xf]
        %v1482 = vld [vmem:[#allocation7 + $0x138] sm:$0xf]
        %v1483 = vld [vmem:[#allocation7 + $0x13c] sm:$0xf]
        %v1484 = vunpack.c.l.b16 %v1369
        %v1485 = vunpack.c.l.b16 %v1383
        %v1486 = vunpack.c.l.b16 %v1397
        %v1487 = vunpack.c.l.b16 %v1411
        %v1488 = vunpack.c.l.b16 %v1425
        %v1489 = vunpack.c.l.b16 %v1439
        %v1490 = vunpack.c.l.b16 %v1453
        %v1491 = vunpack.c.l.b16 %v1467
        %v1492 = vpack.c.b16 %v1485, %v1484
        %v1493 = vpack.c.b16 %v1487, %v1486
        %v1494 = vpack.c.b16 %v1489, %v1488
        %v1495 = vpack.c.b16 %v1491, %v1490
        %v1516 = vunpack.c.l.b16 %v1468
        %v1517 = vunpack.c.l.b16 %v1469
        %v1518 = vunpack.c.l.b16 %v1470
        %v1519 = vunpack.c.l.b16 %v1471
        %v1520 = vunpack.c.l.b16 %v1472
        %v1521 = vunpack.c.l.b16 %v1473
        %v1522 = vunpack.c.l.b16 %v1474
        %v1523 = vunpack.c.l.b16 %v1475
        %v1524 = vunpack.c.l.b16 %v1476
        %v1525 = vunpack.c.l.b16 %v1477
        %v1526 = vunpack.c.l.b16 %v1478
        %v1527 = vunpack.c.l.b16 %v1479
        %v1528 = vunpack.c.l.b16 %v1480
        %v1529 = vunpack.c.l.b16 %v1481
        %v1530 = vunpack.c.l.b16 %v1482
        %v1531 = vunpack.c.l.b16 %v1483
        %v1532 = vpack.c.b16 %v1517, %v1516
        %v1533 = vpack.c.b16 %v1519, %v1518
        %v1534 = vpack.c.b16 %v1521, %v1520
        %v1535 = vpack.c.b16 %v1523, %v1522
        %v1536 = vpack.c.b16 %v1525, %v1524
        %v1537 = vpack.c.b16 %v1527, %v1526
        %v1538 = vpack.c.b16 %v1529, %v1528
        %v1539 = vpack.c.b16 %v1531, %v1530
        %1548 = vmatprep.subr.bf16.mxu0 0
        %1549 = vmatpush1.bf16.msra.mxu0 %v1532
        %1550 = vmatprep.subr.bf16.mxu0 0
        %1551 = vmatpush1.bf16.msra.mxu0 %v1533
        %1552 = vmatprep.subr.bf16.mxu0 0
        %1553 = vmatpush1.bf16.msra.mxu0 %v1534
        %1554 = vmatprep.subr.bf16.mxu0 0
        %1555 = vmatpush1.bf16.msra.mxu0 %v1535
        %1556 = vmatprep.subr.bf16.mxu0 0
        %1557 = vmatpush1.bf16.msra.mxu0 %v1536
        %1558 = vmatprep.subr.bf16.mxu0 0
        %1559 = vmatpush1.bf16.msra.mxu0 %v1537
        %1560 = vmatprep.subr.bf16.mxu0 0
        %1561 = vmatpush1.bf16.msra.mxu0 %v1538
        %1562 = vmatprep.subr.bf16.mxu0 0
        %1563 = vmatpush1.bf16.msra.mxu0 %v1539
        %1564 = vmatprep.subr.bf16.mxu0 0
        %1565 = vmatpush1.bf16.msra.mxu0 0
        %1566 = vmatprep.subr.bf16.mxu0 0
        %1567 = vmatpush1.bf16.msra.mxu0 0
        %1568 = vmatprep.subr.bf16.mxu0 0
        %1569 = vmatpush1.bf16.msra.mxu0 0
        %1570 = vmatprep.subr.bf16.mxu0 0
        %1571 = vmatpush1.bf16.msra.mxu0 0
        %1572 = vmatprep.subr.bf16.mxu0 0
        %1573 = vmatpush1.bf16.msra.mxu0 0
        %1574 = vmatprep.subr.bf16.mxu0 0
        %1575 = vmatpush1.bf16.msra.mxu0 0
        %1576 = vmatprep.subr.bf16.mxu0 0
        %1577 = vmatpush1.bf16.msra.mxu0 0
        %1578 = vmatprep.subr.bf16.mxu0 0
        %1579 = vmatpush1.bf16.msra.mxu0 0
        %1580 = vmatprep.mubr.bf16.mxu0 0
        %1581 = vmatmul.mubr.bf16.gmra.mrb[0].mxu0 %v1492
        %v1582 = vpop.f32.mrb[0].mxu0
        %v1583 = vadd.f32 0.0, %v1582
        %v1584 = vpop.f32.mrb[0].mxu0
        %v1585 = vpop.f32.mrb[0].mxu0
        %v1586 = vadd.f32 0.0, %v1585
        %v1587 = vpop.f32.mrb[0].mxu0
        %1588 = vmatprep.mubr.bf16.mxu0 0
        %1589 = vmatmul.mubr.bf16.gmra.mrb[0].mxu0 %v1493
        %v1590 = vpop.f32.mrb[0].mxu0
        %v1591 = vadd.f32 0.0, %v1590
        %v1592 = vpop.f32.mrb[0].mxu0
        %v1593 = vpop.f32.mrb[0].mxu0
        %v1594 = vadd.f32 0.0, %v1593
        %v1595 = vpop.f32.mrb[0].mxu0
        %1596 = vmatprep.mubr.bf16.mxu0 0
        %1597 = vmatmul.mubr.bf16.gmra.mrb[0].mxu0 %v1494
        %v1598 = vpop.f32.mrb[0].mxu0
        %v1599 = vadd.f32 0.0, %v1598
        %v1600 = vpop.f32.mrb[0].mxu0
        %v1601 = vpop.f32.mrb[0].mxu0
        %v1602 = vadd.f32 0.0, %v1601
        %v1603 = vpop.f32.mrb[0].mxu0
        %1604 = vmatprep.mubr.bf16.mxu0 0
        %1605 = vmatmul.mubr.bf16.gmra.mrb[0].mxu0 %v1495
        %v1606 = vpop.f32.mrb[0].mxu0
        %v1607 = vadd.f32 0.0, %v1606
        %v1608 = vpop.f32.mrb[0].mxu0
        %v1609 = vpop.f32.mrb[0].mxu0
        %v1610 = vadd.f32 0.0, %v1609
        %v1611 = vpop.f32.mrb[0].mxu0
        %1612 = vdwg.mxu0
        %v1613 = vadd.f32 %v1332, %v1583
        %v1614 = vadd.f32 %v1333, %v1586
        %v1615 = vadd.f32 %v1334, %v1591
        %v1616 = vadd.f32 %v1335, %v1594
        %v1617 = vadd.f32 %v1336, %v1599
        %v1618 = vadd.f32 %v1337, %v1602
        %v1619 = vadd.f32 %v1338, %v1607
        %v1620 = vadd.f32 %v1339, %v1610
        %v1621 = vld [vmem:[%s475] sm:$0xe]
        %v1622 = vld [vmem:[%s475 + $0x8] sm:$0xe]
        %v1623 = vld [vmem:[%s475 + $0x10] sm:$0xe]
        %v1624 = vld [vmem:[%s475 + $0x18] sm:$0xe]
        %v1625 = vld [vmem:[%s475 + $0x20] sm:$0xe]
        %v1626 = vld [vmem:[%s475 + $0x28] sm:$0xe]
        %v1627 = vld [vmem:[%s475 + $0x30] sm:$0xe]
        %v1628 = vld [vmem:[%s475 + $0x38] sm:$0xe]
        %v1645 = vrot.slane %v1621, 5
        %v1646 = vrot.slane %v1645, 4
        %v1647 = vrot.slane %v1341, 5
        %v1648 = vsel %vm985, %v1646, %v1647
        %v1649 = vrot.slane %v1622, 5
        %v1650 = vrot.slane %v1649, 4
        %v1651 = vrot.slane %v1343, 5
        %v1652 = vsel %vm985, %v1650, %v1651
        %v1653 = vrot.slane %v1623, 5
        %v1654 = vrot.slane %v1653, 4
        %v1655 = vrot.slane %v1345, 5
        %v1656 = vsel %vm985, %v1654, %v1655
        %v1657 = vrot.slane %v1624, 5
        %v1658 = vrot.slane %v1657, 4
        %v1659 = vrot.slane %v1347, 5
        %v1660 = vsel %vm985, %v1658, %v1659
        %v1661 = vrot.slane %v1625, 5
        %v1662 = vrot.slane %v1661, 4
        %v1663 = vrot.slane %v1349, 5
        %v1664 = vsel %vm985, %v1662, %v1663
        %v1665 = vrot.slane %v1626, 5
        %v1666 = vrot.slane %v1665, 4
        %v1667 = vrot.slane %v1351, 5
        %v1668 = vsel %vm985, %v1666, %v1667
        %v1669 = vrot.slane %v1627, 5
        %v1670 = vrot.slane %v1669, 4
        %v1671 = vrot.slane %v1353, 5
        %v1672 = vsel %vm985, %v1670, %v1671
        %v1673 = vrot.slane %v1628, 5
        %v1674 = vrot.slane %v1673, 4
        %v1675 = vrot.slane %v1355, 5
        %v1676 = vsel %vm985, %v1674, %v1675
        %v1677 = vld [vmem:[#allocation7 + $0x140] sm:$0xf]
        %v1678 = vld [vmem:[#allocation7 + $0x144] sm:$0xf]
        %v1679 = vld [vmem:[#allocation7 + $0x148] sm:$0xf]
        %v1680 = vld [vmem:[#allocation7 + $0x14c] sm:$0xf]
        %v1681 = vld [vmem:[#allocation7 + $0x150] sm:$0xf]
        %v1682 = vld [vmem:[#allocation7 + $0x154] sm:$0xf]
        %v1683 = vld [vmem:[#allocation7 + $0x158] sm:$0xf]
        %v1684 = vld [vmem:[#allocation7 + $0x15c] sm:$0xf]
        %v1685 = vld [vmem:[#allocation7 + $0x160] sm:$0xf]
        %v1686 = vld [vmem:[#allocation7 + $0x164] sm:$0xf]
        %v1687 = vld [vmem:[#allocation7 + $0x168] sm:$0xf]
        %v1688 = vld [vmem:[#allocation7 + $0x16c] sm:$0xf]
        %v1689 = vld [vmem:[#allocation7 + $0x170] sm:$0xf]
        %v1690 = vld [vmem:[#allocation7 + $0x174] sm:$0xf]
        %v1691 = vld [vmem:[#allocation7 + $0x178] sm:$0xf]
        %v1692 = vld [vmem:[#allocation7 + $0x17c] sm:$0xf]
        %v1693 = vunpack.c.l.b16 %v1648
        %v1694 = vunpack.c.l.b16 %v1652
        %v1695 = vunpack.c.l.b16 %v1656
        %v1696 = vunpack.c.l.b16 %v1660
        %v1697 = vunpack.c.l.b16 %v1664
        %v1698 = vunpack.c.l.b16 %v1668
        %v1699 = vunpack.c.l.b16 %v1672
        %v1700 = vunpack.c.l.b16 %v1676
        %v1701 = vpack.c.b16 %v1694, %v1693
        %v1702 = vpack.c.b16 %v1696, %v1695
        %v1703 = vpack.c.b16 %v1698, %v1697
        %v1704 = vpack.c.b16 %v1700, %v1699
        %v1725 = vunpack.c.l.b16 %v1677
        %v1726 = vunpack.c.l.b16 %v1678
        %v1727 = vunpack.c.l.b16 %v1679
        %v1728 = vunpack.c.l.b16 %v1680
        %v1729 = vunpack.c.l.b16 %v1681
        %v1730 = vunpack.c.l.b16 %v1682
        %v1731 = vunpack.c.l.b16 %v1683
        %v1732 = vunpack.c.l.b16 %v1684
        %v1733 = vunpack.c.l.b16 %v1685
        %v1734 = vunpack.c.l.b16 %v1686
        %v1735 = vunpack.c.l.b16 %v1687
        %v1736 = vunpack.c.l.b16 %v1688
        %v1737 = vunpack.c.l.b16 %v1689
        %v1738 = vunpack.c.l.b16 %v1690
        %v1739 = vunpack.c.l.b16 %v1691
        %v1740 = vunpack.c.l.b16 %v1692
        %v1741 = vpack.c.b16 %v1726, %v1725
        %v1742 = vpack.c.b16 %v1728, %v1727
        %v1743 = vpack.c.b16 %v1730, %v1729
        %v1744 = vpack.c.b16 %v1732, %v1731
        %v1745 = vpack.c.b16 %v1734, %v1733
        %v1746 = vpack.c.b16 %v1736, %v1735
        %v1747 = vpack.c.b16 %v1738, %v1737
        %v1748 = vpack.c.b16 %v1740, %v1739
        %1757 = vmatprep.subr.bf16.mxu0 0
        %1758 = vmatpush1.bf16.msra.mxu0 %v1741
        %1759 = vmatprep.subr.bf16.mxu0 0
        %1760 = vmatpush1.bf16.msra.mxu0 %v1742
        %1761 = vmatprep.subr.bf16.mxu0 0
        %1762 = vmatpush1.bf16.msra.mxu0 %v1743
        %1763 = vmatprep.subr.bf16.mxu0 0
        %1764 = vmatpush1.bf16.msra.mxu0 %v1744
        %1765 = vmatprep.subr.bf16.mxu0 0
        %1766 = vmatpush1.bf16.msra.mxu0 %v1745
        %1767 = vmatprep.subr.bf16.mxu0 0
        %1768 = vmatpush1.bf16.msra.mxu0 %v1746
        %1769 = vmatprep.subr.bf16.mxu0 0
        %1770 = vmatpush1.bf16.msra.mxu0 %v1747
        %1771 = vmatprep.subr.bf16.mxu0 0
        %1772 = vmatpush1.bf16.msra.mxu0 %v1748
        %1773 = vmatprep.subr.bf16.mxu0 0
        %1774 = vmatpush1.bf16.msra.mxu0 0
        %1775 = vmatprep.subr.bf16.mxu0 0
        %1776 = vmatpush1.bf16.msra.mxu0 0
        %1777 = vmatprep.subr.bf16.mxu0 0
        %1778 = vmatpush1.bf16.msra.mxu0 0
        %1779 = vmatprep.subr.bf16.mxu0 0
        %1780 = vmatpush1.bf16.msra.mxu0 0
        %1781 = vmatprep.subr.bf16.mxu0 0
        %1782 = vmatpush1.bf16.msra.mxu0 0
        %1783 = vmatprep.subr.bf16.mxu0 0
        %1784 = vmatpush1.bf16.msra.mxu0 0
        %1785 = vmatprep.subr.bf16.mxu0 0
        %1786 = vmatpush1.bf16.msra.mxu0 0
        %1787 = vmatprep.subr.bf16.mxu0 0
        %1788 = vmatpush1.bf16.msra.mxu0 0
        %1789 = vmatprep.mubr.bf16.mxu0 0
        %1790 = vmatmul.mubr.bf16.gmra.mrb[0].mxu0 %v1701
        %v1791 = vpop.f32.mrb[0].mxu0
        %v1792 = vadd.f32 0.0, %v1791
        %v1793 = vpop.f32.mrb[0].mxu0
        %v1794 = vpop.f32.mrb[0].mxu0
        %v1795 = vadd.f32 0.0, %v1794
        %v1796 = vpop.f32.mrb[0].mxu0
        %1797 = vmatprep.mubr.bf16.mxu0 0
        %1798 = vmatmul.mubr.bf16.gmra.mrb[0].mxu0 %v1702
        %v1799 = vpop.f32.mrb[0].mxu0
        %v1800 = vadd.f32 0.0, %v1799
        %v1801 = vpop.f32.mrb[0].mxu0
        %v1802 = vpop.f32.mrb[0].mxu0
        %v1803 = vadd.f32 0.0, %v1802
        %v1804 = vpop.f32.mrb[0].mxu0
        %1805 = vmatprep.mubr.bf16.mxu0 0
        %1806 = vmatmul.mubr.bf16.gmra.mrb[0].mxu0 %v1703
        %v1807 = vpop.f32.mrb[0].mxu0
        %v1808 = vadd.f32 0.0, %v1807
        %v1809 = vpop.f32.mrb[0].mxu0
        %v1810 = vpop.f32.mrb[0].mxu0
        %v1811 = vadd.f32 0.0, %v1810
        %v1812 = vpop.f32.mrb[0].mxu0
        %1813 = vmatprep.mubr.bf16.mxu0 0
        %1814 = vmatmul.mubr.bf16.gmra.mrb[0].mxu0 %v1704
        %v1815 = vpop.f32.mrb[0].mxu0
        %v1816 = vadd.f32 0.0, %v1815
        %v1817 = vpop.f32.mrb[0].mxu0
        %v1818 = vpop.f32.mrb[0].mxu0
        %v1819 = vadd.f32 0.0, %v1818
        %v1820 = vpop.f32.mrb[0].mxu0
        %1821 = vdwg.mxu0
        %v1822 = vadd.f32 %v1613, %v1792
        %v1823 = vadd.f32 %v1614, %v1795
        %v1824 = vadd.f32 %v1615, %v1800
        %v1825 = vadd.f32 %v1616, %v1803
        %v1826 = vadd.f32 %v1617, %v1808
        %v1827 = vadd.f32 %v1618, %v1811
        %v1828 = vadd.f32 %v1619, %v1816
        %v1829 = vadd.f32 %v1620, %v1819
        %s1830 = scalar_lea.vmem [#allocation2], 16
        %v1831 = vld [vmem:[%s1830] sm:$0xf]
        %v1832 = vld [vmem:[%s1830 + $0x8] sm:$0xf]
        %v1833 = vld [vmem:[%s1830 + $0x10] sm:$0xf]
        %v1834 = vld [vmem:[%s1830 + $0x18] sm:$0xf]
        %v1835 = vld [vmem:[%s1830 + $0x20] sm:$0xf]
        %v1836 = vld [vmem:[%s1830 + $0x28] sm:$0xf]
        %v1837 = vld [vmem:[%s1830 + $0x30] sm:$0xf]
        %v1838 = vld [vmem:[%s1830 + $0x38] sm:$0xf]
        %v1839 = vld [vmem:[#allocation7 + $0x180] sm:$0xf]
        %v1840 = vld [vmem:[#allocation7 + $0x184] sm:$0xf]
        %v1841 = vld [vmem:[#allocation7 + $0x188] sm:$0xf]
        %v1842 = vld [vmem:[#allocation7 + $0x18c] sm:$0xf]
        %v1843 = vld [vmem:[#allocation7 + $0x190] sm:$0xf]
        %v1844 = vld [vmem:[#allocation7 + $0x194] sm:$0xf]
        %v1845 = vld [vmem:[#allocation7 + $0x198] sm:$0xf]
        %v1846 = vld [vmem:[#allocation7 + $0x19c] sm:$0xf]
        %v1847 = vld [vmem:[#allocation7 + $0x1a0] sm:$0xf]
        %v1848 = vld [vmem:[#allocation7 + $0x1a4] sm:$0xf]
        %v1849 = vld [vmem:[#allocation7 + $0x1a8] sm:$0xf]
        %v1850 = vld [vmem:[#allocation7 + $0x1ac] sm:$0xf]
        %v1851 = vld [vmem:[#allocation7 + $0x1b0] sm:$0xf]
        %v1852 = vld [vmem:[#allocation7 + $0x1b4] sm:$0xf]
        %v1853 = vld [vmem:[#allocation7 + $0x1b8] sm:$0xf]
        %v1854 = vld [vmem:[#allocation7 + $0x1bc] sm:$0xf]
        %v1863 = vunpack.c.l.b16 %v1831
        %v1864 = vunpack.c.l.b16 %v1832
        %v1865 = vunpack.c.l.b16 %v1833
        %v1866 = vunpack.c.l.b16 %v1834
        %v1867 = vunpack.c.l.b16 %v1835
        %v1868 = vunpack.c.l.b16 %v1836
        %v1869 = vunpack.c.l.b16 %v1837
        %v1870 = vunpack.c.l.b16 %v1838
        %v1871 = vpack.c.b16 %v1864, %v1863
        %v1872 = vpack.c.b16 %v1866, %v1865
        %v1873 = vpack.c.b16 %v1868, %v1867
        %v1874 = vpack.c.b16 %v1870, %v1869
        %v1895 = vunpack.c.l.b16 %v1839
        %v1896 = vunpack.c.l.b16 %v1840
        %v1897 = vunpack.c.l.b16 %v1841
        %v1898 = vunpack.c.l.b16 %v1842
        %v1899 = vunpack.c.l.b16 %v1843
        %v1900 = vunpack.c.l.b16 %v1844
        %v1901 = vunpack.c.l.b16 %v1845
        %v1902 = vunpack.c.l.b16 %v1846
        %v1903 = vunpack.c.l.b16 %v1847
        %v1904 = vunpack.c.l.b16 %v1848
        %v1905 = vunpack.c.l.b16 %v1849
        %v1906 = vunpack.c.l.b16 %v1850
        %v1907 = vunpack.c.l.b16 %v1851
        %v1908 = vunpack.c.l.b16 %v1852
        %v1909 = vunpack.c.l.b16 %v1853
        %v1910 = vunpack.c.l.b16 %v1854
        %v1911 = vpack.c.b16 %v1896, %v1895
        %v1912 = vpack.c.b16 %v1898, %v1897
        %v1913 = vpack.c.b16 %v1900, %v1899
        %v1914 = vpack.c.b16 %v1902, %v1901
        %v1915 = vpack.c.b16 %v1904, %v1903
        %v1916 = vpack.c.b16 %v1906, %v1905
        %v1917 = vpack.c.b16 %v1908, %v1907
        %v1918 = vpack.c.b16 %v1910, %v1909
        %1927 = vmatprep.subr.bf16.mxu0 0
        %1928 = vmatpush1.bf16.msra.mxu0 %v1911
        %1929 = vmatprep.subr.bf16.mxu0 0
        %1930 = vmatpush1.bf16.msra.mxu0 %v1912
        %1931 = vmatprep.subr.bf16.mxu0 0
        %1932 = vmatpush1.bf16.msra.mxu0 %v1913
        %1933 = vmatprep.subr.bf16.mxu0 0
        %1934 = vmatpush1.bf16.msra.mxu0 %v1914
        %1935 = vmatprep.subr.bf16.mxu0 0
        %1936 = vmatpush1.bf16.msra.mxu0 %v1915
        %1937 = vmatprep.subr.bf16.mxu0 0
        %1938 = vmatpush1.bf16.msra.mxu0 %v1916
        %1939 = vmatprep.subr.bf16.mxu0 0
        %1940 = vmatpush1.bf16.msra.mxu0 %v1917
        %1941 = vmatprep.subr.bf16.mxu0 0
        %1942 = vmatpush1.bf16.msra.mxu0 %v1918
        %1943 = vmatprep.subr.bf16.mxu0 0
        %1944 = vmatpush1.bf16.msra.mxu0 0
        %1945 = vmatprep.subr.bf16.mxu0 0
        %1946 = vmatpush1.bf16.msra.mxu0 0
        %1947 = vmatprep.subr.bf16.mxu0 0
        %1948 = vmatpush1.bf16.msra.mxu0 0
        %1949 = vmatprep.subr.bf16.mxu0 0
        %1950 = vmatpush1.bf16.msra.mxu0 0
        %1951 = vmatprep.subr.bf16.mxu0 0
        %1952 = vmatpush1.bf16.msra.mxu0 0
        %1953 = vmatprep.subr.bf16.mxu0 0
        %1954 = vmatpush1.bf16.msra.mxu0 0
        %1955 = vmatprep.subr.bf16.mxu0 0
        %1956 = vmatpush1.bf16.msra.mxu0 0
        %1957 = vmatprep.subr.bf16.mxu0 0
        %1958 = vmatpush1.bf16.msra.mxu0 0
        %1959 = vmatprep.mubr.bf16.mxu0 0
        %1960 = vmatmul.mubr.bf16.gmra.mrb[0].mxu0 %v1871
        %v1961 = vpop.f32.mrb[0].mxu0
        %v1962 = vadd.f32 0.0, %v1961
        %v1963 = vpop.f32.mrb[0].mxu0
        %v1964 = vpop.f32.mrb[0].mxu0
        %v1965 = vadd.f32 0.0, %v1964
        %v1966 = vpop.f32.mrb[0].mxu0
        %1967 = vmatprep.mubr.bf16.mxu0 0
        %1968 = vmatmul.mubr.bf16.gmra.mrb[0].mxu0 %v1872
        %v1969 = vpop.f32.mrb[0].mxu0
        %v1970 = vadd.f32 0.0, %v1969
        %v1971 = vpop.f32.mrb[0].mxu0
        %v1972 = vpop.f32.mrb[0].mxu0
        %v1973 = vadd.f32 0.0, %v1972
        %v1974 = vpop.f32.mrb[0].mxu0
        %1975 = vmatprep.mubr.bf16.mxu0 0
        %1976 = vmatmul.mubr.bf16.gmra.mrb[0].mxu0 %v1873
        %v1977 = vpop.f32.mrb[0].mxu0
        %v1978 = vadd.f32 0.0, %v1977
        %v1979 = vpop.f32.mrb[0].mxu0
        %v1980 = vpop.f32.mrb[0].mxu0
        %v1981 = vadd.f32 0.0, %v1980
        %v1982 = vpop.f32.mrb[0].mxu0
        %1983 = vmatprep.mubr.bf16.mxu0 0
        %1984 = vmatmul.mubr.bf16.gmra.mrb[0].mxu0 %v1874
        %v1985 = vpop.f32.mrb[0].mxu0
        %v1986 = vadd.f32 0.0, %v1985
        %v1987 = vpop.f32.mrb[0].mxu0
        %v1988 = vpop.f32.mrb[0].mxu0
        %v1989 = vadd.f32 0.0, %v1988
        %v1990 = vpop.f32.mrb[0].mxu0
        %1991 = vdwg.mxu0
        %v1992 = vadd.f32 %v1822, %v1962
        %v1993 = vadd.f32 %v1823, %v1965
        %v1994 = vadd.f32 %v1824, %v1970
        %v1995 = vadd.f32 %v1825, %v1973
        %v1996 = vadd.f32 %v1826, %v1978
        %v1997 = vadd.f32 %v1827, %v1981
        %v1998 = vadd.f32 %v1828, %v1986
        %v1999 = vadd.f32 %v1829, %v1989
        %v2000 = vld [vmem:[%s1830] sm:$0xf]
        %v2001 = vld [vmem:[%s1830 + $0x4] sm:$0x1]
        %v2002 = vld [vmem:[%s1830 + $0x8] sm:$0xf]
        %v2003 = vld [vmem:[%s1830 + $0xc] sm:$0x1]
        %v2004 = vld [vmem:[%s1830 + $0x10] sm:$0xf]
        %v2005 = vld [vmem:[%s1830 + $0x14] sm:$0x1]
        %v2006 = vld [vmem:[%s1830 + $0x18] sm:$0xf]
        %v2007 = vld [vmem:[%s1830 + $0x1c] sm:$0x1]
        %v2008 = vld [vmem:[%s1830 + $0x20] sm:$0xf]
        %v2009 = vld [vmem:[%s1830 + $0x24] sm:$0x1]
        %v2010 = vld [vmem:[%s1830 + $0x28] sm:$0xf]
        %v2011 = vld [vmem:[%s1830 + $0x2c] sm:$0x1]
        %v2012 = vld [vmem:[%s1830 + $0x30] sm:$0xf]
        %v2013 = vld [vmem:[%s1830 + $0x34] sm:$0x1]
        %v2014 = vld [vmem:[%s1830 + $0x38] sm:$0xf]
        %v2015 = vld [vmem:[%s1830 + $0x3c] sm:$0x1]
        %v2017 = vshrl.u32 %v2000, 16
        %v2019 = vrot.slane %v2017, 4
        %v2020 = vshll.u32 %v2000, 16
        %v2022 = vrot.slane %v2020, 5
        %v2023 = vor.u32 %v2019, %v2022
        %v2024 = vrot.slane %v2023, 4
        %v2026 = vshll.u32 %v2001, 16
        %v2028 = vrot.slane %v2026, 5
        %v2029 = vsel %vm564, %v2024, %v2028
        %v2031 = vshrl.u32 %v2002, 16
        %v2033 = vrot.slane %v2031, 4
        %v2034 = vshll.u32 %v2002, 16
        %v2036 = vrot.slane %v2034, 5
        %v2037 = vor.u32 %v2033, %v2036
        %v2038 = vrot.slane %v2037, 4
        %v2040 = vshll.u32 %v2003, 16
        %v2042 = vrot.slane %v2040, 5
        %v2043 = vsel %vm564, %v2038, %v2042
        %v2045 = vshrl.u32 %v2004, 16
        %v2047 = vrot.slane %v2045, 4
        %v2048 = vshll.u32 %v2004, 16
        %v2050 = vrot.slane %v2048, 5
        %v2051 = vor.u32 %v2047, %v2050
        %v2052 = vrot.slane %v2051, 4
        %v2054 = vshll.u32 %v2005, 16
        %v2056 = vrot.slane %v2054, 5
        %v2057 = vsel %vm564, %v2052, %v2056
        %v2059 = vshrl.u32 %v2006, 16
        %v2061 = vrot.slane %v2059, 4
        %v2062 = vshll.u32 %v2006, 16
        %v2064 = vrot.slane %v2062, 5
        %v2065 = vor.u32 %v2061, %v2064
        %v2066 = vrot.slane %v2065, 4
        %v2068 = vshll.u32 %v2007, 16
        %v2070 = vrot.slane %v2068, 5
        %v2071 = vsel %vm564, %v2066, %v2070
        %v2073 = vshrl.u32 %v2008, 16
        %v2075 = vrot.slane %v2073, 4
        %v2076 = vshll.u32 %v2008, 16
        %v2078 = vrot.slane %v2076, 5
        %v2079 = vor.u32 %v2075, %v2078
        %v2080 = vrot.slane %v2079, 4
        %v2082 = vshll.u32 %v2009, 16
        %v2084 = vrot.slane %v2082, 5
        %v2085 = vsel %vm564, %v2080, %v2084
        %v2087 = vshrl.u32 %v2010, 16
        %v2089 = vrot.slane %v2087, 4
        %v2090 = vshll.u32 %v2010, 16
        %v2092 = vrot.slane %v2090, 5
        %v2093 = vor.u32 %v2089, %v2092
        %v2094 = vrot.slane %v2093, 4
        %v2096 = vshll.u32 %v2011, 16
        %v2098 = vrot.slane %v2096, 5
        %v2099 = vsel %vm564, %v2094, %v2098
        %v2101 = vshrl.u32 %v2012, 16
        %v2103 = vrot.slane %v2101, 4
        %v2104 = vshll.u32 %v2012, 16
        %v2106 = vrot.slane %v2104, 5
        %v2107 = vor.u32 %v2103, %v2106
        %v2108 = vrot.slane %v2107, 4
        %v2110 = vshll.u32 %v2013, 16
        %v2112 = vrot.slane %v2110, 5
        %v2113 = vsel %vm564, %v2108, %v2112
        %v2115 = vshrl.u32 %v2014, 16
        %v2117 = vrot.slane %v2115, 4
        %v2118 = vshll.u32 %v2014, 16
        %v2120 = vrot.slane %v2118, 5
        %v2121 = vor.u32 %v2117, %v2120
        %v2122 = vrot.slane %v2121, 4
        %v2124 = vshll.u32 %v2015, 16
        %v2126 = vrot.slane %v2124, 5
        %v2127 = vsel %vm564, %v2122, %v2126
        %v2128 = vld [vmem:[#allocation7 + $0x1c0] sm:$0xf]
        %v2129 = vld [vmem:[#allocation7 + $0x1c4] sm:$0xf]
        %v2130 = vld [vmem:[#allocation7 + $0x1c8] sm:$0xf]
        %v2131 = vld [vmem:[#allocation7 + $0x1cc] sm:$0xf]
        %v2132 = vld [vmem:[#allocation7 + $0x1d0] sm:$0xf]
        %v2133 = vld [vmem:[#allocation7 + $0x1d4] sm:$0xf]
        %v2134 = vld [vmem:[#allocation7 + $0x1d8] sm:$0xf]
        %v2135 = vld [vmem:[#allocation7 + $0x1dc] sm:$0xf]
        %v2136 = vld [vmem:[#allocation7 + $0x1e0] sm:$0xf]
        %v2137 = vld [vmem:[#allocation7 + $0x1e4] sm:$0xf]
        %v2138 = vld [vmem:[#allocation7 + $0x1e8] sm:$0xf]
        %v2139 = vld [vmem:[#allocation7 + $0x1ec] sm:$0xf]
        %v2140 = vld [vmem:[#allocation7 + $0x1f0] sm:$0xf]
        %v2141 = vld [vmem:[#allocation7 + $0x1f4] sm:$0xf]
        %v2142 = vld [vmem:[#allocation7 + $0x1f8] sm:$0xf]
        %v2143 = vld [vmem:[#allocation7 + $0x1fc] sm:$0xf]
        %v2144 = vunpack.c.l.b16 %v2029
        %v2145 = vunpack.c.l.b16 %v2043
        %v2146 = vunpack.c.l.b16 %v2057
        %v2147 = vunpack.c.l.b16 %v2071
        %v2148 = vunpack.c.l.b16 %v2085
        %v2149 = vunpack.c.l.b16 %v2099
        %v2150 = vunpack.c.l.b16 %v2113
        %v2151 = vunpack.c.l.b16 %v2127
        %v2152 = vpack.c.b16 %v2145, %v2144
        %v2153 = vpack.c.b16 %v2147, %v2146
        %v2154 = vpack.c.b16 %v2149, %v2148
        %v2155 = vpack.c.b16 %v2151, %v2150
        %v2176 = vunpack.c.l.b16 %v2128
        %v2177 = vunpack.c.l.b16 %v2129
        %v2178 = vunpack.c.l.b16 %v2130
        %v2179 = vunpack.c.l.b16 %v2131
        %v2180 = vunpack.c.l.b16 %v2132
        %v2181 = vunpack.c.l.b16 %v2133
        %v2182 = vunpack.c.l.b16 %v2134
        %v2183 = vunpack.c.l.b16 %v2135
        %v2184 = vunpack.c.l.b16 %v2136
        %v2185 = vunpack.c.l.b16 %v2137
        %v2186 = vunpack.c.l.b16 %v2138
        %v2187 = vunpack.c.l.b16 %v2139
        %v2188 = vunpack.c.l.b16 %v2140
        %v2189 = vunpack.c.l.b16 %v2141
        %v2190 = vunpack.c.l.b16 %v2142
        %v2191 = vunpack.c.l.b16 %v2143
        %v2192 = vpack.c.b16 %v2177, %v2176
        %v2193 = vpack.c.b16 %v2179, %v2178
        %v2194 = vpack.c.b16 %v2181, %v2180
        %v2195 = vpack.c.b16 %v2183, %v2182
        %v2196 = vpack.c.b16 %v2185, %v2184
        %v2197 = vpack.c.b16 %v2187, %v2186
        %v2198 = vpack.c.b16 %v2189, %v2188
        %v2199 = vpack.c.b16 %v2191, %v2190
        %2208 = vmatprep.subr.bf16.mxu0 0
        %2209 = vmatpush1.bf16.msra.mxu0 %v2192
        %2210 = vmatprep.subr.bf16.mxu0 0
        %2211 = vmatpush1.bf16.msra.mxu0 %v2193
        %2212 = vmatprep.subr.bf16.mxu0 0
        %2213 = vmatpush1.bf16.msra.mxu0 %v2194
        %2214 = vmatprep.subr.bf16.mxu0 0
        %2215 = vmatpush1.bf16.msra.mxu0 %v2195
        %2216 = vmatprep.subr.bf16.mxu0 0
        %2217 = vmatpush1.bf16.msra.mxu0 %v2196
        %2218 = vmatprep.subr.bf16.mxu0 0
        %2219 = vmatpush1.bf16.msra.mxu0 %v2197
        %2220 = vmatprep.subr.bf16.mxu0 0
        %2221 = vmatpush1.bf16.msra.mxu0 %v2198
        %2222 = vmatprep.subr.bf16.mxu0 0
        %2223 = vmatpush1.bf16.msra.mxu0 %v2199
        %2224 = vmatprep.subr.bf16.mxu0 0
        %2225 = vmatpush1.bf16.msra.mxu0 0
        %2226 = vmatprep.subr.bf16.mxu0 0
        %2227 = vmatpush1.bf16.msra.mxu0 0
        %2228 = vmatprep.subr.bf16.mxu0 0
        %2229 = vmatpush1.bf16.msra.mxu0 0
        %2230 = vmatprep.subr.bf16.mxu0 0
        %2231 = vmatpush1.bf16.msra.mxu0 0
        %2232 = vmatprep.subr.bf16.mxu0 0
        %2233 = vmatpush1.bf16.msra.mxu0 0
        %2234 = vmatprep.subr.bf16.mxu0 0
        %2235 = vmatpush1.bf16.msra.mxu0 0
        %2236 = vmatprep.subr.bf16.mxu0 0
        %2237 = vmatpush1.bf16.msra.mxu0 0
        %2238 = vmatprep.subr.bf16.mxu0 0
        %2239 = vmatpush1.bf16.msra.mxu0 0
        %2240 = vmatprep.mubr.bf16.mxu0 0
        %2241 = vmatmul.mubr.bf16.gmra.mrb[0].mxu0 %v2152
        %v2242 = vpop.f32.mrb[0].mxu0
        %v2243 = vadd.f32 0.0, %v2242
        %v2244 = vpop.f32.mrb[0].mxu0
        %v2245 = vpop.f32.mrb[0].mxu0
        %v2246 = vadd.f32 0.0, %v2245
        %v2247 = vpop.f32.mrb[0].mxu0
        %2248 = vmatprep.mubr.bf16.mxu0 0
        %2249 = vmatmul.mubr.bf16.gmra.mrb[0].mxu0 %v2153
        %v2250 = vpop.f32.mrb[0].mxu0
        %v2251 = vadd.f32 0.0, %v2250
        %v2252 = vpop.f32.mrb[0].mxu0
        %v2253 = vpop.f32.mrb[0].mxu0
        %v2254 = vadd.f32 0.0, %v2253
        %v2255 = vpop.f32.mrb[0].mxu0
        %2256 = vmatprep.mubr.bf16.mxu0 0
        %2257 = vmatmul.mubr.bf16.gmra.mrb[0].mxu0 %v2154
        %v2258 = vpop.f32.mrb[0].mxu0
        %v2259 = vadd.f32 0.0, %v2258
        %v2260 = vpop.f32.mrb[0].mxu0
        %v2261 = vpop.f32.mrb[0].mxu0
        %v2262 = vadd.f32 0.0, %v2261
        %v2263 = vpop.f32.mrb[0].mxu0
        %2264 = vmatprep.mubr.bf16.mxu0 0
        %2265 = vmatmul.mubr.bf16.gmra.mrb[0].mxu0 %v2155
        %v2266 = vpop.f32.mrb[0].mxu0
        %v2267 = vadd.f32 0.0, %v2266
        %v2268 = vpop.f32.mrb[0].mxu0
        %v2269 = vpop.f32.mrb[0].mxu0
        %v2270 = vadd.f32 0.0, %v2269
        %v2271 = vpop.f32.mrb[0].mxu0
        %2272 = vdwg.mxu0
        %v2273 = vadd.f32 %v1992, %v2243
        %v2274 = vadd.f32 %v1993, %v2246
        %v2275 = vadd.f32 %v1994, %v2251
        %v2276 = vadd.f32 %v1995, %v2254
        %v2277 = vadd.f32 %v1996, %v2259
        %v2278 = vadd.f32 %v1997, %v2262
        %v2279 = vadd.f32 %v1998, %v2267
        %v2280 = vadd.f32 %v1999, %v2270
        %v2281 = vld [vmem:[%s1830] sm:$0xe]
        %v2282 = vld [vmem:[%s1830 + $0x8] sm:$0xe]
        %v2283 = vld [vmem:[%s1830 + $0x10] sm:$0xe]
        %v2284 = vld [vmem:[%s1830 + $0x18] sm:$0xe]
        %v2285 = vld [vmem:[%s1830 + $0x20] sm:$0xe]
        %v2286 = vld [vmem:[%s1830 + $0x28] sm:$0xe]
        %v2287 = vld [vmem:[%s1830 + $0x30] sm:$0xe]
        %v2288 = vld [vmem:[%s1830 + $0x38] sm:$0xe]
        %v2305 = vrot.slane %v2281, 5
        %v2306 = vrot.slane %v2305, 4
        %v2307 = vrot.slane %v2001, 5
        %v2308 = vsel %vm985, %v2306, %v2307
        %v2309 = vrot.slane %v2282, 5
        %v2310 = vrot.slane %v2309, 4
        %v2311 = vrot.slane %v2003, 5
        %v2312 = vsel %vm985, %v2310, %v2311
        %v2313 = vrot.slane %v2283, 5
        %v2314 = vrot.slane %v2313, 4
        %v2315 = vrot.slane %v2005, 5
        %v2316 = vsel %vm985, %v2314, %v2315
        %v2317 = vrot.slane %v2284, 5
        %v2318 = vrot.slane %v2317, 4
        %v2319 = vrot.slane %v2007, 5
        %v2320 = vsel %vm985, %v2318, %v2319
        %v2321 = vrot.slane %v2285, 5
        %v2322 = vrot.slane %v2321, 4
        %v2323 = vrot.slane %v2009, 5
        %v2324 = vsel %vm985, %v2322, %v2323
        %v2325 = vrot.slane %v2286, 5
        %v2326 = vrot.slane %v2325, 4
        %v2327 = vrot.slane %v2011, 5
        %v2328 = vsel %vm985, %v2326, %v2327
        %v2329 = vrot.slane %v2287, 5
        %v2330 = vrot.slane %v2329, 4
        %v2331 = vrot.slane %v2013, 5
        %v2332 = vsel %vm985, %v2330, %v2331
        %v2333 = vrot.slane %v2288, 5
        %v2334 = vrot.slane %v2333, 4
        %v2335 = vrot.slane %v2015, 5
        %v2336 = vsel %vm985, %v2334, %v2335
        %v2337 = vld [vmem:[#allocation7 + $0x200] sm:$0xf]
        %v2338 = vld [vmem:[#allocation7 + $0x204] sm:$0xf]
        %v2339 = vld [vmem:[#allocation7 + $0x208] sm:$0xf]
        %v2340 = vld [vmem:[#allocation7 + $0x20c] sm:$0xf]
        %v2341 = vld [vmem:[#allocation7 + $0x210] sm:$0xf]
        %v2342 = vld [vmem:[#allocation7 + $0x214] sm:$0xf]
        %v2343 = vld [vmem:[#allocation7 + $0x218] sm:$0xf]
        %v2344 = vld [vmem:[#allocation7 + $0x21c] sm:$0xf]
        %v2345 = vld [vmem:[#allocation7 + $0x220] sm:$0xf]
        %v2346 = vld [vmem:[#allocation7 + $0x224] sm:$0xf]
        %v2347 = vld [vmem:[#allocation7 + $0x228] sm:$0xf]
        %v2348 = vld [vmem:[#allocation7 + $0x22c] sm:$0xf]
        %v2349 = vld [vmem:[#allocation7 + $0x230] sm:$0xf]
        %v2350 = vld [vmem:[#allocation7 + $0x234] sm:$0xf]
        %v2351 = vld [vmem:[#allocation7 + $0x238] sm:$0xf]
        %v2352 = vld [vmem:[#allocation7 + $0x23c] sm:$0xf]
        %v2353 = vunpack.c.l.b16 %v2308
        %v2354 = vunpack.c.l.b16 %v2312
        %v2355 = vunpack.c.l.b16 %v2316
        %v2356 = vunpack.c.l.b16 %v2320
        %v2357 = vunpack.c.l.b16 %v2324
        %v2358 = vunpack.c.l.b16 %v2328
        %v2359 = vunpack.c.l.b16 %v2332
        %v2360 = vunpack.c.l.b16 %v2336
        %v2361 = vpack.c.b16 %v2354, %v2353
        %v2362 = vpack.c.b16 %v2356, %v2355
        %v2363 = vpack.c.b16 %v2358, %v2357
        %v2364 = vpack.c.b16 %v2360, %v2359
        %v2385 = vunpack.c.l.b16 %v2337
        %v2386 = vunpack.c.l.b16 %v2338
        %v2387 = vunpack.c.l.b16 %v2339
        %v2388 = vunpack.c.l.b16 %v2340
        %v2389 = vunpack.c.l.b16 %v2341
        %v2390 = vunpack.c.l.b16 %v2342
        %v2391 = vunpack.c.l.b16 %v2343
        %v2392 = vunpack.c.l.b16 %v2344
        %v2393 = vunpack.c.l.b16 %v2345
        %v2394 = vunpack.c.l.b16 %v2346
        %v2395 = vunpack.c.l.b16 %v2347
        %v2396 = vunpack.c.l.b16 %v2348
        %v2397 = vunpack.c.l.b16 %v2349
        %v2398 = vunpack.c.l.b16 %v2350
        %v2399 = vunpack.c.l.b16 %v2351
        %v2400 = vunpack.c.l.b16 %v2352
        %v2401 = vpack.c.b16 %v2386, %v2385
        %v2402 = vpack.c.b16 %v2388, %v2387
        %v2403 = vpack.c.b16 %v2390, %v2389
        %v2404 = vpack.c.b16 %v2392, %v2391
        %v2405 = vpack.c.b16 %v2394, %v2393
        %v2406 = vpack.c.b16 %v2396, %v2395
        %v2407 = vpack.c.b16 %v2398, %v2397
        %v2408 = vpack.c.b16 %v2400, %v2399
        %2417 = vmatprep.subr.bf16.mxu0 0
        %2418 = vmatpush1.bf16.msra.mxu0 %v2401
        %2419 = vmatprep.subr.bf16.mxu0 0
        %2420 = vmatpush1.bf16.msra.mxu0 %v2402
        %2421 = vmatprep.subr.bf16.mxu0 0
        %2422 = vmatpush1.bf16.msra.mxu0 %v2403
        %2423 = vmatprep.subr.bf16.mxu0 0
        %2424 = vmatpush1.bf16.msra.mxu0 %v2404
        %2425 = vmatprep.subr.bf16.mxu0 0
        %2426 = vmatpush1.bf16.msra.mxu0 %v2405
        %2427 = vmatprep.subr.bf16.mxu0 0
        %2428 = vmatpush1.bf16.msra.mxu0 %v2406
        %2429 = vmatprep.subr.bf16.mxu0 0
        %2430 = vmatpush1.bf16.msra.mxu0 %v2407
        %2431 = vmatprep.subr.bf16.mxu0 0
        %2432 = vmatpush1.bf16.msra.mxu0 %v2408
        %2433 = vmatprep.subr.bf16.mxu0 0
        %2434 = vmatpush1.bf16.msra.mxu0 0
        %2435 = vmatprep.subr.bf16.mxu0 0
        %2436 = vmatpush1.bf16.msra.mxu0 0
        %2437 = vmatprep.subr.bf16.mxu0 0
        %2438 = vmatpush1.bf16.msra.mxu0 0
        %2439 = vmatprep.subr.bf16.mxu0 0
        %2440 = vmatpush1.bf16.msra.mxu0 0
        %2441 = vmatprep.subr.bf16.mxu0 0
        %2442 = vmatpush1.bf16.msra.mxu0 0
        %2443 = vmatprep.subr.bf16.mxu0 0
        %2444 = vmatpush1.bf16.msra.mxu0 0
        %2445 = vmatprep.subr.bf16.mxu0 0
        %2446 = vmatpush1.bf16.msra.mxu0 0
        %2447 = vmatprep.subr.bf16.mxu0 0
        %2448 = vmatpush1.bf16.msra.mxu0 0
        %2449 = vmatprep.mubr.bf16.mxu0 0
        %2450 = vmatmul.mubr.bf16.gmra.mrb[0].mxu0 %v2361
        %v2451 = vpop.f32.mrb[0].mxu0
        %v2452 = vadd.f32 0.0, %v2451
        %v2453 = vpop.f32.mrb[0].mxu0
        %v2454 = vpop.f32.mrb[0].mxu0
        %v2455 = vadd.f32 0.0, %v2454
        %v2456 = vpop.f32.mrb[0].mxu0
        %2457 = vmatprep.mubr.bf16.mxu0 0
        %2458 = vmatmul.mubr.bf16.gmra.mrb[0].mxu0 %v2362
        %v2459 = vpop.f32.mrb[0].mxu0
        %v2460 = vadd.f32 0.0, %v2459
        %v2461 = vpop.f32.mrb[0].mxu0
        %v2462 = vpop.f32.mrb[0].mxu0
        %v2463 = vadd.f32 0.0, %v2462
        %v2464 = vpop.f32.mrb[0].mxu0
        %2465 = vmatprep.mubr.bf16.mxu0 0
        %2466 = vmatmul.mubr.bf16.gmra.mrb[0].mxu0 %v2363
        %v2467 = vpop.f32.mrb[0].mxu0
        %v2468 = vadd.f32 0.0, %v2467
        %v2469 = vpop.f32.mrb[0].mxu0
        %v2470 = vpop.f32.mrb[0].mxu0
        %v2471 = vadd.f32 0.0, %v2470
        %v2472 = vpop.f32.mrb[0].mxu0
        %2473 = vmatprep.mubr.bf16.mxu0 0
        %2474 = vmatmul.mubr.bf16.gmra.mrb[0].mxu0 %v2364
        %v2475 = vpop.f32.mrb[0].mxu0
        %v2476 = vadd.f32 0.0, %v2475
        %v2477 = vpop.f32.mrb[0].mxu0
        %v2478 = vpop.f32.mrb[0].mxu0
        %v2479 = vadd.f32 0.0, %v2478
        %v2480 = vpop.f32.mrb[0].mxu0
        %2481 = vdwg.mxu0
        %v2482 = vadd.f32 %v2273, %v2452
        %v2483 = vadd.f32 %v2274, %v2455
        %v2484 = vadd.f32 %v2275, %v2460
        %v2485 = vadd.f32 %v2276, %v2463
        %v2486 = vadd.f32 %v2277, %v2468
        %v2487 = vadd.f32 %v2278, %v2471
        %v2488 = vadd.f32 %v2279, %v2476
        %v2489 = vadd.f32 %v2280, %v2479
        %v2490 = vld [vmem:[%s2] sm:$0x1]
        %v2492 = vlaneseq
        %v2493 = vshrl.u32 %v2492, 7
        %v2494 = vsub.s32 0, %v2493
        %v2495 = vrot.slane %v2490, %v2494
        %v2497 = vadd.f32 %v2482, %v2495
        %v2498 = vadd.f32 %v2483, %v2495
        %v2499 = vadd.f32 %v2484, %v2495
        %v2500 = vadd.f32 %v2485, %v2495
        %v2501 = vadd.f32 %v2486, %v2495
        %v2502 = vadd.f32 %v2487, %v2495
        %v2503 = vadd.f32 %v2488, %v2495
        %v2504 = vadd.f32 %v2489, %v2495
        %v2505 = vmax.f32 %v2497, 0.0
        %v2506 = vmax.f32 %v2498, 0.0
        %v2507 = vmax.f32 %v2499, 0.0
        %v2508 = vmax.f32 %v2500, 0.0
        %v2509 = vmax.f32 %v2501, 0.0
        %v2510 = vmax.f32 %v2502, 0.0
        %v2511 = vmax.f32 %v2503, 0.0
        %v2512 = vmax.f32 %v2504, 0.0
        %v2513 = vpack.c.bf16 %v2505, %v2505
        %v2514 = vpack.c.bf16 %v2506, %v2506
        %v2515 = vpack.c.bf16 %v2507, %v2507
        %v2516 = vpack.c.bf16 %v2508, %v2508
        %v2517 = vpack.c.bf16 %v2509, %v2509
        %v2518 = vpack.c.bf16 %v2510, %v2510
        %v2519 = vpack.c.bf16 %v2511, %v2511
        %v2520 = vpack.c.bf16 %v2512, %v2512
        %v2529 = vunpack.c.l.b16 %v2513
        %v2530 = vunpack.c.l.b16 %v2514
        %v2531 = vunpack.c.l.b16 %v2515
        %v2532 = vunpack.c.l.b16 %v2516
        %v2533 = vunpack.c.l.b16 %v2517
        %v2534 = vunpack.c.l.b16 %v2518
        %v2535 = vunpack.c.l.b16 %v2519
        %v2536 = vunpack.c.l.b16 %v2520
        %v2537 = vpack.c.b16 %v2529, %v2529
        %v2538 = vpack.c.b16 %v2530, %v2530
        %v2539 = vpack.c.b16 %v2531, %v2531
        %v2540 = vpack.c.b16 %v2532, %v2532
        %v2541 = vpack.c.b16 %v2533, %v2533
        %v2542 = vpack.c.b16 %v2534, %v2534
        %v2543 = vpack.c.b16 %v2535, %v2535
        %v2544 = vpack.c.b16 %v2536, %v2536
        %v2546 = vshrl.u32 %v2537, 16
        %v2548 = vrot.slane %v2546, 7
        %v2549 = vshll.u32 %v2537, 16
        %v2551 = vor.u32 %v2548, %v2549
        %v2552 = vrot.slane %v2548, 4
        %v2554 = vshrl.u32 %v2538, 16
        %v2556 = vrot.slane %v2554, 7
        %v2557 = vshll.u32 %v2538, 16
        %v2559 = vor.u32 %v2556, %v2557
        %v2560 = vrot.slane %v2556, 4
        %v2562 = vshrl.u32 %v2539, 16
        %v2564 = vrot.slane %v2562, 7
        %v2565 = vshll.u32 %v2539, 16
        %v2567 = vor.u32 %v2564, %v2565
        %v2568 = vrot.slane %v2564, 4
        %v2570 = vshrl.u32 %v2540, 16
        %v2572 = vrot.slane %v2570, 7
        %v2573 = vshll.u32 %v2540, 16
        %v2575 = vor.u32 %v2572, %v2573
        %v2576 = vrot.slane %v2572, 4
        %v2578 = vshrl.u32 %v2541, 16
        %v2580 = vrot.slane %v2578, 7
        %v2581 = vshll.u32 %v2541, 16
        %v2583 = vor.u32 %v2580, %v2581
        %v2584 = vrot.slane %v2580, 4
        %v2586 = vshrl.u32 %v2542, 16
        %v2588 = vrot.slane %v2586, 7
        %v2589 = vshll.u32 %v2542, 16
        %v2591 = vor.u32 %v2588, %v2589
        %v2592 = vrot.slane %v2588, 4
        %v2594 = vshrl.u32 %v2543, 16
        %v2596 = vrot.slane %v2594, 7
        %v2597 = vshll.u32 %v2543, 16
        %v2599 = vor.u32 %v2596, %v2597
        %v2600 = vrot.slane %v2596, 4
        %v2602 = vshrl.u32 %v2544, 16
        %v2604 = vrot.slane %v2602, 7
        %v2605 = vshll.u32 %v2544, 16
        %v2607 = vor.u32 %v2604, %v2605
        %v2608 = vrot.slane %v2604, 4
        %s2625 = scalar_lea.vmem [#allocation3], 8
        %v2626 = vld [vmem:[%s2625] sm:$0xf]
        %v2627 = vsel %vm478, %v2551, %v2626
        %2628 = vst [vmem:[%s2625] sm:$0xf] %v2627
        %v2629 = vld [vmem:[%s2625 + $0x4] sm:$0x1]
        %v2630 = vsel %vm484, %v2552, %v2629
        %2631 = vst [vmem:[%s2625 + $0x4] sm:$0x1] %v2630
        %v2632 = vld [vmem:[%s2625 + $0x8] sm:$0xf]
        %v2633 = vsel %vm478, %v2559, %v2632
        %2634 = vst [vmem:[%s2625 + $0x8] sm:$0xf] %v2633
        %v2635 = vld [vmem:[%s2625 + $0xc] sm:$0x1]
        %v2636 = vsel %vm484, %v2560, %v2635
        %2637 = vst [vmem:[%s2625 + $0xc] sm:$0x1] %v2636
        %v2638 = vld [vmem:[%s2625 + $0x10] sm:$0xf]
        %v2639 = vsel %vm478, %v2567, %v2638
        %2640 = vst [vmem:[%s2625 + $0x10] sm:$0xf] %v2639
        %v2641 = vld [vmem:[%s2625 + $0x14] sm:$0x1]
        %v2642 = vsel %vm484, %v2568, %v2641
        %2643 = vst [vmem:[%s2625 + $0x14] sm:$0x1] %v2642
        %v2644 = vld [vmem:[%s2625 + $0x18] sm:$0xf]
        %v2645 = vsel %vm478, %v2575, %v2644
        %2646 = vst [vmem:[%s2625 + $0x18] sm:$0xf] %v2645
        %v2647 = vld [vmem:[%s2625 + $0x1c] sm:$0x1]
        %v2648 = vsel %vm484, %v2576, %v2647
        %2649 = vst [vmem:[%s2625 + $0x1c] sm:$0x1] %v2648
        %v2650 = vld [vmem:[%s2625 + $0x20] sm:$0xf]
        %v2651 = vsel %vm478, %v2583, %v2650
        %2652 = vst [vmem:[%s2625 + $0x20] sm:$0xf] %v2651
        %v2653 = vld [vmem:[%s2625 + $0x24] sm:$0x1]
        %v2654 = vsel %vm484, %v2584, %v2653
        %2655 = vst [vmem:[%s2625 + $0x24] sm:$0x1] %v2654
        %v2656 = vld [vmem:[%s2625 + $0x28] sm:$0xf]
        %v2657 = vsel %vm478, %v2591, %v2656
        %2658 = vst [vmem:[%s2625 + $0x28] sm:$0xf] %v2657
        %v2659 = vld [vmem:[%s2625 + $0x2c] sm:$0x1]
        %v2660 = vsel %vm484, %v2592, %v2659
        %2661 = vst [vmem:[%s2625 + $0x2c] sm:$0x1] %v2660
        %v2662 = vld [vmem:[%s2625 + $0x30] sm:$0xf]
        %v2663 = vsel %vm478, %v2599, %v2662
        %2664 = vst [vmem:[%s2625 + $0x30] sm:$0xf] %v2663
        %v2665 = vld [vmem:[%s2625 + $0x34] sm:$0x1]
        %v2666 = vsel %vm484, %v2600, %v2665
        %2667 = vst [vmem:[%s2625 + $0x34] sm:$0x1] %v2666
        %v2668 = vld [vmem:[%s2625 + $0x38] sm:$0xf]
        %v2669 = vsel %vm478, %v2607, %v2668
        %2670 = vst [vmem:[%s2625 + $0x38] sm:$0xf] %v2669
        %v2671 = vld [vmem:[%s2625 + $0x3c] sm:$0x1]
        %v2672 = vsel %vm484, %v2608, %v2671
        %2673 = vst [vmem:[%s2625 + $0x3c] sm:$0x1] %v2672
        %v2674 = vld [vmem:[#allocation3] sm:$0xf]
        %v2675 = vld [vmem:[#allocation3 + $0x8] sm:$0xf]
        %v2676 = vld [vmem:[#allocation3 + $0x10] sm:$0xf]
        %v2677 = vld [vmem:[#allocation3 + $0x18] sm:$0xf]
        %v2678 = vld [vmem:[#allocation3 + $0x20] sm:$0xf]
        %v2679 = vld [vmem:[#allocation3 + $0x28] sm:$0xf]
        %v2680 = vld [vmem:[#allocation3 + $0x30] sm:$0xf]
        %v2681 = vld [vmem:[#allocation3 + $0x38] sm:$0xf]
        %v2682 = vld [vmem:[#allocation9] sm:$0xf]
        %v2683 = vld [vmem:[#allocation9 + $0x4] sm:$0xf]
        %v2684 = vld [vmem:[#allocation9 + $0x8] sm:$0xf]
        %v2685 = vld [vmem:[#allocation9 + $0xc] sm:$0xf]
        %v2686 = vld [vmem:[#allocation9 + $0x10] sm:$0xf]
        %v2687 = vld [vmem:[#allocation9 + $0x14] sm:$0xf]
        %v2688 = vld [vmem:[#allocation9 + $0x18] sm:$0xf]
        %v2689 = vld [vmem:[#allocation9 + $0x1c] sm:$0xf]
        %v2690 = vld [vmem:[#allocation9 + $0x20] sm:$0xf]
        %v2691 = vld [vmem:[#allocation9 + $0x24] sm:$0xf]
        %v2692 = vld [vmem:[#allocation9 + $0x28] sm:$0xf]
        %v2693 = vld [vmem:[#allocation9 + $0x2c] sm:$0xf]
        %v2694 = vld [vmem:[#allocation9 + $0x30] sm:$0xf]
        %v2695 = vld [vmem:[#allocation9 + $0x34] sm:$0xf]
        %v2696 = vld [vmem:[#allocation9 + $0x38] sm:$0xf]
        %v2697 = vld [vmem:[#allocation9 + $0x3c] sm:$0xf]
        %v2698 = vld [vmem:[#allocation3 + $0x4] sm:$0x1]
        %v2699 = vld [vmem:[#allocation3 + $0xc] sm:$0x1]
        %v2700 = vld [vmem:[#allocation3 + $0x14] sm:$0x1]
        %v2701 = vld [vmem:[#allocation3 + $0x1c] sm:$0x1]
        %v2702 = vld [vmem:[#allocation3 + $0x24] sm:$0x1]
        %v2703 = vld [vmem:[#allocation3 + $0x2c] sm:$0x1]
        %v2704 = vld [vmem:[#allocation3 + $0x34] sm:$0x1]
        %v2705 = vld [vmem:[#allocation3 + $0x3c] sm:$0x1]
        %v2707 = vshrl.u32 %v2674, 16
        %v2709 = vrot.slane %v2707, 4
        %v2710 = vshll.u32 %v2674, 16
        %v2712 = vrot.slane %v2710, 5
        %v2713 = vor.u32 %v2709, %v2712
        %v2714 = vrot.slane %v2713, 4
        %v2716 = vshll.u32 %v2698, 16
        %v2718 = vrot.slane %v2716, 5
        %v2719 = vsel %vm564, %v2714, %v2718
        %v2721 = vshrl.u32 %v2675, 16
        %v2723 = vrot.slane %v2721, 4
        %v2724 = vshll.u32 %v2675, 16
        %v2726 = vrot.slane %v2724, 5
        %v2727 = vor.u32 %v2723, %v2726
        %v2728 = vrot.slane %v2727, 4
        %v2730 = vshll.u32 %v2699, 16
        %v2732 = vrot.slane %v2730, 5
        %v2733 = vsel %vm564, %v2728, %v2732
        %v2735 = vshrl.u32 %v2676, 16
        %v2737 = vrot.slane %v2735, 4
        %v2738 = vshll.u32 %v2676, 16
        %v2740 = vrot.slane %v2738, 5
        %v2741 = vor.u32 %v2737, %v2740
        %v2742 = vrot.slane %v2741, 4
        %v2744 = vshll.u32 %v2700, 16
        %v2746 = vrot.slane %v2744, 5
        %v2747 = vsel %vm564, %v2742, %v2746
        %v2749 = vshrl.u32 %v2677, 16
        %v2751 = vrot.slane %v2749, 4
        %v2752 = vshll.u32 %v2677, 16
        %v2754 = vrot.slane %v2752, 5
        %v2755 = vor.u32 %v2751, %v2754
        %v2756 = vrot.slane %v2755, 4
        %v2758 = vshll.u32 %v2701, 16
        %v2760 = vrot.slane %v2758, 5
        %v2761 = vsel %vm564, %v2756, %v2760
        %v2763 = vshrl.u32 %v2678, 16
        %v2765 = vrot.slane %v2763, 4
        %v2766 = vshll.u32 %v2678, 16
        %v2768 = vrot.slane %v2766, 5
        %v2769 = vor.u32 %v2765, %v2768
        %v2770 = vrot.slane %v2769, 4
        %v2772 = vshll.u32 %v2702, 16
        %v2774 = vrot.slane %v2772, 5
        %v2775 = vsel %vm564, %v2770, %v2774
        %v2777 = vshrl.u32 %v2679, 16
        %v2779 = vrot.slane %v2777, 4
        %v2780 = vshll.u32 %v2679, 16
        %v2782 = vrot.slane %v2780, 5
        %v2783 = vor.u32 %v2779, %v2782
        %v2784 = vrot.slane %v2783, 4
        %v2786 = vshll.u32 %v2703, 16
        %v2788 = vrot.slane %v2786, 5
        %v2789 = vsel %vm564, %v2784, %v2788
        %v2791 = vshrl.u32 %v2680, 16
        %v2793 = vrot.slane %v2791, 4
        %v2794 = vshll.u32 %v2680, 16
        %v2796 = vrot.slane %v2794, 5
        %v2797 = vor.u32 %v2793, %v2796
        %v2798 = vrot.slane %v2797, 4
        %v2800 = vshll.u32 %v2704, 16
        %v2802 = vrot.slane %v2800, 5
        %v2803 = vsel %vm564, %v2798, %v2802
        %v2805 = vshrl.u32 %v2681, 16
        %v2807 = vrot.slane %v2805, 4
        %v2808 = vshll.u32 %v2681, 16
        %v2810 = vrot.slane %v2808, 5
        %v2811 = vor.u32 %v2807, %v2810
        %v2812 = vrot.slane %v2811, 4
        %v2814 = vshll.u32 %v2705, 16
        %v2816 = vrot.slane %v2814, 5
        %v2817 = vsel %vm564, %v2812, %v2816
        %v2818 = vld [vmem:[#allocation9 + $0x40] sm:$0xf]
        %v2819 = vld [vmem:[#allocation9 + $0x44] sm:$0xf]
        %v2820 = vld [vmem:[#allocation9 + $0x48] sm:$0xf]
        %v2821 = vld [vmem:[#allocation9 + $0x4c] sm:$0xf]
        %v2822 = vld [vmem:[#allocation9 + $0x50] sm:$0xf]
        %v2823 = vld [vmem:[#allocation9 + $0x54] sm:$0xf]
        %v2824 = vld [vmem:[#allocation9 + $0x58] sm:$0xf]
        %v2825 = vld [vmem:[#allocation9 + $0x5c] sm:$0xf]
        %v2826 = vld [vmem:[#allocation9 + $0x60] sm:$0xf]
        %v2827 = vld [vmem:[#allocation9 + $0x64] sm:$0xf]
        %v2828 = vld [vmem:[#allocation9 + $0x68] sm:$0xf]
        %v2829 = vld [vmem:[#allocation9 + $0x6c] sm:$0xf]
        %v2830 = vld [vmem:[#allocation9 + $0x70] sm:$0xf]
        %v2831 = vld [vmem:[#allocation9 + $0x74] sm:$0xf]
        %v2832 = vld [vmem:[#allocation9 + $0x78] sm:$0xf]
        %v2833 = vld [vmem:[#allocation9 + $0x7c] sm:$0xf]
        %v2834 = vunpack.c.l.b16 %v2719
        %v2835 = vunpack.c.l.b16 %v2733
        %v2836 = vunpack.c.l.b16 %v2747
        %v2837 = vunpack.c.l.b16 %v2761
        %v2838 = vunpack.c.l.b16 %v2775
        %v2839 = vunpack.c.l.b16 %v2789
        %v2840 = vunpack.c.l.b16 %v2803
        %v2841 = vunpack.c.l.b16 %v2817
        %v2842 = vpack.c.b16 %v2835, %v2834
        %v2843 = vpack.c.b16 %v2837, %v2836
        %v2844 = vpack.c.b16 %v2839, %v2838
        %v2845 = vpack.c.b16 %v2841, %v2840
        %v2866 = vunpack.c.l.b16 %v2818
        %v2867 = vunpack.c.l.b16 %v2819
        %v2868 = vunpack.c.l.b16 %v2820
        %v2869 = vunpack.c.l.b16 %v2821
        %v2870 = vunpack.c.l.b16 %v2822
        %v2871 = vunpack.c.l.b16 %v2823
        %v2872 = vunpack.c.l.b16 %v2824
        %v2873 = vunpack.c.l.b16 %v2825
        %v2874 = vunpack.c.l.b16 %v2826
        %v2875 = vunpack.c.l.b16 %v2827
        %v2876 = vunpack.c.l.b16 %v2828
        %v2877 = vunpack.c.l.b16 %v2829
        %v2878 = vunpack.c.l.b16 %v2830
        %v2879 = vunpack.c.l.b16 %v2831
        %v2880 = vunpack.c.l.b16 %v2832
        %v2881 = vunpack.c.l.b16 %v2833
        %v2882 = vpack.c.b16 %v2867, %v2866
        %v2883 = vpack.c.b16 %v2869, %v2868
        %v2884 = vpack.c.b16 %v2871, %v2870
        %v2885 = vpack.c.b16 %v2873, %v2872
        %v2886 = vpack.c.b16 %v2875, %v2874
        %v2887 = vpack.c.b16 %v2877, %v2876
        %v2888 = vpack.c.b16 %v2879, %v2878
        %v2889 = vpack.c.b16 %v2881, %v2880
        %2898 = vmatprep.subr.bf16.mxu0 0
        %2899 = vmatpush1.bf16.msra.mxu0 %v2882
        %2900 = vmatprep.subr.bf16.mxu0 0
        %2901 = vmatpush1.bf16.msra.mxu0 %v2883
        %2902 = vmatprep.subr.bf16.mxu0 0
        %2903 = vmatpush1.bf16.msra.mxu0 %v2884
        %2904 = vmatprep.subr.bf16.mxu0 0
        %2905 = vmatpush1.bf16.msra.mxu0 %v2885
        %2906 = vmatprep.subr.bf16.mxu0 0
        %2907 = vmatpush1.bf16.msra.mxu0 %v2886
        %2908 = vmatprep.subr.bf16.mxu0 0
        %2909 = vmatpush1.bf16.msra.mxu0 %v2887
        %2910 = vmatprep.subr.bf16.mxu0 0
        %2911 = vmatpush1.bf16.msra.mxu0 %v2888
        %2912 = vmatprep.subr.bf16.mxu0 0
        %2913 = vmatpush1.bf16.msra.mxu0 %v2889
        %2914 = vmatprep.subr.bf16.mxu0 0
        %2915 = vmatpush1.bf16.msra.mxu0 0
        %2916 = vmatprep.subr.bf16.mxu0 0
        %2917 = vmatpush1.bf16.msra.mxu0 0
        %2918 = vmatprep.subr.bf16.mxu0 0
        %2919 = vmatpush1.bf16.msra.mxu0 0
        %2920 = vmatprep.subr.bf16.mxu0 0
        %2921 = vmatpush1.bf16.msra.mxu0 0
        %2922 = vmatprep.subr.bf16.mxu0 0
        %2923 = vmatpush1.bf16.msra.mxu0 0
        %2924 = vmatprep.subr.bf16.mxu0 0
        %2925 = vmatpush1.bf16.msra.mxu0 0
        %2926 = vmatprep.subr.bf16.mxu0 0
        %2927 = vmatpush1.bf16.msra.mxu0 0
        %2928 = vmatprep.subr.bf16.mxu0 0
        %2929 = vmatpush1.bf16.msra.mxu0 0
        %2930 = vmatprep.mubr.bf16.mxu0 0
        %2931 = vmatmul.mubr.bf16.gmra.mrb[0].mxu0 %v2842
        %v2932 = vpop.f32.mrb[0].mxu0
        %v2933 = vadd.f32 0.0, %v2932
        %v2934 = vpop.f32.mrb[0].mxu0
        %v2935 = vpop.f32.mrb[0].mxu0
        %v2936 = vadd.f32 0.0, %v2935
        %v2937 = vpop.f32.mrb[0].mxu0
        %2938 = vmatprep.mubr.bf16.mxu0 0
        %2939 = vmatmul.mubr.bf16.gmra.mrb[0].mxu0 %v2843
        %v2940 = vpop.f32.mrb[0].mxu0
        %v2941 = vadd.f32 0.0, %v2940
        %v2942 = vpop.f32.mrb[0].mxu0
        %v2943 = vpop.f32.mrb[0].mxu0
        %v2944 = vadd.f32 0.0, %v2943
        %v2945 = vpop.f32.mrb[0].mxu0
        %2946 = vmatprep.mubr.bf16.mxu0 0
        %2947 = vmatmul.mubr.bf16.gmra.mrb[0].mxu0 %v2844
        %v2948 = vpop.f32.mrb[0].mxu0
        %v2949 = vadd.f32 0.0, %v2948
        %v2950 = vpop.f32.mrb[0].mxu0
        %v2951 = vpop.f32.mrb[0].mxu0
        %v2952 = vadd.f32 0.0, %v2951
        %v2953 = vpop.f32.mrb[0].mxu0
        %2954 = vmatprep.mubr.bf16.mxu0 0
        %2955 = vmatmul.mubr.bf16.gmra.mrb[0].mxu0 %v2845
        %v2956 = vpop.f32.mrb[0].mxu0
        %v2957 = vadd.f32 0.0, %v2956
        %v2958 = vpop.f32.mrb[0].mxu0
        %v2959 = vpop.f32.mrb[0].mxu0
        %v2960 = vadd.f32 0.0, %v2959
        %v2961 = vpop.f32.mrb[0].mxu0
        %2962 = vdwg.mxu0
        %v2971 = vunpack.c.l.b16 %v2674
        %v2972 = vunpack.c.l.b16 %v2675
        %v2973 = vunpack.c.l.b16 %v2676
        %v2974 = vunpack.c.l.b16 %v2677
        %v2975 = vunpack.c.l.b16 %v2678
        %v2976 = vunpack.c.l.b16 %v2679
        %v2977 = vunpack.c.l.b16 %v2680
        %v2978 = vunpack.c.l.b16 %v2681
        %v2979 = vpack.c.b16 %v2972, %v2971
        %v2980 = vpack.c.b16 %v2974, %v2973
        %v2981 = vpack.c.b16 %v2976, %v2975
        %v2982 = vpack.c.b16 %v2978, %v2977
        %v3003 = vunpack.c.l.b16 %v2682
        %v3004 = vunpack.c.l.b16 %v2683
        %v3005 = vunpack.c.l.b16 %v2684
        %v3006 = vunpack.c.l.b16 %v2685
        %v3007 = vunpack.c.l.b16 %v2686
        %v3008 = vunpack.c.l.b16 %v2687
        %v3009 = vunpack.c.l.b16 %v2688
        %v3010 = vunpack.c.l.b16 %v2689
        %v3011 = vunpack.c.l.b16 %v2690
        %v3012 = vunpack.c.l.b16 %v2691
        %v3013 = vunpack.c.l.b16 %v2692
        %v3014 = vunpack.c.l.b16 %v2693
        %v3015 = vunpack.c.l.b16 %v2694
        %v3016 = vunpack.c.l.b16 %v2695
        %v3017 = vunpack.c.l.b16 %v2696
        %v3018 = vunpack.c.l.b16 %v2697
        %v3019 = vpack.c.b16 %v3004, %v3003
        %v3020 = vpack.c.b16 %v3006, %v3005
        %v3021 = vpack.c.b16 %v3008, %v3007
        %v3022 = vpack.c.b16 %v3010, %v3009
        %v3023 = vpack.c.b16 %v3012, %v3011
        %v3024 = vpack.c.b16 %v3014, %v3013
        %v3025 = vpack.c.b16 %v3016, %v3015
        %v3026 = vpack.c.b16 %v3018, %v3017
        %3035 = vmatprep.subr.bf16.mxu0 0
        %3036 = vmatpush1.bf16.msra.mxu0 %v3019
        %3037 = vmatprep.subr.bf16.mxu0 0
        %3038 = vmatpush1.bf16.msra.mxu0 %v3020
        %3039 = vmatprep.subr.bf16.mxu0 0
        %3040 = vmatpush1.bf16.msra.mxu0 %v3021
        %3041 = vmatprep.subr.bf16.mxu0 0
        %3042 = vmatpush1.bf16.msra.mxu0 %v3022
        %3043 = vmatprep.subr.bf16.mxu0 0
        %3044 = vmatpush1.bf16.msra.mxu0 %v3023
        %3045 = vmatprep.subr.bf16.mxu0 0
        %3046 = vmatpush1.bf16.msra.mxu0 %v3024
        %3047 = vmatprep.subr.bf16.mxu0 0
        %3048 = vmatpush1.bf16.msra.mxu0 %v3025
        %3049 = vmatprep.subr.bf16.mxu0 0
        %3050 = vmatpush1.bf16.msra.mxu0 %v3026
        %3051 = vmatprep.subr.bf16.mxu0 0
        %3052 = vmatpush1.bf16.msra.mxu0 0
        %3053 = vmatprep.subr.bf16.mxu0 0
        %3054 = vmatpush1.bf16.msra.mxu0 0
        %3055 = vmatprep.subr.bf16.mxu0 0
        %3056 = vmatpush1.bf16.msra.mxu0 0
        %3057 = vmatprep.subr.bf16.mxu0 0
        %3058 = vmatpush1.bf16.msra.mxu0 0
        %3059 = vmatprep.subr.bf16.mxu0 0
        %3060 = vmatpush1.bf16.msra.mxu0 0
        %3061 = vmatprep.subr.bf16.mxu0 0
        %3062 = vmatpush1.bf16.msra.mxu0 0
        %3063 = vmatprep.subr.bf16.mxu0 0
        %3064 = vmatpush1.bf16.msra.mxu0 0
        %3065 = vmatprep.subr.bf16.mxu0 0
        %3066 = vmatpush1.bf16.msra.mxu0 0
        %3067 = vmatprep.mubr.bf16.mxu0 0
        %3068 = vmatmul.mubr.bf16.gmra.mrb[0].mxu0 %v2979
        %v3069 = vpop.f32.mrb[0].mxu0
        %v3070 = vadd.f32 %v2933, %v3069
        %v3071 = vpop.f32.mrb[0].mxu0
        %v3072 = vpop.f32.mrb[0].mxu0
        %v3073 = vadd.f32 %v2936, %v3072
        %v3074 = vpop.f32.mrb[0].mxu0
        %3075 = vmatprep.mubr.bf16.mxu0 0
        %3076 = vmatmul.mubr.bf16.gmra.mrb[0].mxu0 %v2980
        %v3077 = vpop.f32.mrb[0].mxu0
        %v3078 = vadd.f32 %v2941, %v3077
        %v3079 = vpop.f32.mrb[0].mxu0
        %v3080 = vpop.f32.mrb[0].mxu0
        %v3081 = vadd.f32 %v2944, %v3080
        %v3082 = vpop.f32.mrb[0].mxu0
        %3083 = vmatprep.mubr.bf16.mxu0 0
        %3084 = vmatmul.mubr.bf16.gmra.mrb[0].mxu0 %v2981
        %v3085 = vpop.f32.mrb[0].mxu0
        %v3086 = vadd.f32 %v2949, %v3085
        %v3087 = vpop.f32.mrb[0].mxu0
        %v3088 = vpop.f32.mrb[0].mxu0
        %v3089 = vadd.f32 %v2952, %v3088
        %v3090 = vpop.f32.mrb[0].mxu0
        %3091 = vmatprep.mubr.bf16.mxu0 0
        %3092 = vmatmul.mubr.bf16.gmra.mrb[0].mxu0 %v2982
        %v3093 = vpop.f32.mrb[0].mxu0
        %v3094 = vadd.f32 %v2957, %v3093
        %v3095 = vpop.f32.mrb[0].mxu0
        %v3096 = vpop.f32.mrb[0].mxu0
        %v3097 = vadd.f32 %v2960, %v3096
        %v3098 = vpop.f32.mrb[0].mxu0
        %3099 = vdwg.mxu0
        %v3100 = vld [vmem:[#allocation3] sm:$0xe]
        %v3101 = vld [vmem:[#allocation3 + $0x8] sm:$0xe]
        %v3102 = vld [vmem:[#allocation3 + $0x10] sm:$0xe]
        %v3103 = vld [vmem:[#allocation3 + $0x18] sm:$0xe]
        %v3104 = vld [vmem:[#allocation3 + $0x20] sm:$0xe]
        %v3105 = vld [vmem:[#allocation3 + $0x28] sm:$0xe]
        %v3106 = vld [vmem:[#allocation3 + $0x30] sm:$0xe]
        %v3107 = vld [vmem:[#allocation3 + $0x38] sm:$0xe]
        %v3124 = vrot.slane %v3100, 5
        %v3125 = vrot.slane %v3124, 4
        %v3126 = vrot.slane %v2698, 5
        %v3127 = vsel %vm985, %v3125, %v3126
        %v3128 = vrot.slane %v3101, 5
        %v3129 = vrot.slane %v3128, 4
        %v3130 = vrot.slane %v2699, 5
        %v3131 = vsel %vm985, %v3129, %v3130
        %v3132 = vrot.slane %v3102, 5
        %v3133 = vrot.slane %v3132, 4
        %v3134 = vrot.slane %v2700, 5
        %v3135 = vsel %vm985, %v3133, %v3134
        %v3136 = vrot.slane %v3103, 5
        %v3137 = vrot.slane %v3136, 4
        %v3138 = vrot.slane %v2701, 5
        %v3139 = vsel %vm985, %v3137, %v3138
        %v3140 = vrot.slane %v3104, 5
        %v3141 = vrot.slane %v3140, 4
        %v3142 = vrot.slane %v2702, 5
        %v3143 = vsel %vm985, %v3141, %v3142
        %v3144 = vrot.slane %v3105, 5
        %v3145 = vrot.slane %v3144, 4
        %v3146 = vrot.slane %v2703, 5
        %v3147 = vsel %vm985, %v3145, %v3146
        %v3148 = vrot.slane %v3106, 5
        %v3149 = vrot.slane %v3148, 4
        %v3150 = vrot.slane %v2704, 5
        %v3151 = vsel %vm985, %v3149, %v3150
        %v3152 = vrot.slane %v3107, 5
        %v3153 = vrot.slane %v3152, 4
        %v3154 = vrot.slane %v2705, 5
        %v3155 = vsel %vm985, %v3153, %v3154
        %v3156 = vld [vmem:[#allocation9 + $0x80] sm:$0xf]
        %v3157 = vld [vmem:[#allocation9 + $0x84] sm:$0xf]
        %v3158 = vld [vmem:[#allocation9 + $0x88] sm:$0xf]
        %v3159 = vld [vmem:[#allocation9 + $0x8c] sm:$0xf]
        %v3160 = vld [vmem:[#allocation9 + $0x90] sm:$0xf]
        %v3161 = vld [vmem:[#allocation9 + $0x94] sm:$0xf]
        %v3162 = vld [vmem:[#allocation9 + $0x98] sm:$0xf]
        %v3163 = vld [vmem:[#allocation9 + $0x9c] sm:$0xf]
        %v3164 = vld [vmem:[#allocation9 + $0xa0] sm:$0xf]
        %v3165 = vld [vmem:[#allocation9 + $0xa4] sm:$0xf]
        %v3166 = vld [vmem:[#allocation9 + $0xa8] sm:$0xf]
        %v3167 = vld [vmem:[#allocation9 + $0xac] sm:$0xf]
        %v3168 = vld [vmem:[#allocation9 + $0xb0] sm:$0xf]
        %v3169 = vld [vmem:[#allocation9 + $0xb4] sm:$0xf]
        %v3170 = vld [vmem:[#allocation9 + $0xb8] sm:$0xf]
        %v3171 = vld [vmem:[#allocation9 + $0xbc] sm:$0xf]
        %v3172 = vunpack.c.l.b16 %v3127
        %v3173 = vunpack.c.l.b16 %v3131
        %v3174 = vunpack.c.l.b16 %v3135
        %v3175 = vunpack.c.l.b16 %v3139
        %v3176 = vunpack.c.l.b16 %v3143
        %v3177 = vunpack.c.l.b16 %v3147
        %v3178 = vunpack.c.l.b16 %v3151
        %v3179 = vunpack.c.l.b16 %v3155
        %v3180 = vpack.c.b16 %v3173, %v3172
        %v3181 = vpack.c.b16 %v3175, %v3174
        %v3182 = vpack.c.b16 %v3177, %v3176
        %v3183 = vpack.c.b16 %v3179, %v3178
        %v3204 = vunpack.c.l.b16 %v3156
        %v3205 = vunpack.c.l.b16 %v3157
        %v3206 = vunpack.c.l.b16 %v3158
        %v3207 = vunpack.c.l.b16 %v3159
        %v3208 = vunpack.c.l.b16 %v3160
        %v3209 = vunpack.c.l.b16 %v3161
        %v3210 = vunpack.c.l.b16 %v3162
        %v3211 = vunpack.c.l.b16 %v3163
        %v3212 = vunpack.c.l.b16 %v3164
        %v3213 = vunpack.c.l.b16 %v3165
        %v3214 = vunpack.c.l.b16 %v3166
        %v3215 = vunpack.c.l.b16 %v3167
        %v3216 = vunpack.c.l.b16 %v3168
        %v3217 = vunpack.c.l.b16 %v3169
        %v3218 = vunpack.c.l.b16 %v3170
        %v3219 = vunpack.c.l.b16 %v3171
        %v3220 = vpack.c.b16 %v3205, %v3204
        %v3221 = vpack.c.b16 %v3207, %v3206
        %v3222 = vpack.c.b16 %v3209, %v3208
        %v3223 = vpack.c.b16 %v3211, %v3210
        %v3224 = vpack.c.b16 %v3213, %v3212
        %v3225 = vpack.c.b16 %v3215, %v3214
        %v3226 = vpack.c.b16 %v3217, %v3216
        %v3227 = vpack.c.b16 %v3219, %v3218
        %3236 = vmatprep.subr.bf16.mxu0 0
        %3237 = vmatpush1.bf16.msra.mxu0 %v3220
        %3238 = vmatprep.subr.bf16.mxu0 0
        %3239 = vmatpush1.bf16.msra.mxu0 %v3221
        %3240 = vmatprep.subr.bf16.mxu0 0
        %3241 = vmatpush1.bf16.msra.mxu0 %v3222
        %3242 = vmatprep.subr.bf16.mxu0 0
        %3243 = vmatpush1.bf16.msra.mxu0 %v3223
        %3244 = vmatprep.subr.bf16.mxu0 0
        %3245 = vmatpush1.bf16.msra.mxu0 %v3224
        %3246 = vmatprep.subr.bf16.mxu0 0
        %3247 = vmatpush1.bf16.msra.mxu0 %v3225
        %3248 = vmatprep.subr.bf16.mxu0 0
        %3249 = vmatpush1.bf16.msra.mxu0 %v3226
        %3250 = vmatprep.subr.bf16.mxu0 0
        %3251 = vmatpush1.bf16.msra.mxu0 %v3227
        %3252 = vmatprep.subr.bf16.mxu0 0
        %3253 = vmatpush1.bf16.msra.mxu0 0
        %3254 = vmatprep.subr.bf16.mxu0 0
        %3255 = vmatpush1.bf16.msra.mxu0 0
        %3256 = vmatprep.subr.bf16.mxu0 0
        %3257 = vmatpush1.bf16.msra.mxu0 0
        %3258 = vmatprep.subr.bf16.mxu0 0
        %3259 = vmatpush1.bf16.msra.mxu0 0
        %3260 = vmatprep.subr.bf16.mxu0 0
        %3261 = vmatpush1.bf16.msra.mxu0 0
        %3262 = vmatprep.subr.bf16.mxu0 0
        %3263 = vmatpush1.bf16.msra.mxu0 0
        %3264 = vmatprep.subr.bf16.mxu0 0
        %3265 = vmatpush1.bf16.msra.mxu0 0
        %3266 = vmatprep.subr.bf16.mxu0 0
        %3267 = vmatpush1.bf16.msra.mxu0 0
        %3268 = vmatprep.mubr.bf16.mxu0 0
        %3269 = vmatmul.mubr.bf16.gmra.mrb[0].mxu0 %v3180
        %v3270 = vpop.f32.mrb[0].mxu0
        %v3271 = vadd.f32 0.0, %v3270
        %v3272 = vpop.f32.mrb[0].mxu0
        %v3273 = vpop.f32.mrb[0].mxu0
        %v3274 = vadd.f32 0.0, %v3273
        %v3275 = vpop.f32.mrb[0].mxu0
        %3276 = vmatprep.mubr.bf16.mxu0 0
        %3277 = vmatmul.mubr.bf16.gmra.mrb[0].mxu0 %v3181
        %v3278 = vpop.f32.mrb[0].mxu0
        %v3279 = vadd.f32 0.0, %v3278
        %v3280 = vpop.f32.mrb[0].mxu0
        %v3281 = vpop.f32.mrb[0].mxu0
        %v3282 = vadd.f32 0.0, %v3281
        %v3283 = vpop.f32.mrb[0].mxu0
        %3284 = vmatprep.mubr.bf16.mxu0 0
        %3285 = vmatmul.mubr.bf16.gmra.mrb[0].mxu0 %v3182
        %v3286 = vpop.f32.mrb[0].mxu0
        %v3287 = vadd.f32 0.0, %v3286
        %v3288 = vpop.f32.mrb[0].mxu0
        %v3289 = vpop.f32.mrb[0].mxu0
        %v3290 = vadd.f32 0.0, %v3289
        %v3291 = vpop.f32.mrb[0].mxu0
        %3292 = vmatprep.mubr.bf16.mxu0 0
        %3293 = vmatmul.mubr.bf16.gmra.mrb[0].mxu0 %v3183
        %v3294 = vpop.f32.mrb[0].mxu0
        %v3295 = vadd.f32 0.0, %v3294
        %v3296 = vpop.f32.mrb[0].mxu0
        %v3297 = vpop.f32.mrb[0].mxu0
        %v3298 = vadd.f32 0.0, %v3297
        %v3299 = vpop.f32.mrb[0].mxu0
        %3300 = vdwg.mxu0
        %v3301 = vadd.f32 %v3070, %v3271
        %v3302 = vadd.f32 %v3073, %v3274
        %v3303 = vadd.f32 %v3078, %v3279
        %v3304 = vadd.f32 %v3081, %v3282
        %v3305 = vadd.f32 %v3086, %v3287
        %v3306 = vadd.f32 %v3089, %v3290
        %v3307 = vadd.f32 %v3094, %v3295
        %v3308 = vadd.f32 %v3097, %v3298
        %v3309 = vld [vmem:[%s2625] sm:$0xf]
        %v3310 = vld [vmem:[%s2625 + $0x8] sm:$0xf]
        %v3311 = vld [vmem:[%s2625 + $0x10] sm:$0xf]
        %v3312 = vld [vmem:[%s2625 + $0x18] sm:$0xf]
        %v3313 = vld [vmem:[%s2625 + $0x20] sm:$0xf]
        %v3314 = vld [vmem:[%s2625 + $0x28] sm:$0xf]
        %v3315 = vld [vmem:[%s2625 + $0x30] sm:$0xf]
        %v3316 = vld [vmem:[%s2625 + $0x38] sm:$0xf]
        %v3317 = vld [vmem:[#allocation9 + $0xc0] sm:$0xf]
        %v3318 = vld [vmem:[#allocation9 + $0xc4] sm:$0xf]
        %v3319 = vld [vmem:[#allocation9 + $0xc8] sm:$0xf]
        %v3320 = vld [vmem:[#allocation9 + $0xcc] sm:$0xf]
        %v3321 = vld [vmem:[#allocation9 + $0xd0] sm:$0xf]
        %v3322 = vld [vmem:[#allocation9 + $0xd4] sm:$0xf]
        %v3323 = vld [vmem:[#allocation9 + $0xd8] sm:$0xf]
        %v3324 = vld [vmem:[#allocation9 + $0xdc] sm:$0xf]
        %v3325 = vld [vmem:[#allocation9 + $0xe0] sm:$0xf]
        %v3326 = vld [vmem:[#allocation9 + $0xe4] sm:$0xf]
        %v3327 = vld [vmem:[#allocation9 + $0xe8] sm:$0xf]
        %v3328 = vld [vmem:[#allocation9 + $0xec] sm:$0xf]
        %v3329 = vld [vmem:[#allocation9 + $0xf0] sm:$0xf]
        %v3330 = vld [vmem:[#allocation9 + $0xf4] sm:$0xf]
        %v3331 = vld [vmem:[#allocation9 + $0xf8] sm:$0xf]
        %v3332 = vld [vmem:[#allocation9 + $0xfc] sm:$0xf]
        %v3341 = vunpack.c.l.b16 %v3309
        %v3342 = vunpack.c.l.b16 %v3310
        %v3343 = vunpack.c.l.b16 %v3311
        %v3344 = vunpack.c.l.b16 %v3312
        %v3345 = vunpack.c.l.b16 %v3313
        %v3346 = vunpack.c.l.b16 %v3314
        %v3347 = vunpack.c.l.b16 %v3315
        %v3348 = vunpack.c.l.b16 %v3316
        %v3349 = vpack.c.b16 %v3342, %v3341
        %v3350 = vpack.c.b16 %v3344, %v3343
        %v3351 = vpack.c.b16 %v3346, %v3345
        %v3352 = vpack.c.b16 %v3348, %v3347
        %v3373 = vunpack.c.l.b16 %v3317
        %v3374 = vunpack.c.l.b16 %v3318
        %v3375 = vunpack.c.l.b16 %v3319
        %v3376 = vunpack.c.l.b16 %v3320
        %v3377 = vunpack.c.l.b16 %v3321
        %v3378 = vunpack.c.l.b16 %v3322
        %v3379 = vunpack.c.l.b16 %v3323
        %v3380 = vunpack.c.l.b16 %v3324
        %v3381 = vunpack.c.l.b16 %v3325
        %v3382 = vunpack.c.l.b16 %v3326
        %v3383 = vunpack.c.l.b16 %v3327
        %v3384 = vunpack.c.l.b16 %v3328
        %v3385 = vunpack.c.l.b16 %v3329
        %v3386 = vunpack.c.l.b16 %v3330
        %v3387 = vunpack.c.l.b16 %v3331
        %v3388 = vunpack.c.l.b16 %v3332
        %v3389 = vpack.c.b16 %v3374, %v3373
        %v3390 = vpack.c.b16 %v3376, %v3375
        %v3391 = vpack.c.b16 %v3378, %v3377
        %v3392 = vpack.c.b16 %v3380, %v3379
        %v3393 = vpack.c.b16 %v3382, %v3381
        %v3394 = vpack.c.b16 %v3384, %v3383
        %v3395 = vpack.c.b16 %v3386, %v3385
        %v3396 = vpack.c.b16 %v3388, %v3387
        %3405 = vmatprep.subr.bf16.mxu0 0
        %3406 = vmatpush1.bf16.msra.mxu0 %v3389
        %3407 = vmatprep.subr.bf16.mxu0 0
        %3408 = vmatpush1.bf16.msra.mxu0 %v3390
        %3409 = vmatprep.subr.bf16.mxu0 0
        %3410 = vmatpush1.bf16.msra.mxu0 %v3391
        %3411 = vmatprep.subr.bf16.mxu0 0
        %3412 = vmatpush1.bf16.msra.mxu0 %v3392
        %3413 = vmatprep.subr.bf16.mxu0 0
        %3414 = vmatpush1.bf16.msra.mxu0 %v3393
        %3415 = vmatprep.subr.bf16.mxu0 0
        %3416 = vmatpush1.bf16.msra.mxu0 %v3394
        %3417 = vmatprep.subr.bf16.mxu0 0
        %3418 = vmatpush1.bf16.msra.mxu0 %v3395
        %3419 = vmatprep.subr.bf16.mxu0 0
        %3420 = vmatpush1.bf16.msra.mxu0 %v3396
        %3421 = vmatprep.subr.bf16.mxu0 0
        %3422 = vmatpush1.bf16.msra.mxu0 0
        %3423 = vmatprep.subr.bf16.mxu0 0
        %3424 = vmatpush1.bf16.msra.mxu0 0
        %3425 = vmatprep.subr.bf16.mxu0 0
        %3426 = vmatpush1.bf16.msra.mxu0 0
        %3427 = vmatprep.subr.bf16.mxu0 0
        %3428 = vmatpush1.bf16.msra.mxu0 0
        %3429 = vmatprep.subr.bf16.mxu0 0
        %3430 = vmatpush1.bf16.msra.mxu0 0
        %3431 = vmatprep.subr.bf16.mxu0 0
        %3432 = vmatpush1.bf16.msra.mxu0 0
        %3433 = vmatprep.subr.bf16.mxu0 0
        %3434 = vmatpush1.bf16.msra.mxu0 0
        %3435 = vmatprep.subr.bf16.mxu0 0
        %3436 = vmatpush1.bf16.msra.mxu0 0
        %3437 = vmatprep.mubr.bf16.mxu0 0
        %3438 = vmatmul.mubr.bf16.gmra.mrb[0].mxu0 %v3349
        %v3439 = vpop.f32.mrb[0].mxu0
        %v3440 = vadd.f32 0.0, %v3439
        %v3441 = vpop.f32.mrb[0].mxu0
        %v3442 = vpop.f32.mrb[0].mxu0
        %v3443 = vadd.f32 0.0, %v3442
        %v3444 = vpop.f32.mrb[0].mxu0
        %3445 = vmatprep.mubr.bf16.mxu0 0
        %3446 = vmatmul.mubr.bf16.gmra.mrb[0].mxu0 %v3350
        %v3447 = vpop.f32.mrb[0].mxu0
        %v3448 = vadd.f32 0.0, %v3447
        %v3449 = vpop.f32.mrb[0].mxu0
        %v3450 = vpop.f32.mrb[0].mxu0
        %v3451 = vadd.f32 0.0, %v3450
        %v3452 = vpop.f32.mrb[0].mxu0
        %3453 = vmatprep.mubr.bf16.mxu0 0
        %3454 = vmatmul.mubr.bf16.gmra.mrb[0].mxu0 %v3351
        %v3455 = vpop.f32.mrb[0].mxu0
        %v3456 = vadd.f32 0.0, %v3455
        %v3457 = vpop.f32.mrb[0].mxu0
        %v3458 = vpop.f32.mrb[0].mxu0
        %v3459 = vadd.f32 0.0, %v3458
        %v3460 = vpop.f32.mrb[0].mxu0
        %3461 = vmatprep.mubr.bf16.mxu0 0
        %3462 = vmatmul.mubr.bf16.gmra.mrb[0].mxu0 %v3352
        %v3463 = vpop.f32.mrb[0].mxu0
        %v3464 = vadd.f32 0.0, %v3463
        %v3465 = vpop.f32.mrb[0].mxu0
        %v3466 = vpop.f32.mrb[0].mxu0
        %v3467 = vadd.f32 0.0, %v3466
        %v3468 = vpop.f32.mrb[0].mxu0
        %3469 = vdwg.mxu0
        %v3470 = vadd.f32 %v3301, %v3440
        %v3471 = vadd.f32 %v3302, %v3443
        %v3472 = vadd.f32 %v3303, %v3448
        %v3473 = vadd.f32 %v3304, %v3451
        %v3474 = vadd.f32 %v3305, %v3456
        %v3475 = vadd.f32 %v3306, %v3459
        %v3476 = vadd.f32 %v3307, %v3464
        %v3477 = vadd.f32 %v3308, %v3467
        %v3478 = vld [vmem:[%s2625] sm:$0xf]
        %v3479 = vld [vmem:[%s2625 + $0x4] sm:$0x1]
        %v3480 = vld [vmem:[%s2625 + $0x8] sm:$0xf]
        %v3481 = vld [vmem:[%s2625 + $0xc] sm:$0x1]
        %v3482 = vld [vmem:[%s2625 + $0x10] sm:$0xf]
        %v3483 = vld [vmem:[%s2625 + $0x14] sm:$0x1]
        %v3484 = vld [vmem:[%s2625 + $0x18] sm:$0xf]
        %v3485 = vld [vmem:[%s2625 + $0x1c] sm:$0x1]
        %v3486 = vld [vmem:[%s2625 + $0x20] sm:$0xf]
        %v3487 = vld [vmem:[%s2625 + $0x24] sm:$0x1]
        %v3488 = vld [vmem:[%s2625 + $0x28] sm:$0xf]
        %v3489 = vld [vmem:[%s2625 + $0x2c] sm:$0x1]
        %v3490 = vld [vmem:[%s2625 + $0x30] sm:$0xf]
        %v3491 = vld [vmem:[%s2625 + $0x34] sm:$0x1]
        %v3492 = vld [vmem:[%s2625 + $0x38] sm:$0xf]
        %v3493 = vld [vmem:[%s2625 + $0x3c] sm:$0x1]
        %v3495 = vshrl.u32 %v3478, 16
        %v3497 = vrot.slane %v3495, 4
        %v3498 = vshll.u32 %v3478, 16
        %v3500 = vrot.slane %v3498, 5
        %v3501 = vor.u32 %v3497, %v3500
        %v3502 = vrot.slane %v3501, 4
        %v3504 = vshll.u32 %v3479, 16
        %v3506 = vrot.slane %v3504, 5
        %v3507 = vsel %vm564, %v3502, %v3506
        %v3509 = vshrl.u32 %v3480, 16
        %v3511 = vrot.slane %v3509, 4
        %v3512 = vshll.u32 %v3480, 16
        %v3514 = vrot.slane %v3512, 5
        %v3515 = vor.u32 %v3511, %v3514
        %v3516 = vrot.slane %v3515, 4
        %v3518 = vshll.u32 %v3481, 16
        %v3520 = vrot.slane %v3518, 5
        %v3521 = vsel %vm564, %v3516, %v3520
        %v3523 = vshrl.u32 %v3482, 16
        %v3525 = vrot.slane %v3523, 4
        %v3526 = vshll.u32 %v3482, 16
        %v3528 = vrot.slane %v3526, 5
        %v3529 = vor.u32 %v3525, %v3528
        %v3530 = vrot.slane %v3529, 4
        %v3532 = vshll.u32 %v3483, 16
        %v3534 = vrot.slane %v3532, 5
        %v3535 = vsel %vm564, %v3530, %v3534
        %v3537 = vshrl.u32 %v3484, 16
        %v3539 = vrot.slane %v3537, 4
        %v3540 = vshll.u32 %v3484, 16
        %v3542 = vrot.slane %v3540, 5
        %v3543 = vor.u32 %v3539, %v3542
        %v3544 = vrot.slane %v3543, 4
        %v3546 = vshll.u32 %v3485, 16
        %v3548 = vrot.slane %v3546, 5
        %v3549 = vsel %vm564, %v3544, %v3548
        %v3551 = vshrl.u32 %v3486, 16
        %v3553 = vrot.slane %v3551, 4
        %v3554 = vshll.u32 %v3486, 16
        %v3556 = vrot.slane %v3554, 5
        %v3557 = vor.u32 %v3553, %v3556
        %v3558 = vrot.slane %v3557, 4
        %v3560 = vshll.u32 %v3487, 16
        %v3562 = vrot.slane %v3560, 5
        %v3563 = vsel %vm564, %v3558, %v3562
        %v3565 = vshrl.u32 %v3488, 16
        %v3567 = vrot.slane %v3565, 4
        %v3568 = vshll.u32 %v3488, 16
        %v3570 = vrot.slane %v3568, 5
        %v3571 = vor.u32 %v3567, %v3570
        %v3572 = vrot.slane %v3571, 4
        %v3574 = vshll.u32 %v3489, 16
        %v3576 = vrot.slane %v3574, 5
        %v3577 = vsel %vm564, %v3572, %v3576
        %v3579 = vshrl.u32 %v3490, 16
        %v3581 = vrot.slane %v3579, 4
        %v3582 = vshll.u32 %v3490, 16
        %v3584 = vrot.slane %v3582, 5
        %v3585 = vor.u32 %v3581, %v3584
        %v3586 = vrot.slane %v3585, 4
        %v3588 = vshll.u32 %v3491, 16
        %v3590 = vrot.slane %v3588, 5
        %v3591 = vsel %vm564, %v3586, %v3590
        %v3593 = vshrl.u32 %v3492, 16
        %v3595 = vrot.slane %v3593, 4
        %v3596 = vshll.u32 %v3492, 16
        %v3598 = vrot.slane %v3596, 5
        %v3599 = vor.u32 %v3595, %v3598
        %v3600 = vrot.slane %v3599, 4
        %v3602 = vshll.u32 %v3493, 16
        %v3604 = vrot.slane %v3602, 5
        %v3605 = vsel %vm564, %v3600, %v3604
        %v3606 = vld [vmem:[#allocation9 + $0x100] sm:$0xf]
        %v3607 = vld [vmem:[#allocation9 + $0x104] sm:$0xf]
        %v3608 = vld [vmem:[#allocation9 + $0x108] sm:$0xf]
        %v3609 = vld [vmem:[#allocation9 + $0x10c] sm:$0xf]
        %v3610 = vld [vmem:[#allocation9 + $0x110] sm:$0xf]
        %v3611 = vld [vmem:[#allocation9 + $0x114] sm:$0xf]
        %v3612 = vld [vmem:[#allocation9 + $0x118] sm:$0xf]
        %v3613 = vld [vmem:[#allocation9 + $0x11c] sm:$0xf]
        %v3614 = vld [vmem:[#allocation9 + $0x120] sm:$0xf]
        %v3615 = vld [vmem:[#allocation9 + $0x124] sm:$0xf]
        %v3616 = vld [vmem:[#allocation9 + $0x128] sm:$0xf]
        %v3617 = vld [vmem:[#allocation9 + $0x12c] sm:$0xf]
        %v3618 = vld [vmem:[#allocation9 + $0x130] sm:$0xf]
        %v3619 = vld [vmem:[#allocation9 + $0x134] sm:$0xf]
        %v3620 = vld [vmem:[#allocation9 + $0x138] sm:$0xf]
        %v3621 = vld [vmem:[#allocation9 + $0x13c] sm:$0xf]
        %v3622 = vunpack.c.l.b16 %v3507
        %v3623 = vunpack.c.l.b16 %v3521
        %v3624 = vunpack.c.l.b16 %v3535
        %v3625 = vunpack.c.l.b16 %v3549
        %v3626 = vunpack.c.l.b16 %v3563
        %v3627 = vunpack.c.l.b16 %v3577
        %v3628 = vunpack.c.l.b16 %v3591
        %v3629 = vunpack.c.l.b16 %v3605
        %v3630 = vpack.c.b16 %v3623, %v3622
        %v3631 = vpack.c.b16 %v3625, %v3624
        %v3632 = vpack.c.b16 %v3627, %v3626
        %v3633 = vpack.c.b16 %v3629, %v3628
        %v3654 = vunpack.c.l.b16 %v3606
        %v3655 = vunpack.c.l.b16 %v3607
        %v3656 = vunpack.c.l.b16 %v3608
        %v3657 = vunpack.c.l.b16 %v3609
        %v3658 = vunpack.c.l.b16 %v3610
        %v3659 = vunpack.c.l.b16 %v3611
        %v3660 = vunpack.c.l.b16 %v3612
        %v3661 = vunpack.c.l.b16 %v3613
        %v3662 = vunpack.c.l.b16 %v3614
        %v3663 = vunpack.c.l.b16 %v3615
        %v3664 = vunpack.c.l.b16 %v3616
        %v3665 = vunpack.c.l.b16 %v3617
        %v3666 = vunpack.c.l.b16 %v3618
        %v3667 = vunpack.c.l.b16 %v3619
        %v3668 = vunpack.c.l.b16 %v3620
        %v3669 = vunpack.c.l.b16 %v3621
        %v3670 = vpack.c.b16 %v3655, %v3654
        %v3671 = vpack.c.b16 %v3657, %v3656
        %v3672 = vpack.c.b16 %v3659, %v3658
        %v3673 = vpack.c.b16 %v3661, %v3660
        %v3674 = vpack.c.b16 %v3663, %v3662
        %v3675 = vpack.c.b16 %v3665, %v3664
        %v3676 = vpack.c.b16 %v3667, %v3666
        %v3677 = vpack.c.b16 %v3669, %v3668
        %3686 = vmatprep.subr.bf16.mxu0 0
        %3687 = vmatpush1.bf16.msra.mxu0 %v3670
        %3688 = vmatprep.subr.bf16.mxu0 0
        %3689 = vmatpush1.bf16.msra.mxu0 %v3671
        %3690 = vmatprep.subr.bf16.mxu0 0
        %3691 = vmatpush1.bf16.msra.mxu0 %v3672
        %3692 = vmatprep.subr.bf16.mxu0 0
        %3693 = vmatpush1.bf16.msra.mxu0 %v3673
        %3694 = vmatprep.subr.bf16.mxu0 0
        %3695 = vmatpush1.bf16.msra.mxu0 %v3674
        %3696 = vmatprep.subr.bf16.mxu0 0
        %3697 = vmatpush1.bf16.msra.mxu0 %v3675
        %3698 = vmatprep.subr.bf16.mxu0 0
        %3699 = vmatpush1.bf16.msra.mxu0 %v3676
        %3700 = vmatprep.subr.bf16.mxu0 0
        %3701 = vmatpush1.bf16.msra.mxu0 %v3677
        %3702 = vmatprep.subr.bf16.mxu0 0
        %3703 = vmatpush1.bf16.msra.mxu0 0
        %3704 = vmatprep.subr.bf16.mxu0 0
        %3705 = vmatpush1.bf16.msra.mxu0 0
        %3706 = vmatprep.subr.bf16.mxu0 0
        %3707 = vmatpush1.bf16.msra.mxu0 0
        %3708 = vmatprep.subr.bf16.mxu0 0
        %3709 = vmatpush1.bf16.msra.mxu0 0
        %3710 = vmatprep.subr.bf16.mxu0 0
        %3711 = vmatpush1.bf16.msra.mxu0 0
        %3712 = vmatprep.subr.bf16.mxu0 0
        %3713 = vmatpush1.bf16.msra.mxu0 0
        %3714 = vmatprep.subr.bf16.mxu0 0
        %3715 = vmatpush1.bf16.msra.mxu0 0
        %3716 = vmatprep.subr.bf16.mxu0 0
        %3717 = vmatpush1.bf16.msra.mxu0 0
        %3718 = vmatprep.mubr.bf16.mxu0 0
        %3719 = vmatmul.mubr.bf16.gmra.mrb[0].mxu0 %v3630
        %v3720 = vpop.f32.mrb[0].mxu0
        %v3721 = vadd.f32 0.0, %v3720
        %v3722 = vpop.f32.mrb[0].mxu0
        %v3723 = vpop.f32.mrb[0].mxu0
        %v3724 = vadd.f32 0.0, %v3723
        %v3725 = vpop.f32.mrb[0].mxu0
        %3726 = vmatprep.mubr.bf16.mxu0 0
        %3727 = vmatmul.mubr.bf16.gmra.mrb[0].mxu0 %v3631
        %v3728 = vpop.f32.mrb[0].mxu0
        %v3729 = vadd.f32 0.0, %v3728
        %v3730 = vpop.f32.mrb[0].mxu0
        %v3731 = vpop.f32.mrb[0].mxu0
        %v3732 = vadd.f32 0.0, %v3731
        %v3733 = vpop.f32.mrb[0].mxu0
        %3734 = vmatprep.mubr.bf16.mxu0 0
        %3735 = vmatmul.mubr.bf16.gmra.mrb[0].mxu0 %v3632
        %v3736 = vpop.f32.mrb[0].mxu0
        %v3737 = vadd.f32 0.0, %v3736
        %v3738 = vpop.f32.mrb[0].mxu0
        %v3739 = vpop.f32.mrb[0].mxu0
        %v3740 = vadd.f32 0.0, %v3739
        %v3741 = vpop.f32.mrb[0].mxu0
        %3742 = vmatprep.mubr.bf16.mxu0 0
        %3743 = vmatmul.mubr.bf16.gmra.mrb[0].mxu0 %v3633
        %v3744 = vpop.f32.mrb[0].mxu0
        %v3745 = vadd.f32 0.0, %v3744
        %v3746 = vpop.f32.mrb[0].mxu0
        %v3747 = vpop.f32.mrb[0].mxu0
        %v3748 = vadd.f32 0.0, %v3747
        %v3749 = vpop.f32.mrb[0].mxu0
        %3750 = vdwg.mxu0
        %v3751 = vadd.f32 %v3470, %v3721
        %v3752 = vadd.f32 %v3471, %v3724
        %v3753 = vadd.f32 %v3472, %v3729
        %v3754 = vadd.f32 %v3473, %v3732
        %v3755 = vadd.f32 %v3474, %v3737
        %v3756 = vadd.f32 %v3475, %v3740
        %v3757 = vadd.f32 %v3476, %v3745
        %v3758 = vadd.f32 %v3477, %v3748
        %v3759 = vld [vmem:[%s2625] sm:$0xe]
        %v3760 = vld [vmem:[%s2625 + $0x8] sm:$0xe]
        %v3761 = vld [vmem:[%s2625 + $0x10] sm:$0xe]
        %v3762 = vld [vmem:[%s2625 + $0x18] sm:$0xe]
        %v3763 = vld [vmem:[%s2625 + $0x20] sm:$0xe]
        %v3764 = vld [vmem:[%s2625 + $0x28] sm:$0xe]
        %v3765 = vld [vmem:[%s2625 + $0x30] sm:$0xe]
        %v3766 = vld [vmem:[%s2625 + $0x38] sm:$0xe]
        %v3783 = vrot.slane %v3759, 5
        %v3784 = vrot.slane %v3783, 4
        %v3785 = vrot.slane %v3479, 5
        %v3786 = vsel %vm985, %v3784, %v3785
        %v3787 = vrot.slane %v3760, 5
        %v3788 = vrot.slane %v3787, 4
        %v3789 = vrot.slane %v3481, 5
        %v3790 = vsel %vm985, %v3788, %v3789
        %v3791 = vrot.slane %v3761, 5
        %v3792 = vrot.slane %v3791, 4
        %v3793 = vrot.slane %v3483, 5
        %v3794 = vsel %vm985, %v3792, %v3793
        %v3795 = vrot.slane %v3762, 5
        %v3796 = vrot.slane %v3795, 4
        %v3797 = vrot.slane %v3485, 5
        %v3798 = vsel %vm985, %v3796, %v3797
        %v3799 = vrot.slane %v3763, 5
        %v3800 = vrot.slane %v3799, 4
        %v3801 = vrot.slane %v3487, 5
        %v3802 = vsel %vm985, %v3800, %v3801
        %v3803 = vrot.slane %v3764, 5
        %v3804 = vrot.slane %v3803, 4
        %v3805 = vrot.slane %v3489, 5
        %v3806 = vsel %vm985, %v3804, %v3805
        %v3807 = vrot.slane %v3765, 5
        %v3808 = vrot.slane %v3807, 4
        %v3809 = vrot.slane %v3491, 5
        %v3810 = vsel %vm985, %v3808, %v3809
        %v3811 = vrot.slane %v3766, 5
        %v3812 = vrot.slane %v3811, 4
        %v3813 = vrot.slane %v3493, 5
        %v3814 = vsel %vm985, %v3812, %v3813
        %v3815 = vld [vmem:[#allocation9 + $0x140] sm:$0xf]
        %v3816 = vld [vmem:[#allocation9 + $0x144] sm:$0xf]
        %v3817 = vld [vmem:[#allocation9 + $0x148] sm:$0xf]
        %v3818 = vld [vmem:[#allocation9 + $0x14c] sm:$0xf]
        %v3819 = vld [vmem:[#allocation9 + $0x150] sm:$0xf]
        %v3820 = vld [vmem:[#allocation9 + $0x154] sm:$0xf]
        %v3821 = vld [vmem:[#allocation9 + $0x158] sm:$0xf]
        %v3822 = vld [vmem:[#allocation9 + $0x15c] sm:$0xf]
        %v3823 = vld [vmem:[#allocation9 + $0x160] sm:$0xf]
        %v3824 = vld [vmem:[#allocation9 + $0x164] sm:$0xf]
        %v3825 = vld [vmem:[#allocation9 + $0x168] sm:$0xf]
        %v3826 = vld [vmem:[#allocation9 + $0x16c] sm:$0xf]
        %v3827 = vld [vmem:[#allocation9 + $0x170] sm:$0xf]
        %v3828 = vld [vmem:[#allocation9 + $0x174] sm:$0xf]
        %v3829 = vld [vmem:[#allocation9 + $0x178] sm:$0xf]
        %v3830 = vld [vmem:[#allocation9 + $0x17c] sm:$0xf]
        %v3831 = vunpack.c.l.b16 %v3786
        %v3832 = vunpack.c.l.b16 %v3790
        %v3833 = vunpack.c.l.b16 %v3794
        %v3834 = vunpack.c.l.b16 %v3798
        %v3835 = vunpack.c.l.b16 %v3802
        %v3836 = vunpack.c.l.b16 %v3806
        %v3837 = vunpack.c.l.b16 %v3810
        %v3838 = vunpack.c.l.b16 %v3814
        %v3839 = vpack.c.b16 %v3832, %v3831
        %v3840 = vpack.c.b16 %v3834, %v3833
        %v3841 = vpack.c.b16 %v3836, %v3835
        %v3842 = vpack.c.b16 %v3838, %v3837
        %v3863 = vunpack.c.l.b16 %v3815
        %v3864 = vunpack.c.l.b16 %v3816
        %v3865 = vunpack.c.l.b16 %v3817
        %v3866 = vunpack.c.l.b16 %v3818
        %v3867 = vunpack.c.l.b16 %v3819
        %v3868 = vunpack.c.l.b16 %v3820
        %v3869 = vunpack.c.l.b16 %v3821
        %v3870 = vunpack.c.l.b16 %v3822
        %v3871 = vunpack.c.l.b16 %v3823
        %v3872 = vunpack.c.l.b16 %v3824
        %v3873 = vunpack.c.l.b16 %v3825
        %v3874 = vunpack.c.l.b16 %v3826
        %v3875 = vunpack.c.l.b16 %v3827
        %v3876 = vunpack.c.l.b16 %v3828
        %v3877 = vunpack.c.l.b16 %v3829
        %v3878 = vunpack.c.l.b16 %v3830
        %v3879 = vpack.c.b16 %v3864, %v3863
        %v3880 = vpack.c.b16 %v3866, %v3865
        %v3881 = vpack.c.b16 %v3868, %v3867
        %v3882 = vpack.c.b16 %v3870, %v3869
        %v3883 = vpack.c.b16 %v3872, %v3871
        %v3884 = vpack.c.b16 %v3874, %v3873
        %v3885 = vpack.c.b16 %v3876, %v3875
        %v3886 = vpack.c.b16 %v3878, %v3877
        %3895 = vmatprep.subr.bf16.mxu0 0
        %3896 = vmatpush1.bf16.msra.mxu0 %v3879
        %3897 = vmatprep.subr.bf16.mxu0 0
        %3898 = vmatpush1.bf16.msra.mxu0 %v3880
        %3899 = vmatprep.subr.bf16.mxu0 0
        %3900 = vmatpush1.bf16.msra.mxu0 %v3881
        %3901 = vmatprep.subr.bf16.mxu0 0
        %3902 = vmatpush1.bf16.msra.mxu0 %v3882
        %3903 = vmatprep.subr.bf16.mxu0 0
        %3904 = vmatpush1.bf16.msra.mxu0 %v3883
        %3905 = vmatprep.subr.bf16.mxu0 0
        %3906 = vmatpush1.bf16.msra.mxu0 %v3884
        %3907 = vmatprep.subr.bf16.mxu0 0
        %3908 = vmatpush1.bf16.msra.mxu0 %v3885
        %3909 = vmatprep.subr.bf16.mxu0 0
        %3910 = vmatpush1.bf16.msra.mxu0 %v3886
        %3911 = vmatprep.subr.bf16.mxu0 0
        %3912 = vmatpush1.bf16.msra.mxu0 0
        %3913 = vmatprep.subr.bf16.mxu0 0
        %3914 = vmatpush1.bf16.msra.mxu0 0
        %3915 = vmatprep.subr.bf16.mxu0 0
        %3916 = vmatpush1.bf16.msra.mxu0 0
        %3917 = vmatprep.subr.bf16.mxu0 0
        %3918 = vmatpush1.bf16.msra.mxu0 0
        %3919 = vmatprep.subr.bf16.mxu0 0
        %3920 = vmatpush1.bf16.msra.mxu0 0
        %3921 = vmatprep.subr.bf16.mxu0 0
        %3922 = vmatpush1.bf16.msra.mxu0 0
        %3923 = vmatprep.subr.bf16.mxu0 0
        %3924 = vmatpush1.bf16.msra.mxu0 0
        %3925 = vmatprep.subr.bf16.mxu0 0
        %3926 = vmatpush1.bf16.msra.mxu0 0
        %3927 = vmatprep.mubr.bf16.mxu0 0
        %3928 = vmatmul.mubr.bf16.gmra.mrb[0].mxu0 %v3839
        %v3929 = vpop.f32.mrb[0].mxu0
        %v3930 = vadd.f32 0.0, %v3929
        %v3931 = vpop.f32.mrb[0].mxu0
        %v3932 = vpop.f32.mrb[0].mxu0
        %v3933 = vadd.f32 0.0, %v3932
        %v3934 = vpop.f32.mrb[0].mxu0
        %3935 = vmatprep.mubr.bf16.mxu0 0
        %3936 = vmatmul.mubr.bf16.gmra.mrb[0].mxu0 %v3840
        %v3937 = vpop.f32.mrb[0].mxu0
        %v3938 = vadd.f32 0.0, %v3937
        %v3939 = vpop.f32.mrb[0].mxu0
        %v3940 = vpop.f32.mrb[0].mxu0
        %v3941 = vadd.f32 0.0, %v3940
        %v3942 = vpop.f32.mrb[0].mxu0
        %3943 = vmatprep.mubr.bf16.mxu0 0
        %3944 = vmatmul.mubr.bf16.gmra.mrb[0].mxu0 %v3841
        %v3945 = vpop.f32.mrb[0].mxu0
        %v3946 = vadd.f32 0.0, %v3945
        %v3947 = vpop.f32.mrb[0].mxu0
        %v3948 = vpop.f32.mrb[0].mxu0
        %v3949 = vadd.f32 0.0, %v3948
        %v3950 = vpop.f32.mrb[0].mxu0
        %3951 = vmatprep.mubr.bf16.mxu0 0
        %3952 = vmatmul.mubr.bf16.gmra.mrb[0].mxu0 %v3842
        %v3953 = vpop.f32.mrb[0].mxu0
        %v3954 = vadd.f32 0.0, %v3953
        %v3955 = vpop.f32.mrb[0].mxu0
        %v3956 = vpop.f32.mrb[0].mxu0
        %v3957 = vadd.f32 0.0, %v3956
        %v3958 = vpop.f32.mrb[0].mxu0
        %3959 = vdwg.mxu0
        %v3960 = vadd.f32 %v3751, %v3930
        %v3961 = vadd.f32 %v3752, %v3933
        %v3962 = vadd.f32 %v3753, %v3938
        %v3963 = vadd.f32 %v3754, %v3941
        %v3964 = vadd.f32 %v3755, %v3946
        %v3965 = vadd.f32 %v3756, %v3949
        %v3966 = vadd.f32 %v3757, %v3954
        %v3967 = vadd.f32 %v3758, %v3957
        %s3968 = scalar_lea.vmem [#allocation3], 16
        %v3969 = vld [vmem:[%s3968] sm:$0xf]
        %v3970 = vld [vmem:[%s3968 + $0x8] sm:$0xf]
        %v3971 = vld [vmem:[%s3968 + $0x10] sm:$0xf]
        %v3972 = vld [vmem:[%s3968 + $0x18] sm:$0xf]
        %v3973 = vld [vmem:[%s3968 + $0x20] sm:$0xf]
        %v3974 = vld [vmem:[%s3968 + $0x28] sm:$0xf]
        %v3975 = vld [vmem:[%s3968 + $0x30] sm:$0xf]
        %v3976 = vld [vmem:[%s3968 + $0x38] sm:$0xf]
        %v3977 = vld [vmem:[#allocation9 + $0x180] sm:$0xf]
        %v3978 = vld [vmem:[#allocation9 + $0x184] sm:$0xf]
        %v3979 = vld [vmem:[#allocation9 + $0x188] sm:$0xf]
        %v3980 = vld [vmem:[#allocation9 + $0x18c] sm:$0xf]
        %v3981 = vld [vmem:[#allocation9 + $0x190] sm:$0xf]
        %v3982 = vld [vmem:[#allocation9 + $0x194] sm:$0xf]
        %v3983 = vld [vmem:[#allocation9 + $0x198] sm:$0xf]
        %v3984 = vld [vmem:[#allocation9 + $0x19c] sm:$0xf]
        %v3985 = vld [vmem:[#allocation9 + $0x1a0] sm:$0xf]
        %v3986 = vld [vmem:[#allocation9 + $0x1a4] sm:$0xf]
        %v3987 = vld [vmem:[#allocation9 + $0x1a8] sm:$0xf]
        %v3988 = vld [vmem:[#allocation9 + $0x1ac] sm:$0xf]
        %v3989 = vld [vmem:[#allocation9 + $0x1b0] sm:$0xf]
        %v3990 = vld [vmem:[#allocation9 + $0x1b4] sm:$0xf]
        %v3991 = vld [vmem:[#allocation9 + $0x1b8] sm:$0xf]
        %v3992 = vld [vmem:[#allocation9 + $0x1bc] sm:$0xf]
        %v4001 = vunpack.c.l.b16 %v3969
        %v4002 = vunpack.c.l.b16 %v3970
        %v4003 = vunpack.c.l.b16 %v3971
        %v4004 = vunpack.c.l.b16 %v3972
        %v4005 = vunpack.c.l.b16 %v3973
        %v4006 = vunpack.c.l.b16 %v3974
        %v4007 = vunpack.c.l.b16 %v3975
        %v4008 = vunpack.c.l.b16 %v3976
        %v4009 = vpack.c.b16 %v4002, %v4001
        %v4010 = vpack.c.b16 %v4004, %v4003
        %v4011 = vpack.c.b16 %v4006, %v4005
        %v4012 = vpack.c.b16 %v4008, %v4007
        %v4033 = vunpack.c.l.b16 %v3977
        %v4034 = vunpack.c.l.b16 %v3978
        %v4035 = vunpack.c.l.b16 %v3979
        %v4036 = vunpack.c.l.b16 %v3980
        %v4037 = vunpack.c.l.b16 %v3981
        %v4038 = vunpack.c.l.b16 %v3982
        %v4039 = vunpack.c.l.b16 %v3983
        %v4040 = vunpack.c.l.b16 %v3984
        %v4041 = vunpack.c.l.b16 %v3985
        %v4042 = vunpack.c.l.b16 %v3986
        %v4043 = vunpack.c.l.b16 %v3987
        %v4044 = vunpack.c.l.b16 %v3988
        %v4045 = vunpack.c.l.b16 %v3989
        %v4046 = vunpack.c.l.b16 %v3990
        %v4047 = vunpack.c.l.b16 %v3991
        %v4048 = vunpack.c.l.b16 %v3992
        %v4049 = vpack.c.b16 %v4034, %v4033
        %v4050 = vpack.c.b16 %v4036, %v4035
        %v4051 = vpack.c.b16 %v4038, %v4037
        %v4052 = vpack.c.b16 %v4040, %v4039
        %v4053 = vpack.c.b16 %v4042, %v4041
        %v4054 = vpack.c.b16 %v4044, %v4043
        %v4055 = vpack.c.b16 %v4046, %v4045
        %v4056 = vpack.c.b16 %v4048, %v4047
        %4065 = vmatprep.subr.bf16.mxu0 0
        %4066 = vmatpush1.bf16.msra.mxu0 %v4049
        %4067 = vmatprep.subr.bf16.mxu0 0
        %4068 = vmatpush1.bf16.msra.mxu0 %v4050
        %4069 = vmatprep.subr.bf16.mxu0 0
        %4070 = vmatpush1.bf16.msra.mxu0 %v4051
        %4071 = vmatprep.subr.bf16.mxu0 0
        %4072 = vmatpush1.bf16.msra.mxu0 %v4052
        %4073 = vmatprep.subr.bf16.mxu0 0
        %4074 = vmatpush1.bf16.msra.mxu0 %v4053
        %4075 = vmatprep.subr.bf16.mxu0 0
        %4076 = vmatpush1.bf16.msra.mxu0 %v4054
        %4077 = vmatprep.subr.bf16.mxu0 0
        %4078 = vmatpush1.bf16.msra.mxu0 %v4055
        %4079 = vmatprep.subr.bf16.mxu0 0
        %4080 = vmatpush1.bf16.msra.mxu0 %v4056
        %4081 = vmatprep.subr.bf16.mxu0 0
        %4082 = vmatpush1.bf16.msra.mxu0 0
        %4083 = vmatprep.subr.bf16.mxu0 0
        %4084 = vmatpush1.bf16.msra.mxu0 0
        %4085 = vmatprep.subr.bf16.mxu0 0
        %4086 = vmatpush1.bf16.msra.mxu0 0
        %4087 = vmatprep.subr.bf16.mxu0 0
        %4088 = vmatpush1.bf16.msra.mxu0 0
        %4089 = vmatprep.subr.bf16.mxu0 0
        %4090 = vmatpush1.bf16.msra.mxu0 0
        %4091 = vmatprep.subr.bf16.mxu0 0
        %4092 = vmatpush1.bf16.msra.mxu0 0
        %4093 = vmatprep.subr.bf16.mxu0 0
        %4094 = vmatpush1.bf16.msra.mxu0 0
        %4095 = vmatprep.subr.bf16.mxu0 0
        %4096 = vmatpush1.bf16.msra.mxu0 0
        %4097 = vmatprep.mubr.bf16.mxu0 0
        %4098 = vmatmul.mubr.bf16.gmra.mrb[0].mxu0 %v4009
        %v4099 = vpop.f32.mrb[0].mxu0
        %v4100 = vadd.f32 0.0, %v4099
        %v4101 = vpop.f32.mrb[0].mxu0
        %v4102 = vpop.f32.mrb[0].mxu0
        %v4103 = vadd.f32 0.0, %v4102
        %v4104 = vpop.f32.mrb[0].mxu0
        %4105 = vmatprep.mubr.bf16.mxu0 0
        %4106 = vmatmul.mubr.bf16.gmra.mrb[0].mxu0 %v4010
        %v4107 = vpop.f32.mrb[0].mxu0
        %v4108 = vadd.f32 0.0, %v4107
        %v4109 = vpop.f32.mrb[0].mxu0
        %v4110 = vpop.f32.mrb[0].mxu0
        %v4111 = vadd.f32 0.0, %v4110
        %v4112 = vpop.f32.mrb[0].mxu0
        %4113 = vmatprep.mubr.bf16.mxu0 0
        %4114 = vmatmul.mubr.bf16.gmra.mrb[0].mxu0 %v4011
        %v4115 = vpop.f32.mrb[0].mxu0
        %v4116 = vadd.f32 0.0, %v4115
        %v4117 = vpop.f32.mrb[0].mxu0
        %v4118 = vpop.f32.mrb[0].mxu0
        %v4119 = vadd.f32 0.0, %v4118
        %v4120 = vpop.f32.mrb[0].mxu0
        %4121 = vmatprep.mubr.bf16.mxu0 0
        %4122 = vmatmul.mubr.bf16.gmra.mrb[0].mxu0 %v4012
        %v4123 = vpop.f32.mrb[0].mxu0
        %v4124 = vadd.f32 0.0, %v4123
        %v4125 = vpop.f32.mrb[0].mxu0
        %v4126 = vpop.f32.mrb[0].mxu0
        %v4127 = vadd.f32 0.0, %v4126
        %v4128 = vpop.f32.mrb[0].mxu0
        %4129 = vdwg.mxu0
        %v4130 = vadd.f32 %v3960, %v4100
        %v4131 = vadd.f32 %v3961, %v4103
        %v4132 = vadd.f32 %v3962, %v4108
        %v4133 = vadd.f32 %v3963, %v4111
        %v4134 = vadd.f32 %v3964, %v4116
        %v4135 = vadd.f32 %v3965, %v4119
        %v4136 = vadd.f32 %v3966, %v4124
        %v4137 = vadd.f32 %v3967, %v4127
        %v4138 = vld [vmem:[%s3968] sm:$0xf]
        %v4139 = vld [vmem:[%s3968 + $0x4] sm:$0x1]
        %v4140 = vld [vmem:[%s3968 + $0x8] sm:$0xf]
        %v4141 = vld [vmem:[%s3968 + $0xc] sm:$0x1]
        %v4142 = vld [vmem:[%s3968 + $0x10] sm:$0xf]
        %v4143 = vld [vmem:[%s3968 + $0x14] sm:$0x1]
        %v4144 = vld [vmem:[%s3968 + $0x18] sm:$0xf]
        %v4145 = vld [vmem:[%s3968 + $0x1c] sm:$0x1]
        %v4146 = vld [vmem:[%s3968 + $0x20] sm:$0xf]
        %v4147 = vld [vmem:[%s3968 + $0x24] sm:$0x1]
        %v4148 = vld [vmem:[%s3968 + $0x28] sm:$0xf]
        %v4149 = vld [vmem:[%s3968 + $0x2c] sm:$0x1]
        %v4150 = vld [vmem:[%s3968 + $0x30] sm:$0xf]
        %v4151 = vld [vmem:[%s3968 + $0x34] sm:$0x1]
        %v4152 = vld [vmem:[%s3968 + $0x38] sm:$0xf]
        %v4153 = vld [vmem:[%s3968 + $0x3c] sm:$0x1]
        %v4155 = vshrl.u32 %v4138, 16
        %v4157 = vrot.slane %v4155, 4
        %v4158 = vshll.u32 %v4138, 16
        %v4160 = vrot.slane %v4158, 5
        %v4161 = vor.u32 %v4157, %v4160
        %v4162 = vrot.slane %v4161, 4
        %v4164 = vshll.u32 %v4139, 16
        %v4166 = vrot.slane %v4164, 5
        %v4167 = vsel %vm564, %v4162, %v4166
        %v4169 = vshrl.u32 %v4140, 16
        %v4171 = vrot.slane %v4169, 4
        %v4172 = vshll.u32 %v4140, 16
        %v4174 = vrot.slane %v4172, 5
        %v4175 = vor.u32 %v4171, %v4174
        %v4176 = vrot.slane %v4175, 4
        %v4178 = vshll.u32 %v4141, 16
        %v4180 = vrot.slane %v4178, 5
        %v4181 = vsel %vm564, %v4176, %v4180
        %v4183 = vshrl.u32 %v4142, 16
        %v4185 = vrot.slane %v4183, 4
        %v4186 = vshll.u32 %v4142, 16
        %v4188 = vrot.slane %v4186, 5
        %v4189 = vor.u32 %v4185, %v4188
        %v4190 = vrot.slane %v4189, 4
        %v4192 = vshll.u32 %v4143, 16
        %v4194 = vrot.slane %v4192, 5
        %v4195 = vsel %vm564, %v4190, %v4194
        %v4197 = vshrl.u32 %v4144, 16
        %v4199 = vrot.slane %v4197, 4
        %v4200 = vshll.u32 %v4144, 16
        %v4202 = vrot.slane %v4200, 5
        %v4203 = vor.u32 %v4199, %v4202
        %v4204 = vrot.slane %v4203, 4
        %v4206 = vshll.u32 %v4145, 16
        %v4208 = vrot.slane %v4206, 5
        %v4209 = vsel %vm564, %v4204, %v4208
        %v4211 = vshrl.u32 %v4146, 16
        %v4213 = vrot.slane %v4211, 4
        %v4214 = vshll.u32 %v4146, 16
        %v4216 = vrot.slane %v4214, 5
        %v4217 = vor.u32 %v4213, %v4216
        %v4218 = vrot.slane %v4217, 4
        %v4220 = vshll.u32 %v4147, 16
        %v4222 = vrot.slane %v4220, 5
        %v4223 = vsel %vm564, %v4218, %v4222
        %v4225 = vshrl.u32 %v4148, 16
        %v4227 = vrot.slane %v4225, 4
        %v4228 = vshll.u32 %v4148, 16
        %v4230 = vrot.slane %v4228, 5
        %v4231 = vor.u32 %v4227, %v4230
        %v4232 = vrot.slane %v4231, 4
        %v4234 = vshll.u32 %v4149, 16
        %v4236 = vrot.slane %v4234, 5
        %v4237 = vsel %vm564, %v4232, %v4236
        %v4239 = vshrl.u32 %v4150, 16
        %v4241 = vrot.slane %v4239, 4
        %v4242 = vshll.u32 %v4150, 16
        %v4244 = vrot.slane %v4242, 5
        %v4245 = vor.u32 %v4241, %v4244
        %v4246 = vrot.slane %v4245, 4
        %v4248 = vshll.u32 %v4151, 16
        %v4250 = vrot.slane %v4248, 5
        %v4251 = vsel %vm564, %v4246, %v4250
        %v4253 = vshrl.u32 %v4152, 16
        %v4255 = vrot.slane %v4253, 4
        %v4256 = vshll.u32 %v4152, 16
        %v4258 = vrot.slane %v4256, 5
        %v4259 = vor.u32 %v4255, %v4258
        %v4260 = vrot.slane %v4259, 4
        %v4262 = vshll.u32 %v4153, 16
        %v4264 = vrot.slane %v4262, 5
        %v4265 = vsel %vm564, %v4260, %v4264
        %v4266 = vld [vmem:[#allocation9 + $0x1c0] sm:$0xf]
        %v4267 = vld [vmem:[#allocation9 + $0x1c4] sm:$0xf]
        %v4268 = vld [vmem:[#allocation9 + $0x1c8] sm:$0xf]
        %v4269 = vld [vmem:[#allocation9 + $0x1cc] sm:$0xf]
        %v4270 = vld [vmem:[#allocation9 + $0x1d0] sm:$0xf]
        %v4271 = vld [vmem:[#allocation9 + $0x1d4] sm:$0xf]
        %v4272 = vld [vmem:[#allocation9 + $0x1d8] sm:$0xf]
        %v4273 = vld [vmem:[#allocation9 + $0x1dc] sm:$0xf]
        %v4274 = vld [vmem:[#allocation9 + $0x1e0] sm:$0xf]
        %v4275 = vld [vmem:[#allocation9 + $0x1e4] sm:$0xf]
        %v4276 = vld [vmem:[#allocation9 + $0x1e8] sm:$0xf]
        %v4277 = vld [vmem:[#allocation9 + $0x1ec] sm:$0xf]
        %v4278 = vld [vmem:[#allocation9 + $0x1f0] sm:$0xf]
        %v4279 = vld [vmem:[#allocation9 + $0x1f4] sm:$0xf]
        %v4280 = vld [vmem:[#allocation9 + $0x1f8] sm:$0xf]
        %v4281 = vld [vmem:[#allocation9 + $0x1fc] sm:$0xf]
        %v4282 = vunpack.c.l.b16 %v4167
        %v4283 = vunpack.c.l.b16 %v4181
        %v4284 = vunpack.c.l.b16 %v4195
        %v4285 = vunpack.c.l.b16 %v4209
        %v4286 = vunpack.c.l.b16 %v4223
        %v4287 = vunpack.c.l.b16 %v4237
        %v4288 = vunpack.c.l.b16 %v4251
        %v4289 = vunpack.c.l.b16 %v4265
        %v4290 = vpack.c.b16 %v4283, %v4282
        %v4291 = vpack.c.b16 %v4285, %v4284
        %v4292 = vpack.c.b16 %v4287, %v4286
        %v4293 = vpack.c.b16 %v4289, %v4288
        %v4314 = vunpack.c.l.b16 %v4266
        %v4315 = vunpack.c.l.b16 %v4267
        %v4316 = vunpack.c.l.b16 %v4268
        %v4317 = vunpack.c.l.b16 %v4269
        %v4318 = vunpack.c.l.b16 %v4270
        %v4319 = vunpack.c.l.b16 %v4271
        %v4320 = vunpack.c.l.b16 %v4272
        %v4321 = vunpack.c.l.b16 %v4273
        %v4322 = vunpack.c.l.b16 %v4274
        %v4323 = vunpack.c.l.b16 %v4275
        %v4324 = vunpack.c.l.b16 %v4276
        %v4325 = vunpack.c.l.b16 %v4277
        %v4326 = vunpack.c.l.b16 %v4278
        %v4327 = vunpack.c.l.b16 %v4279
        %v4328 = vunpack.c.l.b16 %v4280
        %v4329 = vunpack.c.l.b16 %v4281
        %v4330 = vpack.c.b16 %v4315, %v4314
        %v4331 = vpack.c.b16 %v4317, %v4316
        %v4332 = vpack.c.b16 %v4319, %v4318
        %v4333 = vpack.c.b16 %v4321, %v4320
        %v4334 = vpack.c.b16 %v4323, %v4322
        %v4335 = vpack.c.b16 %v4325, %v4324
        %v4336 = vpack.c.b16 %v4327, %v4326
        %v4337 = vpack.c.b16 %v4329, %v4328
        %4346 = vmatprep.subr.bf16.mxu0 0
        %4347 = vmatpush1.bf16.msra.mxu0 %v4330
        %4348 = vmatprep.subr.bf16.mxu0 0
        %4349 = vmatpush1.bf16.msra.mxu0 %v4331
        %4350 = vmatprep.subr.bf16.mxu0 0
        %4351 = vmatpush1.bf16.msra.mxu0 %v4332
        %4352 = vmatprep.subr.bf16.mxu0 0
        %4353 = vmatpush1.bf16.msra.mxu0 %v4333
        %4354 = vmatprep.subr.bf16.mxu0 0
        %4355 = vmatpush1.bf16.msra.mxu0 %v4334
        %4356 = vmatprep.subr.bf16.mxu0 0
        %4357 = vmatpush1.bf16.msra.mxu0 %v4335
        %4358 = vmatprep.subr.bf16.mxu0 0
        %4359 = vmatpush1.bf16.msra.mxu0 %v4336
        %4360 = vmatprep.subr.bf16.mxu0 0
        %4361 = vmatpush1.bf16.msra.mxu0 %v4337
        %4362 = vmatprep.subr.bf16.mxu0 0
        %4363 = vmatpush1.bf16.msra.mxu0 0
        %4364 = vmatprep.subr.bf16.mxu0 0
        %4365 = vmatpush1.bf16.msra.mxu0 0
        %4366 = vmatprep.subr.bf16.mxu0 0
        %4367 = vmatpush1.bf16.msra.mxu0 0
        %4368 = vmatprep.subr.bf16.mxu0 0
        %4369 = vmatpush1.bf16.msra.mxu0 0
        %4370 = vmatprep.subr.bf16.mxu0 0
        %4371 = vmatpush1.bf16.msra.mxu0 0
        %4372 = vmatprep.subr.bf16.mxu0 0
        %4373 = vmatpush1.bf16.msra.mxu0 0
        %4374 = vmatprep.subr.bf16.mxu0 0
        %4375 = vmatpush1.bf16.msra.mxu0 0
        %4376 = vmatprep.subr.bf16.mxu0 0
        %4377 = vmatpush1.bf16.msra.mxu0 0
        %4378 = vmatprep.mubr.bf16.mxu0 0
        %4379 = vmatmul.mubr.bf16.gmra.mrb[0].mxu0 %v4290
        %v4380 = vpop.f32.mrb[0].mxu0
        %v4381 = vadd.f32 0.0, %v4380
        %v4382 = vpop.f32.mrb[0].mxu0
        %v4383 = vpop.f32.mrb[0].mxu0
        %v4384 = vadd.f32 0.0, %v4383
        %v4385 = vpop.f32.mrb[0].mxu0
        %4386 = vmatprep.mubr.bf16.mxu0 0
        %4387 = vmatmul.mubr.bf16.gmra.mrb[0].mxu0 %v4291
        %v4388 = vpop.f32.mrb[0].mxu0
        %v4389 = vadd.f32 0.0, %v4388
        %v4390 = vpop.f32.mrb[0].mxu0
        %v4391 = vpop.f32.mrb[0].mxu0
        %v4392 = vadd.f32 0.0, %v4391
        %v4393 = vpop.f32.mrb[0].mxu0
        %4394 = vmatprep.mubr.bf16.mxu0 0
        %4395 = vmatmul.mubr.bf16.gmra.mrb[0].mxu0 %v4292
        %v4396 = vpop.f32.mrb[0].mxu0
        %v4397 = vadd.f32 0.0, %v4396
        %v4398 = vpop.f32.mrb[0].mxu0
        %v4399 = vpop.f32.mrb[0].mxu0
        %v4400 = vadd.f32 0.0, %v4399
        %v4401 = vpop.f32.mrb[0].mxu0
        %4402 = vmatprep.mubr.bf16.mxu0 0
        %4403 = vmatmul.mubr.bf16.gmra.mrb[0].mxu0 %v4293
        %v4404 = vpop.f32.mrb[0].mxu0
        %v4405 = vadd.f32 0.0, %v4404
        %v4406 = vpop.f32.mrb[0].mxu0
        %v4407 = vpop.f32.mrb[0].mxu0
        %v4408 = vadd.f32 0.0, %v4407
        %v4409 = vpop.f32.mrb[0].mxu0
        %4410 = vdwg.mxu0
        %v4411 = vadd.f32 %v4130, %v4381
        %v4412 = vadd.f32 %v4131, %v4384
        %v4413 = vadd.f32 %v4132, %v4389
        %v4414 = vadd.f32 %v4133, %v4392
        %v4415 = vadd.f32 %v4134, %v4397
        %v4416 = vadd.f32 %v4135, %v4400
        %v4417 = vadd.f32 %v4136, %v4405
        %v4418 = vadd.f32 %v4137, %v4408
        %v4419 = vld [vmem:[%s3968] sm:$0xe]
        %v4420 = vld [vmem:[%s3968 + $0x8] sm:$0xe]
        %v4421 = vld [vmem:[%s3968 + $0x10] sm:$0xe]
        %v4422 = vld [vmem:[%s3968 + $0x18] sm:$0xe]
        %v4423 = vld [vmem:[%s3968 + $0x20] sm:$0xe]
        %v4424 = vld [vmem:[%s3968 + $0x28] sm:$0xe]
        %v4425 = vld [vmem:[%s3968 + $0x30] sm:$0xe]
        %v4426 = vld [vmem:[%s3968 + $0x38] sm:$0xe]
        %v4443 = vrot.slane %v4419, 5
        %v4444 = vrot.slane %v4443, 4
        %v4445 = vrot.slane %v4139, 5
        %v4446 = vsel %vm985, %v4444, %v4445
        %v4447 = vrot.slane %v4420, 5
        %v4448 = vrot.slane %v4447, 4
        %v4449 = vrot.slane %v4141, 5
        %v4450 = vsel %vm985, %v4448, %v4449
        %v4451 = vrot.slane %v4421, 5
        %v4452 = vrot.slane %v4451, 4
        %v4453 = vrot.slane %v4143, 5
        %v4454 = vsel %vm985, %v4452, %v4453
        %v4455 = vrot.slane %v4422, 5
        %v4456 = vrot.slane %v4455, 4
        %v4457 = vrot.slane %v4145, 5
        %v4458 = vsel %vm985, %v4456, %v4457
        %v4459 = vrot.slane %v4423, 5
        %v4460 = vrot.slane %v4459, 4
        %v4461 = vrot.slane %v4147, 5
        %v4462 = vsel %vm985, %v4460, %v4461
        %v4463 = vrot.slane %v4424, 5
        %v4464 = vrot.slane %v4463, 4
        %v4465 = vrot.slane %v4149, 5
        %v4466 = vsel %vm985, %v4464, %v4465
        %v4467 = vrot.slane %v4425, 5
        %v4468 = vrot.slane %v4467, 4
        %v4469 = vrot.slane %v4151, 5
        %v4470 = vsel %vm985, %v4468, %v4469
        %v4471 = vrot.slane %v4426, 5
        %v4472 = vrot.slane %v4471, 4
        %v4473 = vrot.slane %v4153, 5
        %v4474 = vsel %vm985, %v4472, %v4473
        %v4475 = vld [vmem:[#allocation9 + $0x200] sm:$0xf]
        %v4476 = vld [vmem:[#allocation9 + $0x204] sm:$0xf]
        %v4477 = vld [vmem:[#allocation9 + $0x208] sm:$0xf]
        %v4478 = vld [vmem:[#allocation9 + $0x20c] sm:$0xf]
        %v4479 = vld [vmem:[#allocation9 + $0x210] sm:$0xf]
        %v4480 = vld [vmem:[#allocation9 + $0x214] sm:$0xf]
        %v4481 = vld [vmem:[#allocation9 + $0x218] sm:$0xf]
        %v4482 = vld [vmem:[#allocation9 + $0x21c] sm:$0xf]
        %v4483 = vld [vmem:[#allocation9 + $0x220] sm:$0xf]
        %v4484 = vld [vmem:[#allocation9 + $0x224] sm:$0xf]
        %v4485 = vld [vmem:[#allocation9 + $0x228] sm:$0xf]
        %v4486 = vld [vmem:[#allocation9 + $0x22c] sm:$0xf]
        %v4487 = vld [vmem:[#allocation9 + $0x230] sm:$0xf]
        %v4488 = vld [vmem:[#allocation9 + $0x234] sm:$0xf]
        %v4489 = vld [vmem:[#allocation9 + $0x238] sm:$0xf]
        %v4490 = vld [vmem:[#allocation9 + $0x23c] sm:$0xf]
        %v4491 = vunpack.c.l.b16 %v4446
        %v4492 = vunpack.c.l.b16 %v4450
        %v4493 = vunpack.c.l.b16 %v4454
        %v4494 = vunpack.c.l.b16 %v4458
        %v4495 = vunpack.c.l.b16 %v4462
        %v4496 = vunpack.c.l.b16 %v4466
        %v4497 = vunpack.c.l.b16 %v4470
        %v4498 = vunpack.c.l.b16 %v4474
        %v4499 = vpack.c.b16 %v4492, %v4491
        %v4500 = vpack.c.b16 %v4494, %v4493
        %v4501 = vpack.c.b16 %v4496, %v4495
        %v4502 = vpack.c.b16 %v4498, %v4497
        %v4523 = vunpack.c.l.b16 %v4475
        %v4524 = vunpack.c.l.b16 %v4476
        %v4525 = vunpack.c.l.b16 %v4477
        %v4526 = vunpack.c.l.b16 %v4478
        %v4527 = vunpack.c.l.b16 %v4479
        %v4528 = vunpack.c.l.b16 %v4480
        %v4529 = vunpack.c.l.b16 %v4481
        %v4530 = vunpack.c.l.b16 %v4482
        %v4531 = vunpack.c.l.b16 %v4483
        %v4532 = vunpack.c.l.b16 %v4484
        %v4533 = vunpack.c.l.b16 %v4485
        %v4534 = vunpack.c.l.b16 %v4486
        %v4535 = vunpack.c.l.b16 %v4487
        %v4536 = vunpack.c.l.b16 %v4488
        %v4537 = vunpack.c.l.b16 %v4489
        %v4538 = vunpack.c.l.b16 %v4490
        %v4539 = vpack.c.b16 %v4524, %v4523
        %v4540 = vpack.c.b16 %v4526, %v4525
        %v4541 = vpack.c.b16 %v4528, %v4527
        %v4542 = vpack.c.b16 %v4530, %v4529
        %v4543 = vpack.c.b16 %v4532, %v4531
        %v4544 = vpack.c.b16 %v4534, %v4533
        %v4545 = vpack.c.b16 %v4536, %v4535
        %v4546 = vpack.c.b16 %v4538, %v4537
        %4555 = vmatprep.subr.bf16.mxu0 0
        %4556 = vmatpush1.bf16.msra.mxu0 %v4539
        %4557 = vmatprep.subr.bf16.mxu0 0
        %4558 = vmatpush1.bf16.msra.mxu0 %v4540
        %4559 = vmatprep.subr.bf16.mxu0 0
        %4560 = vmatpush1.bf16.msra.mxu0 %v4541
        %4561 = vmatprep.subr.bf16.mxu0 0
        %4562 = vmatpush1.bf16.msra.mxu0 %v4542
        %4563 = vmatprep.subr.bf16.mxu0 0
        %4564 = vmatpush1.bf16.msra.mxu0 %v4543
        %4565 = vmatprep.subr.bf16.mxu0 0
        %4566 = vmatpush1.bf16.msra.mxu0 %v4544
        %4567 = vmatprep.subr.bf16.mxu0 0
        %4568 = vmatpush1.bf16.msra.mxu0 %v4545
        %4569 = vmatprep.subr.bf16.mxu0 0
        %4570 = vmatpush1.bf16.msra.mxu0 %v4546
        %4571 = vmatprep.subr.bf16.mxu0 0
        %4572 = vmatpush1.bf16.msra.mxu0 0
        %4573 = vmatprep.subr.bf16.mxu0 0
        %4574 = vmatpush1.bf16.msra.mxu0 0
        %4575 = vmatprep.subr.bf16.mxu0 0
        %4576 = vmatpush1.bf16.msra.mxu0 0
        %4577 = vmatprep.subr.bf16.mxu0 0
        %4578 = vmatpush1.bf16.msra.mxu0 0
        %4579 = vmatprep.subr.bf16.mxu0 0
        %4580 = vmatpush1.bf16.msra.mxu0 0
        %4581 = vmatprep.subr.bf16.mxu0 0
        %4582 = vmatpush1.bf16.msra.mxu0 0
        %4583 = vmatprep.subr.bf16.mxu0 0
        %4584 = vmatpush1.bf16.msra.mxu0 0
        %4585 = vmatprep.subr.bf16.mxu0 0
        %4586 = vmatpush1.bf16.msra.mxu0 0
        %4587 = vmatprep.mubr.bf16.mxu0 0
        %4588 = vmatmul.mubr.bf16.gmra.mrb[0].mxu0 %v4499
        %v4589 = vpop.f32.mrb[0].mxu0
        %v4590 = vadd.f32 0.0, %v4589
        %v4591 = vpop.f32.mrb[0].mxu0
        %v4592 = vpop.f32.mrb[0].mxu0
        %v4593 = vadd.f32 0.0, %v4592
        %v4594 = vpop.f32.mrb[0].mxu0
        %4595 = vmatprep.mubr.bf16.mxu0 0
        %4596 = vmatmul.mubr.bf16.gmra.mrb[0].mxu0 %v4500
        %v4597 = vpop.f32.mrb[0].mxu0
        %v4598 = vadd.f32 0.0, %v4597
        %v4599 = vpop.f32.mrb[0].mxu0
        %v4600 = vpop.f32.mrb[0].mxu0
        %v4601 = vadd.f32 0.0, %v4600
        %v4602 = vpop.f32.mrb[0].mxu0
        %4603 = vmatprep.mubr.bf16.mxu0 0
        %4604 = vmatmul.mubr.bf16.gmra.mrb[0].mxu0 %v4501
        %v4605 = vpop.f32.mrb[0].mxu0
        %v4606 = vadd.f32 0.0, %v4605
        %v4607 = vpop.f32.mrb[0].mxu0
        %v4608 = vpop.f32.mrb[0].mxu0
        %v4609 = vadd.f32 0.0, %v4608
        %v4610 = vpop.f32.mrb[0].mxu0
        %4611 = vmatprep.mubr.bf16.mxu0 0
        %4612 = vmatmul.mubr.bf16.gmra.mrb[0].mxu0 %v4502
        %v4613 = vpop.f32.mrb[0].mxu0
        %v4614 = vadd.f32 0.0, %v4613
        %v4615 = vpop.f32.mrb[0].mxu0
        %v4616 = vpop.f32.mrb[0].mxu0
        %v4617 = vadd.f32 0.0, %v4616
        %v4618 = vpop.f32.mrb[0].mxu0
        %4619 = vdwg.mxu0
        %v4620 = vadd.f32 %v4411, %v4590
        %v4621 = vadd.f32 %v4412, %v4593
        %v4622 = vadd.f32 %v4413, %v4598
        %v4623 = vadd.f32 %v4414, %v4601
        %v4624 = vadd.f32 %v4415, %v4606
        %v4625 = vadd.f32 %v4416, %v4609
        %v4626 = vadd.f32 %v4417, %v4614
        %v4627 = vadd.f32 %v4418, %v4617
        %v4628 = vld [vmem:[%s4] sm:$0x1]
        %v4630 = vlaneseq
        %v4631 = vshrl.u32 %v4630, 7
        %v4632 = vsub.s32 0, %v4631
        %v4633 = vrot.slane %v4628, %v4632
        %v4635 = vadd.f32 %v4620, %v4633
        %v4636 = vadd.f32 %v4621, %v4633
        %v4637 = vadd.f32 %v4622, %v4633
        %v4638 = vadd.f32 %v4623, %v4633
        %v4639 = vadd.f32 %v4624, %v4633
        %v4640 = vadd.f32 %v4625, %v4633
        %v4641 = vadd.f32 %v4626, %v4633
        %v4642 = vadd.f32 %v4627, %v4633
        %v4643 = vmax.f32 %v4635, 0.0
        %v4644 = vmax.f32 %v4636, 0.0
        %v4645 = vmax.f32 %v4637, 0.0
        %v4646 = vmax.f32 %v4638, 0.0
        %v4647 = vmax.f32 %v4639, 0.0
        %v4648 = vmax.f32 %v4640, 0.0
        %v4649 = vmax.f32 %v4641, 0.0
        %v4650 = vmax.f32 %v4642, 0.0
        %v4651 = vpack.c.bf16 %v4643, %v4643
        %v4652 = vpack.c.bf16 %v4644, %v4644
        %v4653 = vpack.c.bf16 %v4645, %v4645
        %v4654 = vpack.c.bf16 %v4646, %v4646
        %v4655 = vpack.c.bf16 %v4647, %v4647
        %v4656 = vpack.c.bf16 %v4648, %v4648
        %v4657 = vpack.c.bf16 %v4649, %v4649
        %v4658 = vpack.c.bf16 %v4650, %v4650
        %4659 = vst [vmem:[%s288] sm:$0xf] %v4651
        %4660 = vst [vmem:[%s288 + $0x4] sm:$0xf] %v4652
        %4661 = vst [vmem:[%s288 + $0x8] sm:$0xf] %v4653
        %4662 = vst [vmem:[%s288 + $0xc] sm:$0xf] %v4654
        %4663 = vst [vmem:[%s288 + $0x10] sm:$0xf] %v4655
        %4664 = vst [vmem:[%s288 + $0x14] sm:$0xf] %v4656
        %4665 = vst [vmem:[%s288 + $0x18] sm:$0xf] %v4657
        %4666 = vst [vmem:[%s288 + $0x1c] sm:$0xf] %v4658
        %s4667 = sand.u32 %s157, 1
        %s4668 = scalar_lea.sflag [#allocation6], %s4667
        %s4669 = sand.u32 %s157, 1
        %s4670 = smul.addr %s4669, 32
        %s4671 = scalar_lea.vmem [#allocation10], %s4670
        // Predicated region
        $region57: #{tpu_custom_call.1} parent=39 // pred_check
          %p4672 = pneg %p167
        $region58: #{tpu_custom_call.1} parent=39 // pred_check_branch
          %4674 = sbr.rel (%p4672) target = $region60
        $region59: #{tpu_custom_call.1} parent=39 // pred_region
          %s4675 = sadd.s32 %s27, %s28
          %s4677 = ssub.s32 512, 512
          %4678 = vsyncadd %s4668, %s4677
          %s4679 = smul.addr %s4675, 8
          %s4680 = smul.addr %s4679, 64
          %s4681 = scalar_lea.hbm %s5, %s4680
          %s4682 = sshll.u32 %s4671, 4
          %s4683 = int_to_ptr.vmem [resolvable:$true] %s4682
          %4688 = dma.vmem_to_hbm [thread:$0]  %s4683, 512, %s4681, %s4668, 64, 64, 4
        $region60: #{tpu_custom_call.1} parent=39 // pred_fallthru
          _
      $region40: #{tpu_custom_call.1} parent=5 // pred_fallthru
        _
      %p4689 = scmp.le.s32.totalorder 2, %s18
      // Predicated region
      $region61: #{tpu_custom_call.1} parent=5 // pred_check
        %p4690 = pneg %p4689
      $region62: #{tpu_custom_call.1} parent=5 // pred_check_branch
        %4692 = sbr.rel (%p4690) target = $region64
      $region63: #{tpu_custom_call.1} parent=5 // pred_region
        %s4693 = ssub.s32 %s18, 2
        // Predicated region
        $region65: #{tpu_custom_call.1} parent=63 // pred_check
          %p4694 = pneg %p173
        $region66: #{tpu_custom_call.1} parent=63 // pred_check_branch
          %4696 = sbr.rel (%p4694) target = $region68
        $region67: #{tpu_custom_call.1} parent=63 // pred_region
          %s4697 = sand.u32 %s158, 1
          %s4698 = scalar_lea.sflag [#allocation6], %s4697
          %s4699 = sand.u32 %s158, 1
          %s4700 = smul.addr %s4699, 32
          %s4701 = scalar_lea.vmem [#allocation10], %s4700
          %4702 = dma.done %s4698, 512
        $region68: #{tpu_custom_call.1} parent=63 // pred_fallthru
          _
      $region64: #{tpu_custom_call.1} parent=5 // pred_fallthru
        _
    $region6: #{tpu_custom_call.1} parent=1 // loop_footer
      %s22 = sadd.s32 1, %s18
    $region7: #{tpu_custom_call.1} parent=1 // loop_footer_branch
      %17 = sbr.rel target = $region3
    $region8: #{tpu_custom_call.1} parent=1 // loop_exit
      _
    %4703 = vsyncpa [#allocation5], 1
    %s4704 = scalar_lea.sflag [#allocation5], 1
    %4705 = vsyncpa %s4704, 1
    %4706 = vsyncpa [#allocation8], 1
    %4707 = vsyncpa [#allocation6], 1
    %s4708 = scalar_lea.sflag [#allocation6], 1
    %4709 = vsyncpa %s4708, 1

</llo_original>
